<compile_context>
chip_gen: v6e
topology: v6e:2x2x1
jax: 0.10.0
libtpu: 0.0.40
codegen_flags: <defaults>
</compile_context>

<pallas_src>
import functools

import jax
import jax.numpy as jnp
from jax import lax
from jax.experimental import pallas as pl
from jax.experimental.pallas import tpu as pltpu

_VMEM_LIMIT = 32 * 1024 * 1024  # honest limit; per-step buffers are only a few MiB


def _pick_tile(n, target=512):
    """Largest row tile <= target that still leaves >= 2 grid steps (keeps both v7x TCs busy)."""
    t = min(target, n)
    if n > 8 and pl.cdiv(n, t) < 2:
        t = max(8, ((n // 2 + 7) // 8) * 8)
    return t


# ----------------------------- Pallas kernels -------------------------------------

def _box_proj_kernel(q_ref, wqc_ref, bqc_ref, pool_ref, attn_ref, off_ref, *, a_pad):
    """Fused q-side projections: ONE matmul for [attn-logits | box-offsets] (split at a
    128-aligned lane boundary), in-kernel per-head softmax (denominator via a bf16
    block-diagonal pooling matmul -> no sub-lane reshapes)."""
    q = q_ref[...].astype(jnp.bfloat16)
    full = jnp.dot(q, wqc_ref[...], preferred_element_type=jnp.float32) + bqc_ref[...]
    logits = full[:, :a_pad]          # a_pad % 128 == 0 -> free slice
    off = full[:, a_pad:]

    # per-head softmax (subtracting the global row max keeps exp() stable and does not
    # change any per-head softmax; pad columns never feed downstream compute).
    e = jnp.exp(logits - jnp.max(logits, axis=-1, keepdims=True))
    denom = jnp.dot(e.astype(jnp.bfloat16), pool_ref[...],
                    preferred_element_type=jnp.float32)
    attn_ref[...] = (e * pl.reciprocal(denom, approx=True)).astype(attn_ref.dtype)
    off_ref[...] = off.astype(off_ref.dtype)


def _box_sample_kernel(v_ref, keep_ref, wv_ref, bv_ref, attn_ref, px_ref, py_ref,
                       o_ref, *, nhead, npoint, hgrid, wgrid):
    """Value projection (+mask fill) with the whole per-batch map resident in VMEM,
    followed by scatter-free bilinear sampling + attention-weighted sum.

    For each head, the per-query combination over sampled points is accumulated as a
    (HW, tile_q) matrix using separable bilinear 'hat' weights
        w(pos, x) = max(0, 1 - |pos - x|)
    (exact grid_sample(align_corners=False, padding_mode='zeros') semantics), then
    contracted with the VMEM-resident value map on the MXU."""
    hw = hgrid * wgrid
    d = v_ref.shape[-1]
    hd = d // nhead
    tile_q = o_ref.shape[1]

    # value projection + padding-mask fill (masked rows -> exactly 0, incl. bias)
    vmap = (jnp.dot(v_ref[0].astype(jnp.bfloat16), wv_ref[...],
                    preferred_element_type=jnp.float32) + bv_ref[...]) * keep_ref[0]

    # per-position pixel coordinates of the flattened map, hoisted out of all loops
    posy = lax.broadcasted_iota(jnp.float32, (hgrid, wgrid, tile_q), 0).reshape(hw, tile_q)
    posx = lax.broadcasted_iota(jnp.float32, (hgrid, wgrid, tile_q), 1).reshape(hw, tile_q)

    outs = []
    for h in range(nhead):
        def body(pt, w_acc, h=h):
            j = h * npoint + pt
            xq = px_ref[0, pl.ds(j, 1), :]                    # (1, tile_q) pixel x
            yq = py_ref[0, pl.ds(j, 1), :]                    # (1, tile_q) pixel y
            aq = attn_ref[0, pl.ds(j, 1), :]                  # (1, tile_q) softmax weight
            hx = jnp.maximum(1.0 - jnp.abs(posx - xq), 0.0)   # (hw, tile_q)
            hy = jnp.maximum(1.0 - jnp.abs(posy - yq), 0.0)
            return w_acc + (hx * hy) * aq

        w_acc = lax.fori_loop(0, npoint, body,
                              jnp.zeros((hw, tile_q), jnp.float32), unroll=2)
        vh = vmap[:, h * hd:(h + 1) * hd]                     # (hw, hd)
        outs.append(lax.dot_general(w_acc, vh, (((0,), (0,)), ((), ())),
                                    preferred_element_type=jnp.float32))
    o_ref[0] = jnp.concatenate(outs, axis=-1).astype(o_ref.dtype)


def _outproj_ffn_ln_kernel(x_ref, res_ref, wo_ref, bo_ref, g1_ref, bn1_ref,
                           w1_ref, b1_ref, w2_ref, b2_ref, g2_ref, bn2_ref, o_ref):
    """Fused: out-projection + residual + LayerNorm1 + FFN(relu) + residual + LayerNorm2."""
    y = jnp.dot(x_ref[...].astype(jnp.bfloat16), wo_ref[...],
                preferred_element_type=jnp.float32) + bo_ref[...]
    z = res_ref[...].astype(jnp.float32) + y
    mean = jnp.mean(z, axis=-1, keepdims=True)
    zc = z - mean
    var = jnp.mean(zc * zc, axis=-1, keepdims=True)
    z1 = zc * jax.lax.rsqrt(var + 1e-5) * g1_ref[...] + bn1_ref[...]

    h = jnp.dot(z1.astype(jnp.bfloat16), w1_ref[...],
                preferred_element_type=jnp.float32) + b1_ref[...]
    h = jnp.maximum(h, 0.0)  # activation = relu ; dropout = identity (eval)
    y2 = jnp.dot(h.astype(jnp.bfloat16), w2_ref[...],
                 preferred_element_type=jnp.float32) + b2_ref[...]
    z2 = z1 + y2
    mean2 = jnp.mean(z2, axis=-1, keepdims=True)
    zc2 = z2 - mean2
    var2 = jnp.mean(zc2 * zc2, axis=-1, keepdims=True)
    o_ref[...] = (zc2 * jax.lax.rsqrt(var2 + 1e-5) * g2_ref[...] + bn2_ref[...]
                  ).astype(o_ref.dtype)


# ----------------------------- Pallas wrappers -------------------------------------

def box_proj_pallas(q2d, wqc, bqc, pool, *, a_pad, tile_m=None):
    """q2d: (N, D). Returns attn (N, a_pad) bf16 and box offsets (N, Bo) f32."""
    n, d = q2d.shape
    w_tot = wqc.shape[1]
    bo = w_tot - a_pad
    tile_m = _pick_tile(n) if tile_m is None else tile_m
    grid = (pl.cdiv(n, tile_m),)
    kernel = functools.partial(_box_proj_kernel, a_pad=a_pad)
    return pl.pallas_call(
        kernel,
        out_shape=(jax.ShapeDtypeStruct((n, a_pad), jnp.bfloat16),
                   jax.ShapeDtypeStruct((n, bo), jnp.float32)),
        grid_spec=pltpu.PrefetchScalarGridSpec(
            num_scalar_prefetch=0,
            grid=grid,
            in_specs=[
                pl.BlockSpec((tile_m, d), lambda i: (i, 0)),      # q
                pl.BlockSpec((d, w_tot), lambda i: (0, 0)),       # [wa|pad|wb] bf16
                pl.BlockSpec((1, w_tot), lambda i: (0, 0)),       # [ba|pad|bb]
                pl.BlockSpec((a_pad, a_pad), lambda i: (0, 0)),   # head pooling (bf16)
            ],
            out_specs=(
                pl.BlockSpec((tile_m, a_pad), lambda i: (i, 0)),
                pl.BlockSpec((tile_m, bo), lambda i: (i, 0)),
            ),
        ),
        compiler_params=pltpu.CompilerParams(
            dimension_semantics=("parallel",),
            vmem_limit_bytes=_VMEM_LIMIT,
        ),
    )(q2d, wqc, bqc, pool)


def box_sample_pallas(value, keep, wv, bv, attn_t, px_t, py_t, *,
                      nhead, npoint, hgrid, wgrid, tile_q=128):
    """value: (B, HW, D); keep: (B, HW, 1); attn_t/px_t/py_t: (B, A_pad, L) point-major."""
    b, hw, d = value.shape
    a_pad, l = attn_t.shape[1], attn_t.shape[2]
    tile_q = min(tile_q, l)
    grid = (b, pl.cdiv(l, tile_q))
    kernel = functools.partial(_box_sample_kernel, nhead=nhead, npoint=npoint,
                               hgrid=hgrid, wgrid=wgrid)
    return pl.pallas_call(
        kernel,
        out_shape=jax.ShapeDtypeStruct((b, l, d), jnp.float32),
        grid_spec=pltpu.PrefetchScalarGridSpec(
            num_scalar_prefetch=0,
            grid=grid,
            in_specs=[
                pl.BlockSpec((1, hw, d), lambda bi, qi: (bi, 0, 0)),        # raw value map
                pl.BlockSpec((1, hw, 1), lambda bi, qi: (bi, 0, 0)),        # keep mask
                pl.BlockSpec((d, d), lambda bi, qi: (0, 0)),                # wv bf16
                pl.BlockSpec((1, d), lambda bi, qi: (0, 0)),                # bv
                pl.BlockSpec((1, a_pad, tile_q), lambda bi, qi: (bi, 0, qi)),  # attn
                pl.BlockSpec((1, a_pad, tile_q), lambda bi, qi: (bi, 0, qi)),  # px
                pl.BlockSpec((1, a_pad, tile_q), lambda bi, qi: (bi, 0, qi)),  # py
            ],
            out_specs=pl.BlockSpec((1, tile_q, d), lambda bi, qi: (bi, qi, 0)),
        ),
        compiler_params=pltpu.CompilerParams(
            dimension_semantics=("parallel", "arbitrary"),
            vmem_limit_bytes=_VMEM_LIMIT,
        ),
    )(value, keep, wv, bv, attn_t, px_t, py_t)


def outproj_ffn_ln_pallas(x, res, wo, bo, g1, bn1, w1, b1, w2, b2, g2, bn2, *, tile_m=None):
    """LayerNorm2(z1 + FFN(z1)) with z1 = LayerNorm1(res + x@wo + bo), fully fused."""
    n, d = x.shape
    f = w1.shape[1]
    tile_m = _pick_tile(n) if tile_m is None else tile_m
    grid = (pl.cdiv(n, tile_m),)
    return pl.pallas_call(
        _outproj_ffn_ln_kernel,
        out_shape=jax.ShapeDtypeStruct((n, d), jnp.float32),
        grid_spec=pltpu.PrefetchScalarGridSpec(
            num_scalar_prefetch=0,
            grid=grid,
            in_specs=[
                pl.BlockSpec((tile_m, d), lambda i: (i, 0)),
                pl.BlockSpec((tile_m, d), lambda i: (i, 0)),
                pl.BlockSpec((d, d), lambda i: (0, 0)),
                pl.BlockSpec((1, d), lambda i: (0, 0)),
                pl.BlockSpec((1, d), lambda i: (0, 0)),
                pl.BlockSpec((1, d), lambda i: (0, 0)),
                pl.BlockSpec((d, f), lambda i: (0, 0)),
                pl.BlockSpec((1, f), lambda i: (0, 0)),
                pl.BlockSpec((f, d), lambda i: (0, 0)),
                pl.BlockSpec((1, d), lambda i: (0, 0)),
                pl.BlockSpec((1, d), lambda i: (0, 0)),
                pl.BlockSpec((1, d), lambda i: (0, 0)),
            ],
            out_specs=pl.BlockSpec((tile_m, d), lambda i: (i, 0)),
        ),
        compiler_params=pltpu.CompilerParams(
            dimension_semantics=("parallel",),
            vmem_limit_bytes=_VMEM_LIMIT,
        ),
    )(x, res, wo, bo.reshape(1, d), g1.reshape(1, d), bn1.reshape(1, d),
      w1, b1.reshape(1, f), w2, b2.reshape(1, d), g2.reshape(1, d), bn2.reshape(1, d))


# ----------------------------- plain-JAX glue --------------------------------------

def simple_box_attention(params, query, value, v_shape, v_mask, v_valid_ratios,
                         ref_windows, *, nhead, num_box, kernel_size):
    b, l, d = query.shape
    hgrid, wgrid = int(v_shape[0][0]), int(v_shape[0][1])
    ks = kernel_size
    p = num_box * ks * ks
    a = nhead * p
    a_pad = ((a + 127) // 128) * 128

    # Fused q-side kernel: attention logits + per-head softmax + box offsets.
    attn2d, off2d = box_proj_pallas(query.reshape(b * l, d),
                                    params["wqc"], params["bqc"], params["pool"],
                                    a_pad=a_pad)

    # TODO(synk): box -> ks^2 sampling-point expansion + point-major layout stay in
    # plain JAX (cheap elementwise / layout ops); only the gather itself is in Pallas.
    off = off2d.reshape(b, l, nhead, num_box, 4)
    ref = ref_windows[:, :, None, None, :]                       # (B,L,1,1,4) cx,cy,w,h
    ref_wh = jnp.concatenate([ref[..., 2:], ref[..., 2:]], axis=-1)
    boxes = ref + off / 8.0 * ref_wh
    center, size = boxes[..., :2], boxes[..., 2:]
    g1 = (jnp.arange(ks, dtype=jnp.float32) + 0.5) / ks - 0.5
    gy, gx = jnp.meshgrid(g1, g1, indexing="ij")
    unit = jnp.stack([gx, gy], axis=-1).reshape(1, 1, 1, 1, ks * ks, 2)
    locs = center[..., None, :] + unit * size[..., None, :]      # (B,L,nh,nb,ks*ks,2)
    locs = locs * v_valid_ratios.reshape(b, 1, 1, 1, 1, 2)

    # pixel coords (grid_sample align_corners=False convention), point-major (B,A_pad,L)
    px = (locs[..., 0] * wgrid - 0.5).reshape(b, l, a).transpose(0, 2, 1)
    py = (locs[..., 1] * hgrid - 0.5).reshape(b, l, a).transpose(0, 2, 1)
    pad = ((0, 0), (0, a_pad - a), (0, 0))
    px = jnp.pad(px, pad)
    py = jnp.pad(py, pad)
    attn_t = attn2d.astype(jnp.float32).reshape(b, l, a_pad).transpose(0, 2, 1)

    if v_mask is None:
        keep = jnp.ones((b, l, 1), jnp.float32)
    else:
        keep = 1.0 - v_mask.reshape(b, l, 1).astype(jnp.float32)

    # TODO(synk): for very large feature maps the dense hat-product accumulation should
    # be replaced by a manual-DMA gather; here the map lives fully in VMEM.
    out = box_sample_pallas(value, keep, params["wv"], params["bv"].reshape(1, d),
                            attn_t, px, py,
                            nhead=nhead, npoint=p, hgrid=hgrid, wgrid=wgrid)
    return out, attn2d[:, :a].reshape(b, l, nhead, p)


def simplr_encoder_layer(params, src, pos, src_shape, src_mask, src_start_index,
                         src_valid_ratios, ref_windows, *, nhead, num_box, kernel_size):
    # prenorm=False -> forward_post; dropouts are identity (eval).
    del src_start_index  # single-level features: level start index unused
    b, l, d = src.shape
    q = src if pos is None else src + pos
    src2, _ = simple_box_attention(params, q, src, src_shape, src_mask,
                                   src_valid_ratios, ref_windows,
                                   nhead=nhead, num_box=num_box, kernel_size=kernel_size)
    # fused: out-projection + residual + LN1 + FFN + residual + LN2
    x = outproj_ffn_ln_pallas(src2.reshape(b * l, d), src.reshape(b * l, d),
                              params["wo"], params["bo"],
                              params["ln1_g"], params["ln1_b"],
                              params["w1"], params["b1"], params["w2"], params["b2"],
                              params["ln2_g"], params["ln2_b"])
    return x.reshape(b, l, d)


# ----------------------------- parameters ------------------------------------------

def init_params(key, d_model, nhead, dim_feedforward, num_box, kernel_size):
    p = num_box * kernel_size * kernel_size
    a = nhead * p
    a_pad = ((a + 127) // 128) * 128
    bo_dim = nhead * num_box * 4
    ks = jax.random.split(key, 7)
    s = 0.02
    wdt = jnp.bfloat16  # MXU weight storage dtype

    def nrm(k, shape, scale=s, dtype=jnp.float32):
        return (scale * jax.random.normal(k, shape, jnp.float32)).astype(dtype)

    # concatenated q-side weight: [wa (real) | zero pad to 384 | wb], single matmul
    wa = nrm(ks[2], (d_model, a))
    wb = nrm(ks[3], (d_model, bo_dim))
    wqc = jnp.concatenate(
        [wa, jnp.zeros((d_model, a_pad - a), jnp.float32), wb], axis=1).astype(wdt)
    bb = 0.1 * jax.random.normal(ks[4], (bo_dim,), jnp.float32)
    bqc = jnp.concatenate([jnp.zeros((a_pad,), jnp.float32), bb]).reshape(1, a_pad + bo_dim)

    # block-diagonal head-pooling matrix (bf16, exact 0/1); pad columns only pool themselves
    cols = jnp.arange(a_pad)
    head_id = jnp.where(cols < a, cols // p, -1 - cols)
    pool = (head_id[:, None] == head_id[None, :]).astype(jnp.bfloat16)

    return dict(
        wqc=wqc, bqc=bqc, pool=pool,
        wv=nrm(ks[0], (d_model, d_model), dtype=wdt),
        bv=jnp.zeros((d_model,), jnp.float32),
        wo=nrm(ks[1], (d_model, d_model), dtype=wdt),
        bo=jnp.zeros((d_model,), jnp.float32),
        w1=nrm(ks[5], (d_model, dim_feedforward), dtype=wdt),
        b1=jnp.zeros((dim_feedforward,), jnp.float32),
        w2=nrm(ks[6], (dim_feedforward, d_model), dtype=wdt),
        b2=jnp.zeros((d_model,), jnp.float32),
        ln1_g=jnp.ones((d_model,), jnp.float32), ln1_b=jnp.zeros((d_model,), jnp.float32),
        ln2_g=jnp.ones((d_model,), jnp.float32), ln2_b=jnp.zeros((d_model,), jnp.float32),
    )


# ----------------------------- main -------------------------------------------------

if __name__ == "__main__":
    # d_model=128, nhead*num_box*4=128, nhead*P=288 (padded to 384), FFN=256.
    B, H, W = 2, 16, 16
    d_model, nhead, dim_feedforward = 128, 8, 256
    num_box, kernel_size = 4, 3
    L = H * W

    key = jax.random.PRNGKey(0)
    k_src, k_pos, k_par = jax.random.split(key, 3)

    src = jax.random.normal(k_src, (B, L, d_model), jnp.float32)
    pos = jax.random.normal(k_pos, (B, L, d_model), jnp.float32)
    src_shape = jnp.array([[H, W]], jnp.int32)                 # (num_level=1, 2)
    src_start_index = jnp.array([0], jnp.int32)
    src_mask = jnp.zeros((B, L), jnp.bool_)                    # no padded tokens
    src_valid_ratios = jnp.ones((B, 1, 2), jnp.float32)

    # reference windows: normalized (cx, cy, w, h) at every grid-cell center
    ys, xs = jnp.meshgrid((jnp.arange(H, dtype=jnp.float32) + 0.5) / H,
                          (jnp.arange(W, dtype=jnp.float32) + 0.5) / W,
                          indexing="ij")
    wh = jnp.full((H, W), 0.08, jnp.float32)
    ref_windows = jnp.broadcast_to(
        jnp.stack([xs, ys, wh, wh], axis=-1).reshape(1, L, 4), (B, L, 4)
    ).astype(jnp.float32)

    params = init_params(k_par, d_model, nhead, dim_feedforward, num_box, kernel_size)

    fwd = functools.partial(simplr_encoder_layer, nhead=nhead, num_box=num_box,
                            kernel_size=kernel_size)
    out = fwd(params, src, pos, src_shape, src_mask, src_start_index,
              src_valid_ratios, ref_windows)
    jax.block_until_ready(out)

    assert out.shape == (B, L, d_model), out.shape
    assert bool(jnp.all(jnp.isfinite(out)))
    print("KERNEL_OK")
</pallas_src>

<mosaic_0001>
module attributes {stable_mosaic.version = 11 : i64} {
  func.func @_box_proj_kernel(%arg0: i32, %arg1: memref<256x128xf32, #tpu.memory_space<vmem>>, %arg2: memref<128x512xbf16, #tpu.memory_space<vmem>>, %arg3: memref<1x512xf32, #tpu.memory_space<vmem>>, %arg4: memref<384x384xbf16, #tpu.memory_space<vmem>>, %arg5: memref<256x384xbf16, #tpu.memory_space<vmem>>, %arg6: memref<256x128xf32, #tpu.memory_space<vmem>>) attributes {dimension_semantics = [#tpu.dimension_semantics<parallel>], iteration_bounds = array<i64: 2>, scalar_prefetch = 0 : i64, scratch_operands = 0 : i64, tpu.core_type = #tpu.core_type<tc>, window_params = [{transform_indices = @transform_0, window_bounds = array<i64: 256, 128>}, {pipeline_mode = #tpu.pipeline_mode<synchronous>, transform_indices = @transform_1, window_bounds = array<i64: 128, 512>}, {pipeline_mode = #tpu.pipeline_mode<synchronous>, transform_indices = @transform_2, window_bounds = array<i64: 1, 512>}, {pipeline_mode = #tpu.pipeline_mode<synchronous>, transform_indices = @transform_3, window_bounds = array<i64: 384, 384>}, {transform_indices = @transform_4, window_bounds = array<i64: 256, 384>}, {transform_indices = @transform_5, window_bounds = array<i64: 256, 128>}]} {
    %c0 = arith.constant 0 : index
    %c0_0 = arith.constant 0 : index
    %0 = vector.load %arg1[%c0, %c0_0] : memref<256x128xf32, #tpu.memory_space<vmem>>, vector<256x128xf32>
    %1 = arith.truncf %0 : vector<256x128xf32> to vector<256x128xbf16>
    %c0_1 = arith.constant 0 : index
    %c0_2 = arith.constant 0 : index
    %2 = vector.load %arg2[%c0_1, %c0_2] : memref<128x512xbf16, #tpu.memory_space<vmem>>, vector<128x512xbf16>
    %cst = arith.constant dense<0.000000e+00> : vector<256x512xf32>
    %3 = tpu.matmul %1, %2, %cst {dimension_numbers = #tpu.dot_dimension_numbers<[1], [0], [0], [1], [0, 0, 1, 1], [], []>} : vector<256x128xbf16>, vector<128x512xbf16>, vector<256x512xf32> -> vector<256x512xf32>
    %c0_3 = arith.constant 0 : index
    %c0_4 = arith.constant 0 : index
    %4 = vector.load %arg3[%c0_3, %c0_4] : memref<1x512xf32, #tpu.memory_space<vmem>>, vector<1x512xf32>
    %5 = vector.broadcast %4 : vector<1x512xf32> to vector<256x512xf32>
    %6 = arith.addf %3, %5 : vector<256x512xf32>
    %7 = vector.extract_strided_slice %6 {offsets = [0, 0], sizes = [256, 384], strides = [1, 1]} : vector<256x512xf32> to vector<256x384xf32>
    %8 = vector.extract_strided_slice %6 {offsets = [0, 384], sizes = [256, 128], strides = [1, 1]} : vector<256x512xf32> to vector<256x128xf32>
    %cst_5 = arith.constant dense<0xFF800000> : vector<256xf32>
    %9 = vector.multi_reduction <maximumf>, %7, %cst_5 [1] : vector<256x384xf32> to vector<256xf32>
    %10 = vector.shape_cast %9 : vector<256xf32> to vector<256x1xf32>
    %11 = vector.broadcast %10 : vector<256x1xf32> to vector<256x384xf32>
    %12 = arith.subf %7, %11 : vector<256x384xf32>
    %13 = math.exp %12 : vector<256x384xf32>
    %14 = arith.truncf %13 : vector<256x384xf32> to vector<256x384xbf16>
    %c0_6 = arith.constant 0 : index
    %c0_7 = arith.constant 0 : index
    %15 = vector.load %arg4[%c0_6, %c0_7] : memref<384x384xbf16, #tpu.memory_space<vmem>>, vector<384x384xbf16>
    %cst_8 = arith.constant dense<0.000000e+00> : vector<256x384xf32>
    %16 = tpu.matmul %14, %15, %cst_8 {dimension_numbers = #tpu.dot_dimension_numbers<[1], [0], [0], [1], [0, 0, 1, 1], [], []>} : vector<256x384xbf16>, vector<384x384xbf16>, vector<256x384xf32> -> vector<256x384xf32>
    %17 = tpu.reciprocal %16 {approx = true} : vector<256x384xf32> -> vector<256x384xf32>
    %18 = arith.mulf %13, %17 : vector<256x384xf32>
    %19 = arith.truncf %18 : vector<256x384xf32> to vector<256x384xbf16>
    %c0_9 = arith.constant 0 : index
    %c0_10 = arith.constant 0 : index
    %20 = vector.load %arg5[%c0_9, %c0_10] : memref<256x384xbf16, #tpu.memory_space<vmem>>, vector<256x384xbf16>
    tpu.vector_store %arg5[%c0_9, %c0_10], %19 {strides = array<i32>} : memref<256x384xbf16, #tpu.memory_space<vmem>>, vector<256x384xbf16>,
    %c0_11 = arith.constant 0 : index
    %c0_12 = arith.constant 0 : index
    %21 = vector.load %arg6[%c0_11, %c0_12] : memref<256x128xf32, #tpu.memory_space<vmem>>, vector<256x128xf32>
    tpu.vector_store %arg6[%c0_11, %c0_12], %8 {strides = array<i32>} : memref<256x128xf32, #tpu.memory_space<vmem>>, vector<256x128xf32>,
    return
  }
  func.func @transform_0(%arg0: i32) -> (i32, i32) {
    %c0_i32 = arith.constant 0 : i32
    %c0_i32_0 = arith.constant 0 : i32
    return %arg0, %c0_i32 : i32, i32
  }
  func.func @transform_1(%arg0: i32) -> (i32, i32) {
    %c0_i32 = arith.constant 0 : i32
    %c0_i32_0 = arith.constant 0 : i32
    %c0_i32_1 = arith.constant 0 : i32
    return %c0_i32, %c0_i32_0 : i32, i32
  }
  func.func @transform_2(%arg0: i32) -> (i32, i32) {
    %c0_i32 = arith.constant 0 : i32
    %c0_i32_0 = arith.constant 0 : i32
    %c0_i32_1 = arith.constant 0 : i32
    return %c0_i32, %c0_i32_0 : i32, i32
  }
  func.func @transform_3(%arg0: i32) -> (i32, i32) {
    %c0_i32 = arith.constant 0 : i32
    %c0_i32_0 = arith.constant 0 : i32
    %c0_i32_1 = arith.constant 0 : i32
    return %c0_i32, %c0_i32_0 : i32, i32
  }
  func.func @transform_4(%arg0: i32) -> (i32, i32) {
    %c0_i32 = arith.constant 0 : i32
    %c0_i32_0 = arith.constant 0 : i32
    return %arg0, %c0_i32 : i32, i32
  }
  func.func @transform_5(%arg0: i32) -> (i32, i32) {
    %c0_i32 = arith.constant 0 : i32
    %c0_i32_0 = arith.constant 0 : i32
    return %arg0, %c0_i32 : i32, i32
  }
}

</mosaic_0001>

<llo_original>
// kernel: tpu_custom_call.1
$region0: #{tpu_custom_call.1}
  #allocation0 [shape = 'u32[]', space=smem, size = 0x4, offset = 0x4, fixed_abs, tag = 'smem constant byte address 0x4 - core index']
  #allocation1 [shape = 'u32[144,128]{1,0:T(1,128)}', space=vmem, size = 0x12000, scoped, tag = 'internal scratch']
  %s0 = inlined_call_operand.hbm [shape: f32[512,128], index: 0, kind: input, shape index: {}]
  %s1 = inlined_call_operand.hbm [shape: bf16[128,512], index: 1, kind: input, shape index: {}]
  %s2 = inlined_call_operand.hbm [shape: f32[1,512], index: 2, kind: input, shape index: {}]
  %s3 = inlined_call_operand.hbm [shape: bf16[384,384], index: 3, kind: input, shape index: {}]
  %s4 = inlined_call_operand.hbm [shape: bf16[512,384], index: 4, kind: output, shape index: {0}]
  %s5 = inlined_call_operand.hbm [shape: f32[512,128], index: 5, kind: output, shape index: {1}]
  %6 = xla_tuple %s4, %s5
  %s7 = sld [smem:[#allocation0]]
  $region73: #{tpu_custom_call.1} parent=0
    _
  %s9 = ssub.s32 1, %s7
  %s10 = scalar_select 0, %s9, %s7
  $region1: #{tpu_custom_call.1} parent=0
    #allocation2 [shape = 'u8[262144]{0}', space=vmem, size = 0x40000, scoped, tag = 'input window, operand 0']
    #allocation3 [shape = 's32[2]{0}', space=sflag, size = 0x8, scoped, tag = 'scoped memory for tpu_custom_call.1']
    #allocation4 [shape = 's32[2]{0}', space=sflag, size = 0x8, scoped, tag = 'scoped memory for tpu_custom_call.1']
    #allocation5 [shape = 'u8[131072]{0}', space=vmem, size = 0x20000, scoped, tag = 'input window, operand 1, single buffered']
    #allocation6 [shape = 's32[1]{0}', space=sflag, size = 0x4, scoped, tag = 'scoped memory for tpu_custom_call.1']
    #allocation7 [shape = 'u8[2048]{0}', space=vmem, size = 0x800, scoped, tag = 'input window, operand 2, single buffered']
    #allocation8 [shape = 'u8[294912]{0}', space=vmem, size = 0x48000, scoped, tag = 'input window, operand 3, single buffered']
    #allocation9 [shape = 's32[1]{0}', space=sflag, size = 0x4, scoped, tag = 'scoped memory for tpu_custom_call.1']
    #allocation10 [shape = 'u8[393216]{0}', space=vmem, size = 0x60000, scoped, tag = 'output window, operand 0']
    #allocation11 [shape = 'u8[262144]{0}', space=vmem, size = 0x40000, scoped, tag = 'output window, operand 1']
    #allocation12 [shape = 's32[2]{0}', space=sflag, size = 0x8, scoped, tag = 'scoped memory for tpu_custom_call.1']
    %11 = vsyncpa [#allocation3], 0
    %s12 = scalar_lea.sflag [#allocation3], 1
    %13 = vsyncpa %s12, 0
    %14 = vsyncpa [#allocation6], 0
    %15 = vsyncpa [#allocation9], 0
    %16 = vsyncpa [#allocation4], 0
    %s17 = scalar_lea.sflag [#allocation4], 1
    %18 = vsyncpa %s17, 0
    %19 = vsyncpa [#allocation12], 0
    %s20 = scalar_lea.sflag [#allocation12], 1
    %21 = vsyncpa %s20, 0
    loop: start=0, step=1, limit=4
    $region2: #{tpu_custom_call.1} parent=1 // loop_pre_header
      _
    $region3: #{tpu_custom_call.1} parent=1 // loop_header
      %s23 = sphi 0, %s27
      %p24 = scmp.ge.s32.totalorder %s23, 4
      %s33 = sphi 0, %s35
      %s36 = sphi 0, %s33
      %s37 = sphi 0, %s36
      %s53 = sphi 0, %s37
      %s57 = sphi 0, %s57
      %s59 = sphi 0, %s57
      %s60 = sphi 0, %s59
      %s74 = sphi 0, %s60
      %s78 = sphi 0, %s78
      %s80 = sphi 0, %s78
      %s81 = sphi 0, %s80
      %s95 = sphi 0, %s81
      %s99 = sphi 0, %s99
      %s101 = sphi 0, %s99
      %s102 = sphi 0, %s101
      %s116 = sphi 0, %s102
      %s122 = sphi 0, %s124
      %s125 = sphi 0, %s122
      %s126 = sphi 0, %s125
      %s142 = sphi 0, %s126
      %s148 = sphi 0, %s150
      %s151 = sphi 0, %s148
      %s152 = sphi 0, %s151
      %s168 = sphi 0, %s152
    $region4: #{tpu_custom_call.1} parent=1 // loop_header_branch
      %26 = sbr.rel (%p24) target = $region8
    $region5: #{tpu_custom_call.1} parent=1 // loop_body
      %s28 = ssub.s32 %s23, 1
      %s29 = ssub.s32 %s23, 2
      %s30 = sadd.s32 %s23, 1
      %s31 = ssub.s32 %s23, %s30
      %p32 = scmp.eq.s32.totalorder %s31, 0
      %s34 = sadd.s32 %s33, 1
      %s35 = scalar_select %p32, %s33, %s34
      %p38 = pneg %p32
      %p39 = scmp.eq.s32.totalorder %s23, 1
      %p40 = por %p38, %p39
      %p41 = scmp.ne.s32.totalorder %s33, %s36
      %p42 = scmp.eq.s32.totalorder %s23, 0
      %p43 = por %p41, %p42
      %p44 = scmp.ne.s32.totalorder %s33, %s36
      %p45 = scmp.eq.s32.totalorder %s28, 1
      %p46 = por %p44, %p45
      %p47 = scmp.ne.s32.totalorder %s36, %s37
      %p48 = scmp.eq.s32.totalorder %s28, 0
      %p49 = por %p47, %p48
      %p50 = scmp.ne.s32.totalorder %s36, %s37
      %p51 = scmp.eq.s32.totalorder %s29, 1
      %p52 = por %p50, %p51
      %p54 = scmp.ne.s32.totalorder %s37, %s53
      %p55 = scmp.eq.s32.totalorder %s29, 0
      %p56 = por %p54, %p55
      %s58 = sadd.s32 %s57, 1
      %p61 = scmp.eq.s32.totalorder %s23, 1
      %p62 = scmp.ne.s32.totalorder %s57, %s59
      %p63 = scmp.eq.s32.totalorder %s23, 0
      %p64 = por %p62, %p63
      %p65 = scmp.ne.s32.totalorder %s57, %s59
      %p66 = scmp.eq.s32.totalorder %s28, 1
      %p67 = por %p65, %p66
      %p68 = scmp.ne.s32.totalorder %s59, %s60
      %p69 = scmp.eq.s32.totalorder %s28, 0
      %p70 = por %p68, %p69
      %p71 = scmp.ne.s32.totalorder %s59, %s60
      %p72 = scmp.eq.s32.totalorder %s29, 1
      %p73 = por %p71, %p72
      %p75 = scmp.ne.s32.totalorder %s60, %s74
      %p76 = scmp.eq.s32.totalorder %s29, 0
      %p77 = por %p75, %p76
      %s79 = sadd.s32 %s78, 1
      %p82 = scmp.eq.s32.totalorder %s23, 1
      %p83 = scmp.ne.s32.totalorder %s78, %s80
      %p84 = scmp.eq.s32.totalorder %s23, 0
      %p85 = por %p83, %p84
      %p86 = scmp.ne.s32.totalorder %s78, %s80
      %p87 = scmp.eq.s32.totalorder %s28, 1
      %p88 = por %p86, %p87
      %p89 = scmp.ne.s32.totalorder %s80, %s81
      %p90 = scmp.eq.s32.totalorder %s28, 0
      %p91 = por %p89, %p90
      %p92 = scmp.ne.s32.totalorder %s80, %s81
      %p93 = scmp.eq.s32.totalorder %s29, 1
      %p94 = por %p92, %p93
      %p96 = scmp.ne.s32.totalorder %s81, %s95
      %p97 = scmp.eq.s32.totalorder %s29, 0
      %p98 = por %p96, %p97
      %s100 = sadd.s32 %s99, 1
      %p103 = scmp.eq.s32.totalorder %s23, 1
      %p104 = scmp.ne.s32.totalorder %s99, %s101
      %p105 = scmp.eq.s32.totalorder %s23, 0
      %p106 = por %p104, %p105
      %p107 = scmp.ne.s32.totalorder %s99, %s101
      %p108 = scmp.eq.s32.totalorder %s28, 1
      %p109 = por %p107, %p108
      %p110 = scmp.ne.s32.totalorder %s101, %s102
      %p111 = scmp.eq.s32.totalorder %s28, 0
      %p112 = por %p110, %p111
      %p113 = scmp.ne.s32.totalorder %s101, %s102
      %p114 = scmp.eq.s32.totalorder %s29, 1
      %p115 = por %p113, %p114
      %p117 = scmp.ne.s32.totalorder %s102, %s116
      %p118 = scmp.eq.s32.totalorder %s29, 0
      %p119 = por %p117, %p118
      %s120 = ssub.s32 %s23, %s30
      %p121 = scmp.eq.s32.totalorder %s120, 0
      %s123 = sadd.s32 %s122, 1
      %s124 = scalar_select %p121, %s122, %s123
      %p127 = pneg %p121
      %p128 = scmp.eq.s32.totalorder %s23, 1
      %p129 = por %p127, %p128
      %p130 = scmp.ne.s32.totalorder %s122, %s125
      %p131 = scmp.eq.s32.totalorder %s23, 0
      %p132 = por %p130, %p131
      %p133 = scmp.ne.s32.totalorder %s122, %s125
      %p134 = scmp.eq.s32.totalorder %s28, 1
      %p135 = por %p133, %p134
      %p136 = scmp.ne.s32.totalorder %s125, %s126
      %p137 = scmp.eq.s32.totalorder %s28, 0
      %p138 = por %p136, %p137
      %p139 = scmp.ne.s32.totalorder %s125, %s126
      %p140 = scmp.eq.s32.totalorder %s29, 1
      %p141 = por %p139, %p140
      %p143 = scmp.ne.s32.totalorder %s126, %s142
      %p144 = scmp.eq.s32.totalorder %s29, 0
      %p145 = por %p143, %p144
      %s146 = ssub.s32 %s23, %s30
      %p147 = scmp.eq.s32.totalorder %s146, 0
      %s149 = sadd.s32 %s148, 1
      %s150 = scalar_select %p147, %s148, %s149
      %p153 = pneg %p147
      %p154 = scmp.eq.s32.totalorder %s23, 1
      %p155 = por %p153, %p154
      %p156 = scmp.ne.s32.totalorder %s148, %s151
      %p157 = scmp.eq.s32.totalorder %s23, 0
      %p158 = por %p156, %p157
      %p159 = scmp.ne.s32.totalorder %s148, %s151
      %p160 = scmp.eq.s32.totalorder %s28, 1
      %p161 = por %p159, %p160
      %p162 = scmp.ne.s32.totalorder %s151, %s152
      %p163 = scmp.eq.s32.totalorder %s28, 0
      %p164 = por %p162, %p163
      %p165 = scmp.ne.s32.totalorder %s151, %s152
      %p166 = scmp.eq.s32.totalorder %s29, 1
      %p167 = por %p165, %p166
      %p169 = scmp.ne.s32.totalorder %s152, %s168
      %p170 = scmp.eq.s32.totalorder %s29, 0
      %p171 = por %p169, %p170
      %p172 = scmp.le.s32.totalorder 1, %s23
      %p173 = scmp.lt.s32.totalorder %s23, 3
      %p174 = pnand %p172, %p173
      %p175 = pneg %p174
      // Predicated region
      $region9: #{tpu_custom_call.1} parent=5 // pred_check
        _
      $region10: #{tpu_custom_call.1} parent=5 // pred_check_branch
        %177 = sbr.rel (%p174) target = $region12
      $region11: #{tpu_custom_call.1} parent=5 // pred_region
        %s178 = ssub.s32 %s23, 1
        // Predicated region
        $region13: #{tpu_custom_call.1} parent=11 // pred_check
          %p179 = pneg %p70
        $region14: #{tpu_custom_call.1} parent=11 // pred_check_branch
          %181 = sbr.rel (%p179) target = $region16
        $region15: #{tpu_custom_call.1} parent=11 // pred_region
          %s183 = ssub.s32 4096, 4096
          %184 = vsyncadd [#allocation6], %s183
          %s185 = sshll.u32 [#allocation5], 4
          %s186 = int_to_ptr.vmem [resolvable:$true] %s185
          %191 = dma.hbm_to_vmem [thread:$0]  %s1, 4096, %s186, [#allocation6], 256, 256, 16
        $region16: #{tpu_custom_call.1} parent=11 // pred_fallthru
          _
        // Predicated region
        $region17: #{tpu_custom_call.1} parent=11 // pred_check
          %p192 = pneg %p91
        $region18: #{tpu_custom_call.1} parent=11 // pred_check_branch
          %194 = sbr.rel (%p192) target = $region20
        $region19: #{tpu_custom_call.1} parent=11 // pred_region
          %s196 = ssub.s32 64, 64
          %197 = vsyncadd [#allocation6], %s196
          %s199 = sshll.u32 [#allocation7], 4
          %s200 = int_to_ptr.vmem [resolvable:$true] %s199
          %202 = dma.hbm_to_vmem [thread:$0]  %s2, 64, %s200, [#allocation6]
        $region20: #{tpu_custom_call.1} parent=11 // pred_fallthru
          _
        // Predicated region
        $region21: #{tpu_custom_call.1} parent=11 // pred_check
          %p203 = pneg %p112
        $region22: #{tpu_custom_call.1} parent=11 // pred_check_branch
          %205 = sbr.rel (%p203) target = $region24
        $region23: #{tpu_custom_call.1} parent=11 // pred_region
          %s207 = ssub.s32 9216, 9216
          %208 = vsyncadd [#allocation9], %s207
          %s209 = sshll.u32 [#allocation8], 4
          %s210 = int_to_ptr.vmem [resolvable:$true] %s209
          %215 = dma.hbm_to_vmem [thread:$0]  %s3, 9216, %s210, [#allocation9], 192, 192, 12
        $region24: #{tpu_custom_call.1} parent=11 // pred_fallthru
          _
      $region12: #{tpu_custom_call.1} parent=5 // pred_fallthru
        _
      %p216 = scmp.lt.s32.totalorder %s23, 2
      // Predicated region
      $region25: #{tpu_custom_call.1} parent=5 // pred_check
        %p217 = pneg %p216
      $region26: #{tpu_custom_call.1} parent=5 // pred_check_branch
        %219 = sbr.rel (%p217) target = $region28
      $region27: #{tpu_custom_call.1} parent=5 // pred_region
        // Predicated region
        $region29: #{tpu_custom_call.1} parent=27 // pred_check
          %p220 = pneg %p43
        $region30: #{tpu_custom_call.1} parent=27 // pred_check_branch
          %222 = sbr.rel (%p220) target = $region32
        $region31: #{tpu_custom_call.1} parent=27 // pred_region
          %s223 = sand.u32 %s33, 1
          %s224 = scalar_lea.sflag [#allocation3], %s223
          %s225 = sand.u32 %s33, 1
          %s226 = smul.addr %s225, 256
          %s227 = scalar_lea.vmem [#allocation2], %s226
          %s228 = smul.u32 32, %s23
          %s230 = ssub.s32 4096, 4096
          %231 = vsyncadd %s224, %s230
          %s232 = smul.addr %s228, 128
          %s233 = scalar_lea.hbm %s0, %s232
          %s234 = sshll.u32 %s227, 4
          %s235 = int_to_ptr.vmem [resolvable:$true] %s234
          %240 = dma.hbm_to_vmem [thread:$0]  %s233, 4096, %s235, %s224, 128, 128, 8
        $region32: #{tpu_custom_call.1} parent=27 // pred_fallthru
          _
      $region28: #{tpu_custom_call.1} parent=5 // pred_fallthru
        _
      %p241 = scmp.le.s32.totalorder 1, %s23
      %p242 = scmp.lt.s32.totalorder %s23, 3
      %p243 = pnand %p241, %p242
      %p244 = pneg %p243
      // Predicated region
      $region33: #{tpu_custom_call.1} parent=5 // pred_check
        _
      $region34: #{tpu_custom_call.1} parent=5 // pred_check_branch
        %246 = sbr.rel (%p243) target = $region36
      $region35: #{tpu_custom_call.1} parent=5 // pred_region
        %s247 = ssub.s32 %s23, 1
        %s248 = sand.u32 %s36, 1
        %s249 = scalar_lea.sflag [#allocation3], %s248
        %s250 = sand.u32 %s36, 1
        %s251 = smul.addr %s250, 256
        %s252 = scalar_lea.vmem [#allocation2], %s251
        // Predicated region
        $region37: #{tpu_custom_call.1} parent=35 // pred_check
          %p253 = pneg %p49
        $region38: #{tpu_custom_call.1} parent=35 // pred_check_branch
          %255 = sbr.rel (%p253) target = $region40
        $region39: #{tpu_custom_call.1} parent=35 // pred_region
          %256 = dma.done %s249, 4096
        $region40: #{tpu_custom_call.1} parent=35 // pred_fallthru
          _
        // Predicated region
        $region41: #{tpu_custom_call.1} parent=35 // pred_check
          %p257 = pneg %p70
        $region42: #{tpu_custom_call.1} parent=35 // pred_check_branch
          %259 = sbr.rel (%p257) target = $region44
        $region43: #{tpu_custom_call.1} parent=35 // pred_region
          %260 = dma.done [#allocation6], 4096
        $region44: #{tpu_custom_call.1} parent=35 // pred_fallthru
          _
        // Predicated region
        $region45: #{tpu_custom_call.1} parent=35 // pred_check
          %p261 = pneg %p91
        $region46: #{tpu_custom_call.1} parent=35 // pred_check_branch
          %263 = sbr.rel (%p261) target = $region48
        $region47: #{tpu_custom_call.1} parent=35 // pred_region
          %264 = dma.done [#allocation6], 64
        $region48: #{tpu_custom_call.1} parent=35 // pred_fallthru
          _
        // Predicated region
        $region49: #{tpu_custom_call.1} parent=35 // pred_check
          %p265 = pneg %p112
        $region50: #{tpu_custom_call.1} parent=35 // pred_check_branch
          %267 = sbr.rel (%p265) target = $region52
        $region51: #{tpu_custom_call.1} parent=35 // pred_region
          %268 = dma.done [#allocation9], 9216
        $region52: #{tpu_custom_call.1} parent=35 // pred_fallthru
          _
        %s269 = sand.u32 %s36, 1
        %s270 = scalar_lea.sflag [#allocation3], %s269
        %s271 = sand.u32 %s36, 1
        %s272 = smul.addr %s271, 256
        %s273 = scalar_lea.vmem [#allocation2], %s272
        %p274 = pneg %p49
        %p275 = pneg %p46
        %p276 = pneg %p70
        %p277 = pneg %p67
        %p278 = pneg %p91
        %p279 = pneg %p88
        %p280 = pneg %p112
        %p281 = pneg %p109
        %p282 = pneg %p138
        %p283 = pneg %p135
        %s284 = sand.u32 %s125, 1
        %s285 = scalar_lea.sflag [#allocation4], %s284
        %s286 = sand.u32 %s125, 1
        %s287 = smul.addr %s286, 384
        %s288 = scalar_lea.vmem [#allocation10], %s287
        %p289 = pneg %p164
        %p290 = pneg %p161
        %s291 = sand.u32 %s151, 1
        %s292 = scalar_lea.sflag [#allocation12], %s291
        %s293 = sand.u32 %s151, 1
        %s294 = smul.addr %s293, 256
        %s295 = scalar_lea.vmem [#allocation11], %s294
        %s296 = smul.u32 32, %s28
        %s297 = smul.u32 32, %s28
        %s298 = smul.u32 32, %s28
        %v300 = vld [vmem:[%s252] sm:$0xff]
        %v301 = vld [vmem:[%s252 + $0x8] sm:$0xff]
        %v302 = vld [vmem:[%s252 + $0x10] sm:$0xff]
        %v303 = vld [vmem:[%s252 + $0x18] sm:$0xff]
        %v304 = vld [vmem:[%s252 + $0x20] sm:$0xff]
        %v305 = vld [vmem:[%s252 + $0x28] sm:$0xff]
        %v306 = vld [vmem:[%s252 + $0x30] sm:$0xff]
        %v307 = vld [vmem:[%s252 + $0x38] sm:$0xff]
        %v308 = vld [vmem:[%s252 + $0x40] sm:$0xff]
        %v309 = vld [vmem:[%s252 + $0x48] sm:$0xff]
        %v310 = vld [vmem:[%s252 + $0x50] sm:$0xff]
        %v311 = vld [vmem:[%s252 + $0x58] sm:$0xff]
        %v312 = vld [vmem:[%s252 + $0x60] sm:$0xff]
        %v313 = vld [vmem:[%s252 + $0x68] sm:$0xff]
        %v314 = vld [vmem:[%s252 + $0x70] sm:$0xff]
        %v315 = vld [vmem:[%s252 + $0x78] sm:$0xff]
        %v316 = vld [vmem:[%s252 + $0x80] sm:$0xff]
        %v317 = vld [vmem:[%s252 + $0x88] sm:$0xff]
        %v318 = vld [vmem:[%s252 + $0x90] sm:$0xff]
        %v319 = vld [vmem:[%s252 + $0x98] sm:$0xff]
        %v320 = vld [vmem:[%s252 + $0xa0] sm:$0xff]
        %v321 = vld [vmem:[%s252 + $0xa8] sm:$0xff]
        %v322 = vld [vmem:[%s252 + $0xb0] sm:$0xff]
        %v323 = vld [vmem:[%s252 + $0xb8] sm:$0xff]
        %v324 = vld [vmem:[%s252 + $0xc0] sm:$0xff]
        %v325 = vld [vmem:[%s252 + $0xc8] sm:$0xff]
        %v326 = vld [vmem:[%s252 + $0xd0] sm:$0xff]
        %v327 = vld [vmem:[%s252 + $0xd8] sm:$0xff]
        %v328 = vld [vmem:[%s252 + $0xe0] sm:$0xff]
        %v329 = vld [vmem:[%s252 + $0xe8] sm:$0xff]
        %v330 = vld [vmem:[%s252 + $0xf0] sm:$0xff]
        %v331 = vld [vmem:[%s252 + $0xf8] sm:$0xff]
        %v332 = vpack.c.bf16 %v301, %v300
        %v333 = vpack.c.bf16 %v303, %v302
        %v334 = vpack.c.bf16 %v305, %v304
        %v335 = vpack.c.bf16 %v307, %v306
        %v336 = vpack.c.bf16 %v309, %v308
        %v337 = vpack.c.bf16 %v311, %v310
        %v338 = vpack.c.bf16 %v313, %v312
        %v339 = vpack.c.bf16 %v315, %v314
        %v340 = vpack.c.bf16 %v317, %v316
        %v341 = vpack.c.bf16 %v319, %v318
        %v342 = vpack.c.bf16 %v321, %v320
        %v343 = vpack.c.bf16 %v323, %v322
        %v344 = vpack.c.bf16 %v325, %v324
        %v345 = vpack.c.bf16 %v327, %v326
        %v346 = vpack.c.bf16 %v329, %v328
        %v347 = vpack.c.bf16 %v331, %v330
        %v348 = vld [vmem:[#allocation5] sm:$0xff]
        %v349 = vld [vmem:[#allocation5 + $0x8] sm:$0xff]
        %v350 = vld [vmem:[#allocation5 + $0x10] sm:$0xff]
        %v351 = vld [vmem:[#allocation5 + $0x18] sm:$0xff]
        %v352 = vld [vmem:[#allocation5 + $0x20] sm:$0xff]
        %v353 = vld [vmem:[#allocation5 + $0x28] sm:$0xff]
        %v354 = vld [vmem:[#allocation5 + $0x30] sm:$0xff]
        %v355 = vld [vmem:[#allocation5 + $0x38] sm:$0xff]
        %v356 = vld [vmem:[#allocation5 + $0x40] sm:$0xff]
        %v357 = vld [vmem:[#allocation5 + $0x48] sm:$0xff]
        %v358 = vld [vmem:[#allocation5 + $0x50] sm:$0xff]
        %v359 = vld [vmem:[#allocation5 + $0x58] sm:$0xff]
        %v360 = vld [vmem:[#allocation5 + $0x60] sm:$0xff]
        %v361 = vld [vmem:[#allocation5 + $0x68] sm:$0xff]
        %v362 = vld [vmem:[#allocation5 + $0x70] sm:$0xff]
        %v363 = vld [vmem:[#allocation5 + $0x78] sm:$0xff]
        %v364 = vld [vmem:[#allocation5 + $0x80] sm:$0xff]
        %v365 = vld [vmem:[#allocation5 + $0x88] sm:$0xff]
        %v366 = vld [vmem:[#allocation5 + $0x90] sm:$0xff]
        %v367 = vld [vmem:[#allocation5 + $0x98] sm:$0xff]
        %v368 = vld [vmem:[#allocation5 + $0xa0] sm:$0xff]
        %v369 = vld [vmem:[#allocation5 + $0xa8] sm:$0xff]
        %v370 = vld [vmem:[#allocation5 + $0xb0] sm:$0xff]
        %v371 = vld [vmem:[#allocation5 + $0xb8] sm:$0xff]
        %v372 = vld [vmem:[#allocation5 + $0xc0] sm:$0xff]
        %v373 = vld [vmem:[#allocation5 + $0xc8] sm:$0xff]
        %v374 = vld [vmem:[#allocation5 + $0xd0] sm:$0xff]
        %v375 = vld [vmem:[#allocation5 + $0xd8] sm:$0xff]
        %v376 = vld [vmem:[#allocation5 + $0xe0] sm:$0xff]
        %v377 = vld [vmem:[#allocation5 + $0xe8] sm:$0xff]
        %v378 = vld [vmem:[#allocation5 + $0xf0] sm:$0xff]
        %v379 = vld [vmem:[#allocation5 + $0xf8] sm:$0xff]
        %v380 = vld [vmem:[#allocation7] sm:$0xf]
        %v382 = vlaneseq
        %v383 = vshrl.u32 %v382, 7
        %v384 = vsub.s32 0, %v383
        %v385 = vrot.slane %v380, %v384
        %v386 = vlaneseq
        %v387 = vshrl.u32 %v386, 7
        %v388 = vsub.s32 1, %v387
        %v389 = vrot.slane %v380, %v388
        %v390 = vlaneseq
        %v391 = vshrl.u32 %v390, 7
        %v392 = vsub.s32 2, %v391
        %v393 = vrot.slane %v380, %v392
        %v394 = vlaneseq
        %v395 = vshrl.u32 %v394, 7
        %v396 = vsub.s32 3, %v395
        %v397 = vrot.slane %v380, %v396
        %v434 = vunpack.c.l.b16 %v348
        %v435 = vunpack.c.h.b16 %v348
        %v436 = vunpack.c.l.b16 %v349
        %v437 = vunpack.c.h.b16 %v349
        %v438 = vunpack.c.l.b16 %v350
        %v439 = vunpack.c.h.b16 %v350
        %v440 = vunpack.c.l.b16 %v351
        %v441 = vunpack.c.h.b16 %v351
        %v442 = vunpack.c.l.b16 %v352
        %v443 = vunpack.c.h.b16 %v352
        %v444 = vunpack.c.l.b16 %v353
        %v445 = vunpack.c.h.b16 %v353
        %v446 = vunpack.c.l.b16 %v354
        %v447 = vunpack.c.h.b16 %v354
        %v448 = vunpack.c.l.b16 %v355
        %v449 = vunpack.c.h.b16 %v355
        %v450 = vunpack.c.l.b16 %v356
        %v451 = vunpack.c.h.b16 %v356
        %v452 = vunpack.c.l.b16 %v357
        %v453 = vunpack.c.h.b16 %v357
        %v454 = vunpack.c.l.b16 %v358
        %v455 = vunpack.c.h.b16 %v358
        %v456 = vunpack.c.l.b16 %v359
        %v457 = vunpack.c.h.b16 %v359
        %v458 = vunpack.c.l.b16 %v360
        %v459 = vunpack.c.h.b16 %v360
        %v460 = vunpack.c.l.b16 %v361
        %v461 = vunpack.c.h.b16 %v361
        %v462 = vunpack.c.l.b16 %v362
        %v463 = vunpack.c.h.b16 %v362
        %v464 = vunpack.c.l.b16 %v363
        %v465 = vunpack.c.h.b16 %v363
        %v466 = vunpack.c.l.b16 %v364
        %v467 = vunpack.c.h.b16 %v364
        %v468 = vunpack.c.l.b16 %v365
        %v469 = vunpack.c.h.b16 %v365
        %v470 = vunpack.c.l.b16 %v366
        %v471 = vunpack.c.h.b16 %v366
        %v472 = vunpack.c.l.b16 %v367
        %v473 = vunpack.c.h.b16 %v367
        %v474 = vunpack.c.l.b16 %v368
        %v475 = vunpack.c.h.b16 %v368
        %v476 = vunpack.c.l.b16 %v369
        %v477 = vunpack.c.h.b16 %v369
        %v478 = vunpack.c.l.b16 %v370
        %v479 = vunpack.c.h.b16 %v370
        %v480 = vunpack.c.l.b16 %v371
        %v481 = vunpack.c.h.b16 %v371
        %v482 = vunpack.c.l.b16 %v372
        %v483 = vunpack.c.h.b16 %v372
        %v484 = vunpack.c.l.b16 %v373
        %v485 = vunpack.c.h.b16 %v373
        %v486 = vunpack.c.l.b16 %v374
        %v487 = vunpack.c.h.b16 %v374
        %v488 = vunpack.c.l.b16 %v375
        %v489 = vunpack.c.h.b16 %v375
        %v490 = vunpack.c.l.b16 %v376
        %v491 = vunpack.c.h.b16 %v376
        %v492 = vunpack.c.l.b16 %v377
        %v493 = vunpack.c.h.b16 %v377
        %v494 = vunpack.c.l.b16 %v378
        %v495 = vunpack.c.h.b16 %v378
        %v496 = vunpack.c.l.b16 %v379
        %v497 = vunpack.c.h.b16 %v379
        %v498 = vpack.c.b16 %v438, %v434
        %v499 = vpack.c.b16 %v439, %v435
        %v500 = vpack.c.b16 %v440, %v436
        %v501 = vpack.c.b16 %v441, %v437
        %v502 = vpack.c.b16 %v446, %v442
        %v503 = vpack.c.b16 %v447, %v443
        %v504 = vpack.c.b16 %v448, %v444
        %v505 = vpack.c.b16 %v449, %v445
        %v506 = vpack.c.b16 %v454, %v450
        %v507 = vpack.c.b16 %v455, %v451
        %v508 = vpack.c.b16 %v456, %v452
        %v509 = vpack.c.b16 %v457, %v453
        %v510 = vpack.c.b16 %v462, %v458
        %v511 = vpack.c.b16 %v463, %v459
        %v512 = vpack.c.b16 %v464, %v460
        %v513 = vpack.c.b16 %v465, %v461
        %v514 = vpack.c.b16 %v470, %v466
        %v515 = vpack.c.b16 %v471, %v467
        %v516 = vpack.c.b16 %v472, %v468
        %v517 = vpack.c.b16 %v473, %v469
        %v518 = vpack.c.b16 %v478, %v474
        %v519 = vpack.c.b16 %v479, %v475
        %v520 = vpack.c.b16 %v480, %v476
        %v521 = vpack.c.b16 %v481, %v477
        %v522 = vpack.c.b16 %v486, %v482
        %v523 = vpack.c.b16 %v487, %v483
        %v524 = vpack.c.b16 %v488, %v484
        %v525 = vpack.c.b16 %v489, %v485
        %v526 = vpack.c.b16 %v494, %v490
        %v527 = vpack.c.b16 %v495, %v491
        %v528 = vpack.c.b16 %v496, %v492
        %v529 = vpack.c.b16 %v497, %v493
        %562 = vmatprep.subr.bf16.mxu0 %v527
        %563 = vmatpush1.bf16.msra.mxu0 %v526
        %564 = vmatprep.subr.bf16.mxu0 %v523
        %565 = vmatpush1.bf16.msra.mxu0 %v522
        %566 = vmatprep.subr.bf16.mxu0 %v519
        %567 = vmatpush1.bf16.msra.mxu0 %v518
        %568 = vmatprep.subr.bf16.mxu0 %v515
        %569 = vmatpush1.bf16.msra.mxu0 %v514
        %570 = vmatprep.subr.bf16.mxu0 %v511
        %571 = vmatpush1.bf16.msra.mxu0 %v510
        %572 = vmatprep.subr.bf16.mxu0 %v507
        %573 = vmatpush1.bf16.msra.mxu0 %v506
        %574 = vmatprep.subr.bf16.mxu0 %v503
        %575 = vmatpush1.bf16.msra.mxu0 %v502
        %576 = vmatprep.subr.bf16.mxu0 %v499
        %577 = vmatpush1.bf16.msra.mxu0 %v498
        %578 = vmatprep.subr.bf16.mxu0 0
        %579 = vmatpush2.bf16.msra.mxu0 0
        %580 = vmatprep.subr.bf16.mxu0 0
        %581 = vmatpush2.bf16.msra.mxu0 0
        %582 = vmatprep.subr.bf16.mxu0 0
        %583 = vmatpush2.bf16.msra.mxu0 0
        %584 = vmatprep.subr.bf16.mxu0 0
        %585 = vmatpush2.bf16.msra.mxu0 0
        %586 = vmatprep.subr.bf16.mxu0 0
        %587 = vmatpush2.bf16.msra.mxu0 0
        %588 = vmatprep.subr.bf16.mxu0 0
        %589 = vmatpush2.bf16.msra.mxu0 0
        %590 = vmatprep.subr.bf16.mxu0 0
        %591 = vmatpush2.bf16.msra.mxu0 0
        %592 = vmatprep.subr.bf16.mxu0 0
        %593 = vmatpush2.bf16.msra.mxu0 0
        %594 = vmatprep.mubr.bf16.mxu0 0
        %595 = vmatmul.mubr.bf16.gmra.mxu0 %v332
        %v596 = vpop.f32.mrf.mxu0
        %v597 = vadd.f32 %v385, %v596
        %v598 = vpop.f32.mrf.mxu0
        %v599 = vadd.f32 %v389, %v598
        %v600 = vpop.f32.mrf.mxu0
        %v601 = vadd.f32 %v385, %v600
        %v602 = vpop.f32.mrf.mxu0
        %v603 = vadd.f32 %v389, %v602
        %604 = vmatprep.mubr.bf16.mxu0 0
        %605 = vmatmul.mubr.bf16.gmra.mxu0 %v333
        %v606 = vpop.f32.mrf.mxu0
        %v607 = vadd.f32 %v385, %v606
        %v608 = vpop.f32.mrf.mxu0
        %v609 = vadd.f32 %v389, %v608
        %v610 = vpop.f32.mrf.mxu0
        %v611 = vadd.f32 %v385, %v610
        %v612 = vpop.f32.mrf.mxu0
        %v613 = vadd.f32 %v389, %v612
        %614 = vmatprep.mubr.bf16.mxu0 0
        %615 = vmatmul.mubr.bf16.gmra.mxu0 %v334
        %v616 = vpop.f32.mrf.mxu0
        %v617 = vadd.f32 %v385, %v616
        %v618 = vpop.f32.mrf.mxu0
        %v619 = vadd.f32 %v389, %v618
        %v620 = vpop.f32.mrf.mxu0
        %v621 = vadd.f32 %v385, %v620
        %v622 = vpop.f32.mrf.mxu0
        %v623 = vadd.f32 %v389, %v622
        %624 = vmatprep.mubr.bf16.mxu0 0
        %625 = vmatmul.mubr.bf16.gmra.mxu0 %v335
        %v626 = vpop.f32.mrf.mxu0
        %v627 = vadd.f32 %v385, %v626
        %v628 = vpop.f32.mrf.mxu0
        %v629 = vadd.f32 %v389, %v628
        %v630 = vpop.f32.mrf.mxu0
        %v631 = vadd.f32 %v385, %v630
        %v632 = vpop.f32.mrf.mxu0
        %v633 = vadd.f32 %v389, %v632
        %634 = vmatprep.mubr.bf16.mxu0 0
        %635 = vmatmul.mubr.bf16.gmra.mxu0 %v336
        %v636 = vpop.f32.mrf.mxu0
        %v637 = vadd.f32 %v385, %v636
        %v638 = vpop.f32.mrf.mxu0
        %v639 = vadd.f32 %v389, %v638
        %v640 = vpop.f32.mrf.mxu0
        %v641 = vadd.f32 %v385, %v640
        %v642 = vpop.f32.mrf.mxu0
        %v643 = vadd.f32 %v389, %v642
        %644 = vmatprep.mubr.bf16.mxu0 0
        %645 = vmatmul.mubr.bf16.gmra.mxu0 %v337
        %v646 = vpop.f32.mrf.mxu0
        %v647 = vadd.f32 %v385, %v646
        %v648 = vpop.f32.mrf.mxu0
        %v649 = vadd.f32 %v389, %v648
        %v650 = vpop.f32.mrf.mxu0
        %v651 = vadd.f32 %v385, %v650
        %v652 = vpop.f32.mrf.mxu0
        %v653 = vadd.f32 %v389, %v652
        %654 = vmatprep.mubr.bf16.mxu0 0
        %655 = vmatmul.mubr.bf16.gmra.mxu0 %v338
        %v656 = vpop.f32.mrf.mxu0
        %v657 = vadd.f32 %v385, %v656
        %v658 = vpop.f32.mrf.mxu0
        %v659 = vadd.f32 %v389, %v658
        %v660 = vpop.f32.mrf.mxu0
        %v661 = vadd.f32 %v385, %v660
        %v662 = vpop.f32.mrf.mxu0
        %v663 = vadd.f32 %v389, %v662
        %664 = vmatprep.mubr.bf16.mxu0 0
        %665 = vmatmul.mubr.bf16.gmra.mxu0 %v339
        %v666 = vpop.f32.mrf.mxu0
        %v667 = vadd.f32 %v385, %v666
        %v668 = vpop.f32.mrf.mxu0
        %v669 = vadd.f32 %v389, %v668
        %v670 = vpop.f32.mrf.mxu0
        %v671 = vadd.f32 %v385, %v670
        %v672 = vpop.f32.mrf.mxu0
        %v673 = vadd.f32 %v389, %v672
        %674 = vmatprep.mubr.bf16.mxu0 0
        %675 = vmatmul.mubr.bf16.gmra.mxu0 %v340
        %v676 = vpop.f32.mrf.mxu0
        %v677 = vadd.f32 %v385, %v676
        %v678 = vpop.f32.mrf.mxu0
        %v679 = vadd.f32 %v389, %v678
        %v680 = vpop.f32.mrf.mxu0
        %v681 = vadd.f32 %v385, %v680
        %v682 = vpop.f32.mrf.mxu0
        %v683 = vadd.f32 %v389, %v682
        %684 = vmatprep.mubr.bf16.mxu0 0
        %685 = vmatmul.mubr.bf16.gmra.mxu0 %v341
        %v686 = vpop.f32.mrf.mxu0
        %v687 = vadd.f32 %v385, %v686
        %v688 = vpop.f32.mrf.mxu0
        %v689 = vadd.f32 %v389, %v688
        %v690 = vpop.f32.mrf.mxu0
        %v691 = vadd.f32 %v385, %v690
        %v692 = vpop.f32.mrf.mxu0
        %v693 = vadd.f32 %v389, %v692
        %694 = vmatprep.mubr.bf16.mxu0 0
        %695 = vmatmul.mubr.bf16.gmra.mxu0 %v342
        %v696 = vpop.f32.mrf.mxu0
        %v697 = vadd.f32 %v385, %v696
        %v698 = vpop.f32.mrf.mxu0
        %v699 = vadd.f32 %v389, %v698
        %v700 = vpop.f32.mrf.mxu0
        %v701 = vadd.f32 %v385, %v700
        %v702 = vpop.f32.mrf.mxu0
        %v703 = vadd.f32 %v389, %v702
        %704 = vmatprep.mubr.bf16.mxu0 0
        %705 = vmatmul.mubr.bf16.gmra.mxu0 %v343
        %v706 = vpop.f32.mrf.mxu0
        %v707 = vadd.f32 %v385, %v706
        %v708 = vpop.f32.mrf.mxu0
        %v709 = vadd.f32 %v389, %v708
        %v710 = vpop.f32.mrf.mxu0
        %v711 = vadd.f32 %v385, %v710
        %v712 = vpop.f32.mrf.mxu0
        %v713 = vadd.f32 %v389, %v712
        %714 = vmatprep.mubr.bf16.mxu0 0
        %715 = vmatmul.mubr.bf16.gmra.mxu0 %v344
        %v716 = vpop.f32.mrf.mxu0
        %v717 = vadd.f32 %v385, %v716
        %v718 = vpop.f32.mrf.mxu0
        %v719 = vadd.f32 %v389, %v718
        %v720 = vpop.f32.mrf.mxu0
        %v721 = vadd.f32 %v385, %v720
        %v722 = vpop.f32.mrf.mxu0
        %v723 = vadd.f32 %v389, %v722
        %724 = vmatprep.mubr.bf16.mxu0 0
        %725 = vmatmul.mubr.bf16.gmra.mxu0 %v345
        %v726 = vpop.f32.mrf.mxu0
        %v727 = vadd.f32 %v385, %v726
        %v728 = vpop.f32.mrf.mxu0
        %v729 = vadd.f32 %v389, %v728
        %v730 = vpop.f32.mrf.mxu0
        %v731 = vadd.f32 %v385, %v730
        %v732 = vpop.f32.mrf.mxu0
        %v733 = vadd.f32 %v389, %v732
        %734 = vmatprep.mubr.bf16.mxu0 0
        %735 = vmatmul.mubr.bf16.gmra.mxu0 %v346
        %v736 = vpop.f32.mrf.mxu0
        %v737 = vadd.f32 %v385, %v736
        %v738 = vpop.f32.mrf.mxu0
        %v739 = vadd.f32 %v389, %v738
        %v740 = vpop.f32.mrf.mxu0
        %v741 = vadd.f32 %v385, %v740
        %v742 = vpop.f32.mrf.mxu0
        %v743 = vadd.f32 %v389, %v742
        %744 = vmatprep.mubr.bf16.mxu0 0
        %745 = vmatmul.mubr.bf16.gmra.mxu0 %v347
        %v746 = vpop.f32.mrf.mxu0
        %v747 = vadd.f32 %v385, %v746
        %v748 = vpop.f32.mrf.mxu0
        %v749 = vadd.f32 %v389, %v748
        %v750 = vpop.f32.mrf.mxu0
        %v751 = vadd.f32 %v385, %v750
        %v752 = vpop.f32.mrf.mxu0
        %v753 = vadd.f32 %v389, %v752
        %754 = vdwg.mxu0
        %755 = vmatprep.subr.bf16.mxu0 %v529
        %756 = vmatpush1.bf16.msra.mxu0 %v528
        %757 = vmatprep.subr.bf16.mxu0 %v525
        %758 = vmatpush1.bf16.msra.mxu0 %v524
        %759 = vmatprep.subr.bf16.mxu0 %v521
        %760 = vmatpush1.bf16.msra.mxu0 %v520
        %761 = vmatprep.subr.bf16.mxu0 %v517
        %762 = vmatpush1.bf16.msra.mxu0 %v516
        %763 = vmatprep.subr.bf16.mxu0 %v513
        %764 = vmatpush1.bf16.msra.mxu0 %v512
        %765 = vmatprep.subr.bf16.mxu0 %v509
        %766 = vmatpush1.bf16.msra.mxu0 %v508
        %767 = vmatprep.subr.bf16.mxu0 %v505
        %768 = vmatpush1.bf16.msra.mxu0 %v504
        %769 = vmatprep.subr.bf16.mxu0 %v501
        %770 = vmatpush1.bf16.msra.mxu0 %v500
        %771 = vmatprep.subr.bf16.mxu0 0
        %772 = vmatpush2.bf16.msra.mxu0 0
        %773 = vmatprep.subr.bf16.mxu0 0
        %774 = vmatpush2.bf16.msra.mxu0 0
        %775 = vmatprep.subr.bf16.mxu0 0
        %776 = vmatpush2.bf16.msra.mxu0 0
        %777 = vmatprep.subr.bf16.mxu0 0
        %778 = vmatpush2.bf16.msra.mxu0 0
        %779 = vmatprep.subr.bf16.mxu0 0
        %780 = vmatpush2.bf16.msra.mxu0 0
        %781 = vmatprep.subr.bf16.mxu0 0
        %782 = vmatpush2.bf16.msra.mxu0 0
        %783 = vmatprep.subr.bf16.mxu0 0
        %784 = vmatpush2.bf16.msra.mxu0 0
        %785 = vmatprep.subr.bf16.mxu0 0
        %786 = vmatpush2.bf16.msra.mxu0 0
        %787 = vmatprep.mubr.bf16.mxu0 0
        %788 = vmatmul.mubr.bf16.gmra.mxu0 %v332
        %v789 = vpop.f32.mrf.mxu0
        %v790 = vadd.f32 %v393, %v789
        %v791 = vpop.f32.mrf.mxu0
        %v792 = vadd.f32 %v397, %v791
        %v793 = vpop.f32.mrf.mxu0
        %v794 = vadd.f32 %v393, %v793
        %v795 = vpop.f32.mrf.mxu0
        %v796 = vadd.f32 %v397, %v795
        %797 = vmatprep.mubr.bf16.mxu0 0
        %798 = vmatmul.mubr.bf16.gmra.mxu0 %v333
        %v799 = vpop.f32.mrf.mxu0
        %v800 = vadd.f32 %v393, %v799
        %v801 = vpop.f32.mrf.mxu0
        %v802 = vadd.f32 %v397, %v801
        %v803 = vpop.f32.mrf.mxu0
        %v804 = vadd.f32 %v393, %v803
        %v805 = vpop.f32.mrf.mxu0
        %v806 = vadd.f32 %v397, %v805
        %807 = vmatprep.mubr.bf16.mxu0 0
        %808 = vmatmul.mubr.bf16.gmra.mxu0 %v334
        %v809 = vpop.f32.mrf.mxu0
        %v810 = vadd.f32 %v393, %v809
        %v811 = vpop.f32.mrf.mxu0
        %v812 = vadd.f32 %v397, %v811
        %v813 = vpop.f32.mrf.mxu0
        %v814 = vadd.f32 %v393, %v813
        %v815 = vpop.f32.mrf.mxu0
        %v816 = vadd.f32 %v397, %v815
        %817 = vmatprep.mubr.bf16.mxu0 0
        %818 = vmatmul.mubr.bf16.gmra.mxu0 %v335
        %v819 = vpop.f32.mrf.mxu0
        %v820 = vadd.f32 %v393, %v819
        %v821 = vpop.f32.mrf.mxu0
        %v822 = vadd.f32 %v397, %v821
        %v823 = vpop.f32.mrf.mxu0
        %v824 = vadd.f32 %v393, %v823
        %v825 = vpop.f32.mrf.mxu0
        %v826 = vadd.f32 %v397, %v825
        %827 = vmatprep.mubr.bf16.mxu0 0
        %828 = vmatmul.mubr.bf16.gmra.mxu0 %v336
        %v829 = vpop.f32.mrf.mxu0
        %v830 = vadd.f32 %v393, %v829
        %v831 = vpop.f32.mrf.mxu0
        %v832 = vadd.f32 %v397, %v831
        %v833 = vpop.f32.mrf.mxu0
        %v834 = vadd.f32 %v393, %v833
        %v835 = vpop.f32.mrf.mxu0
        %v836 = vadd.f32 %v397, %v835
        %837 = vmatprep.mubr.bf16.mxu0 0
        %838 = vmatmul.mubr.bf16.gmra.mxu0 %v337
        %v839 = vpop.f32.mrf.mxu0
        %v840 = vadd.f32 %v393, %v839
        %v841 = vpop.f32.mrf.mxu0
        %v842 = vadd.f32 %v397, %v841
        %v843 = vpop.f32.mrf.mxu0
        %v844 = vadd.f32 %v393, %v843
        %v845 = vpop.f32.mrf.mxu0
        %v846 = vadd.f32 %v397, %v845
        %847 = vmatprep.mubr.bf16.mxu0 0
        %848 = vmatmul.mubr.bf16.gmra.mxu0 %v338
        %v849 = vpop.f32.mrf.mxu0
        %v850 = vadd.f32 %v393, %v849
        %v851 = vpop.f32.mrf.mxu0
        %v852 = vadd.f32 %v397, %v851
        %v853 = vpop.f32.mrf.mxu0
        %v854 = vadd.f32 %v393, %v853
        %v855 = vpop.f32.mrf.mxu0
        %v856 = vadd.f32 %v397, %v855
        %857 = vmatprep.mubr.bf16.mxu0 0
        %858 = vmatmul.mubr.bf16.gmra.mxu0 %v339
        %v859 = vpop.f32.mrf.mxu0
        %v860 = vadd.f32 %v393, %v859
        %v861 = vpop.f32.mrf.mxu0
        %v862 = vadd.f32 %v397, %v861
        %v863 = vpop.f32.mrf.mxu0
        %v864 = vadd.f32 %v393, %v863
        %v865 = vpop.f32.mrf.mxu0
        %v866 = vadd.f32 %v397, %v865
        %867 = vmatprep.mubr.bf16.mxu0 0
        %868 = vmatmul.mubr.bf16.gmra.mxu0 %v340
        %v869 = vpop.f32.mrf.mxu0
        %v870 = vadd.f32 %v393, %v869
        %v871 = vpop.f32.mrf.mxu0
        %v872 = vadd.f32 %v397, %v871
        %v873 = vpop.f32.mrf.mxu0
        %v874 = vadd.f32 %v393, %v873
        %v875 = vpop.f32.mrf.mxu0
        %v876 = vadd.f32 %v397, %v875
        %877 = vmatprep.mubr.bf16.mxu0 0
        %878 = vmatmul.mubr.bf16.gmra.mxu0 %v341
        %v879 = vpop.f32.mrf.mxu0
        %v880 = vadd.f32 %v393, %v879
        %v881 = vpop.f32.mrf.mxu0
        %v882 = vadd.f32 %v397, %v881
        %v883 = vpop.f32.mrf.mxu0
        %v884 = vadd.f32 %v393, %v883
        %v885 = vpop.f32.mrf.mxu0
        %v886 = vadd.f32 %v397, %v885
        %887 = vmatprep.mubr.bf16.mxu0 0
        %888 = vmatmul.mubr.bf16.gmra.mxu0 %v342
        %v889 = vpop.f32.mrf.mxu0
        %v890 = vadd.f32 %v393, %v889
        %v891 = vpop.f32.mrf.mxu0
        %v892 = vadd.f32 %v397, %v891
        %v893 = vpop.f32.mrf.mxu0
        %v894 = vadd.f32 %v393, %v893
        %v895 = vpop.f32.mrf.mxu0
        %v896 = vadd.f32 %v397, %v895
        %897 = vmatprep.mubr.bf16.mxu0 0
        %898 = vmatmul.mubr.bf16.gmra.mxu0 %v343
        %v899 = vpop.f32.mrf.mxu0
        %v900 = vadd.f32 %v393, %v899
        %v901 = vpop.f32.mrf.mxu0
        %v902 = vadd.f32 %v397, %v901
        %v903 = vpop.f32.mrf.mxu0
        %v904 = vadd.f32 %v393, %v903
        %v905 = vpop.f32.mrf.mxu0
        %v906 = vadd.f32 %v397, %v905
        %907 = vmatprep.mubr.bf16.mxu0 0
        %908 = vmatmul.mubr.bf16.gmra.mxu0 %v344
        %v909 = vpop.f32.mrf.mxu0
        %v910 = vadd.f32 %v393, %v909
        %v911 = vpop.f32.mrf.mxu0
        %v912 = vadd.f32 %v397, %v911
        %v913 = vpop.f32.mrf.mxu0
        %v914 = vadd.f32 %v393, %v913
        %v915 = vpop.f32.mrf.mxu0
        %v916 = vadd.f32 %v397, %v915
        %917 = vmatprep.mubr.bf16.mxu0 0
        %918 = vmatmul.mubr.bf16.gmra.mxu0 %v345
        %v919 = vpop.f32.mrf.mxu0
        %v920 = vadd.f32 %v393, %v919
        %v921 = vpop.f32.mrf.mxu0
        %v922 = vadd.f32 %v397, %v921
        %v923 = vpop.f32.mrf.mxu0
        %v924 = vadd.f32 %v393, %v923
        %v925 = vpop.f32.mrf.mxu0
        %v926 = vadd.f32 %v397, %v925
        %927 = vmatprep.mubr.bf16.mxu0 0
        %928 = vmatmul.mubr.bf16.gmra.mxu0 %v346
        %v929 = vpop.f32.mrf.mxu0
        %v930 = vadd.f32 %v393, %v929
        %v931 = vpop.f32.mrf.mxu0
        %v932 = vadd.f32 %v397, %v931
        %v933 = vpop.f32.mrf.mxu0
        %v934 = vadd.f32 %v393, %v933
        %v935 = vpop.f32.mrf.mxu0
        %v936 = vadd.f32 %v397, %v935
        %937 = vmatprep.mubr.bf16.mxu0 0
        %938 = vmatmul.mubr.bf16.gmra.mxu0 %v347
        %v939 = vpop.f32.mrf.mxu0
        %v940 = vadd.f32 %v393, %v939
        %v941 = vpop.f32.mrf.mxu0
        %v942 = vadd.f32 %v397, %v941
        %v943 = vpop.f32.mrf.mxu0
        %v944 = vadd.f32 %v393, %v943
        %v945 = vpop.f32.mrf.mxu0
        %v946 = vadd.f32 %v397, %v945
        %947 = vdwg.mxu0
        %v948 = vmax.f32 %v597, %v599
        %v949 = vmax.f32 %v948, %v790
        %950 = vmax.xlane.f32.xlu0 %v949
        %v951 = vpop.xlane.xlu0 %950
        %v952 = vmax.f32 %v601, %v603
        %v953 = vmax.f32 %v952, %v794
        %954 = vmax.xlane.f32.xlu0 %v953
        %v955 = vpop.xlane.xlu0 %954
        %v956 = vmax.f32 %v607, %v609
        %v957 = vmax.f32 %v956, %v800
        %958 = vmax.xlane.f32.xlu0 %v957
        %v959 = vpop.xlane.xlu0 %958
        %v960 = vmax.f32 %v611, %v613
        %v961 = vmax.f32 %v960, %v804
        %962 = vmax.xlane.f32.xlu0 %v961
        %v963 = vpop.xlane.xlu0 %962
        %v964 = vmax.f32 %v617, %v619
        %v965 = vmax.f32 %v964, %v810
        %966 = vmax.xlane.f32.xlu0 %v965
        %v967 = vpop.xlane.xlu0 %966
        %v968 = vmax.f32 %v621, %v623
        %v969 = vmax.f32 %v968, %v814
        %970 = vmax.xlane.f32.xlu0 %v969
        %v971 = vpop.xlane.xlu0 %970
        %v972 = vmax.f32 %v627, %v629
        %v973 = vmax.f32 %v972, %v820
        %974 = vmax.xlane.f32.xlu0 %v973
        %v975 = vpop.xlane.xlu0 %974
        %v976 = vmax.f32 %v631, %v633
        %v977 = vmax.f32 %v976, %v824
        %978 = vmax.xlane.f32.xlu0 %v977
        %v979 = vpop.xlane.xlu0 %978
        %v980 = vmax.f32 %v637, %v639
        %v981 = vmax.f32 %v980, %v830
        %982 = vmax.xlane.f32.xlu0 %v981
        %v983 = vpop.xlane.xlu0 %982
        %v984 = vmax.f32 %v641, %v643
        %v985 = vmax.f32 %v984, %v834
        %986 = vmax.xlane.f32.xlu0 %v985
        %v987 = vpop.xlane.xlu0 %986
        %v988 = vmax.f32 %v647, %v649
        %v989 = vmax.f32 %v988, %v840
        %990 = vmax.xlane.f32.xlu0 %v989
        %v991 = vpop.xlane.xlu0 %990
        %v992 = vmax.f32 %v651, %v653
        %v993 = vmax.f32 %v992, %v844
        %994 = vmax.xlane.f32.xlu0 %v993
        %v995 = vpop.xlane.xlu0 %994
        %v996 = vmax.f32 %v657, %v659
        %v997 = vmax.f32 %v996, %v850
        %998 = vmax.xlane.f32.xlu0 %v997
        %v999 = vpop.xlane.xlu0 %998
        %v1000 = vmax.f32 %v661, %v663
        %v1001 = vmax.f32 %v1000, %v854
        %1002 = vmax.xlane.f32.xlu0 %v1001
        %v1003 = vpop.xlane.xlu0 %1002
        %v1004 = vmax.f32 %v667, %v669
        %v1005 = vmax.f32 %v1004, %v860
        %1006 = vmax.xlane.f32.xlu0 %v1005
        %v1007 = vpop.xlane.xlu0 %1006
        %v1008 = vmax.f32 %v671, %v673
        %v1009 = vmax.f32 %v1008, %v864
        %1010 = vmax.xlane.f32.xlu0 %v1009
        %v1011 = vpop.xlane.xlu0 %1010
        %v1012 = vmax.f32 %v677, %v679
        %v1013 = vmax.f32 %v1012, %v870
        %1014 = vmax.xlane.f32.xlu0 %v1013
        %v1015 = vpop.xlane.xlu0 %1014
        %v1016 = vmax.f32 %v681, %v683
        %v1017 = vmax.f32 %v1016, %v874
        %1018 = vmax.xlane.f32.xlu0 %v1017
        %v1019 = vpop.xlane.xlu0 %1018
        %v1020 = vmax.f32 %v687, %v689
        %v1021 = vmax.f32 %v1020, %v880
        %1022 = vmax.xlane.f32.xlu0 %v1021
        %v1023 = vpop.xlane.xlu0 %1022
        %v1024 = vmax.f32 %v691, %v693
        %v1025 = vmax.f32 %v1024, %v884
        %1026 = vmax.xlane.f32.xlu0 %v1025
        %v1027 = vpop.xlane.xlu0 %1026
        %v1028 = vmax.f32 %v697, %v699
        %v1029 = vmax.f32 %v1028, %v890
        %1030 = vmax.xlane.f32.xlu0 %v1029
        %v1031 = vpop.xlane.xlu0 %1030
        %v1032 = vmax.f32 %v701, %v703
        %v1033 = vmax.f32 %v1032, %v894
        %1034 = vmax.xlane.f32.xlu0 %v1033
        %v1035 = vpop.xlane.xlu0 %1034
        %v1036 = vmax.f32 %v707, %v709
        %v1037 = vmax.f32 %v1036, %v900
        %1038 = vmax.xlane.f32.xlu0 %v1037
        %v1039 = vpop.xlane.xlu0 %1038
        %v1040 = vmax.f32 %v711, %v713
        %v1041 = vmax.f32 %v1040, %v904
        %1042 = vmax.xlane.f32.xlu0 %v1041
        %v1043 = vpop.xlane.xlu0 %1042
        %v1044 = vmax.f32 %v717, %v719
        %v1045 = vmax.f32 %v1044, %v910
        %1046 = vmax.xlane.f32.xlu0 %v1045
        %v1047 = vpop.xlane.xlu0 %1046
        %v1048 = vmax.f32 %v721, %v723
        %v1049 = vmax.f32 %v1048, %v914
        %1050 = vmax.xlane.f32.xlu0 %v1049
        %v1051 = vpop.xlane.xlu0 %1050
        %v1052 = vmax.f32 %v727, %v729
        %v1053 = vmax.f32 %v1052, %v920
        %1054 = vmax.xlane.f32.xlu0 %v1053
        %v1055 = vpop.xlane.xlu0 %1054
        %v1056 = vmax.f32 %v731, %v733
        %v1057 = vmax.f32 %v1056, %v924
        %1058 = vmax.xlane.f32.xlu0 %v1057
        %v1059 = vpop.xlane.xlu0 %1058
        %v1060 = vmax.f32 %v737, %v739
        %v1061 = vmax.f32 %v1060, %v930
        %1062 = vmax.xlane.f32.xlu0 %v1061
        %v1063 = vpop.xlane.xlu0 %1062
        %v1064 = vmax.f32 %v741, %v743
        %v1065 = vmax.f32 %v1064, %v934
        %1066 = vmax.xlane.f32.xlu0 %v1065
        %v1067 = vpop.xlane.xlu0 %1066
        %v1068 = vmax.f32 %v747, %v749
        %v1069 = vmax.f32 %v1068, %v940
        %1070 = vmax.xlane.f32.xlu0 %v1069
        %v1071 = vpop.xlane.xlu0 %1070
        %v1072 = vmax.f32 %v751, %v753
        %v1073 = vmax.f32 %v1072, %v944
        %1074 = vmax.xlane.f32.xlu0 %v1073
        %v1075 = vpop.xlane.xlu0 %1074
        %v1076 = vsub.f32 %v597, %v951
        %v1077 = vsub.f32 %v599, %v951
        %v1078 = vsub.f32 %v790, %v951
        %v1079 = vsub.f32 %v601, %v955
        %v1080 = vsub.f32 %v603, %v955
        %v1081 = vsub.f32 %v794, %v955
        %v1082 = vsub.f32 %v607, %v959
        %v1083 = vsub.f32 %v609, %v959
        %v1084 = vsub.f32 %v800, %v959
        %v1085 = vsub.f32 %v611, %v963
        %v1086 = vsub.f32 %v613, %v963
        %v1087 = vsub.f32 %v804, %v963
        %v1088 = vsub.f32 %v617, %v967
        %v1089 = vsub.f32 %v619, %v967
        %v1090 = vsub.f32 %v810, %v967
        %v1091 = vsub.f32 %v621, %v971
        %v1092 = vsub.f32 %v623, %v971
        %v1093 = vsub.f32 %v814, %v971
        %v1094 = vsub.f32 %v627, %v975
        %v1095 = vsub.f32 %v629, %v975
        %v1096 = vsub.f32 %v820, %v975
        %v1097 = vsub.f32 %v631, %v979
        %v1098 = vsub.f32 %v633, %v979
        %v1099 = vsub.f32 %v824, %v979
        %v1100 = vsub.f32 %v637, %v983
        %v1101 = vsub.f32 %v639, %v983
        %v1102 = vsub.f32 %v830, %v983
        %v1103 = vsub.f32 %v641, %v987
        %v1104 = vsub.f32 %v643, %v987
        %v1105 = vsub.f32 %v834, %v987
        %v1106 = vsub.f32 %v647, %v991
        %v1107 = vsub.f32 %v649, %v991
        %v1108 = vsub.f32 %v840, %v991
        %v1109 = vsub.f32 %v651, %v995
        %v1110 = vsub.f32 %v653, %v995
        %v1111 = vsub.f32 %v844, %v995
        %v1112 = vsub.f32 %v657, %v999
        %v1113 = vsub.f32 %v659, %v999
        %v1114 = vsub.f32 %v850, %v999
        %v1115 = vsub.f32 %v661, %v1003
        %v1116 = vsub.f32 %v663, %v1003
        %v1117 = vsub.f32 %v854, %v1003
        %v1118 = vsub.f32 %v667, %v1007
        %v1119 = vsub.f32 %v669, %v1007
        %v1120 = vsub.f32 %v860, %v1007
        %v1121 = vsub.f32 %v671, %v1011
        %v1122 = vsub.f32 %v673, %v1011
        %v1123 = vsub.f32 %v864, %v1011
        %v1124 = vsub.f32 %v677, %v1015
        %v1125 = vsub.f32 %v679, %v1015
        %v1126 = vsub.f32 %v870, %v1015
        %v1127 = vsub.f32 %v681, %v1019
        %v1128 = vsub.f32 %v683, %v1019
        %v1129 = vsub.f32 %v874, %v1019
        %v1130 = vsub.f32 %v687, %v1023
        %v1131 = vsub.f32 %v689, %v1023
        %v1132 = vsub.f32 %v880, %v1023
        %v1133 = vsub.f32 %v691, %v1027
        %v1134 = vsub.f32 %v693, %v1027
        %v1135 = vsub.f32 %v884, %v1027
        %v1136 = vsub.f32 %v697, %v1031
        %v1137 = vsub.f32 %v699, %v1031
        %v1138 = vsub.f32 %v890, %v1031
        %v1139 = vsub.f32 %v701, %v1035
        %v1140 = vsub.f32 %v703, %v1035
        %v1141 = vsub.f32 %v894, %v1035
        %v1142 = vsub.f32 %v707, %v1039
        %v1143 = vsub.f32 %v709, %v1039
        %v1144 = vsub.f32 %v900, %v1039
        %v1145 = vsub.f32 %v711, %v1043
        %v1146 = vsub.f32 %v713, %v1043
        %v1147 = vsub.f32 %v904, %v1043
        %v1148 = vsub.f32 %v717, %v1047
        %v1149 = vsub.f32 %v719, %v1047
        %v1150 = vsub.f32 %v910, %v1047
        %v1151 = vsub.f32 %v721, %v1051
        %v1152 = vsub.f32 %v723, %v1051
        %v1153 = vsub.f32 %v914, %v1051
        %v1154 = vsub.f32 %v727, %v1055
        %v1155 = vsub.f32 %v729, %v1055
        %v1156 = vsub.f32 %v920, %v1055
        %v1157 = vsub.f32 %v731, %v1059
        %v1158 = vsub.f32 %v733, %v1059
        %v1159 = vsub.f32 %v924, %v1059
        %v1160 = vsub.f32 %v737, %v1063
        %v1161 = vsub.f32 %v739, %v1063
        %v1162 = vsub.f32 %v930, %v1063
        %v1163 = vsub.f32 %v741, %v1067
        %v1164 = vsub.f32 %v743, %v1067
        %v1165 = vsub.f32 %v934, %v1067
        %v1166 = vsub.f32 %v747, %v1071
        %v1167 = vsub.f32 %v749, %v1071
        %v1168 = vsub.f32 %v940, %v1071
        %v1169 = vsub.f32 %v751, %v1075
        %v1170 = vsub.f32 %v753, %v1075
        %v1171 = vsub.f32 %v944, %v1075
        %v1172 = vmul.f32 %v1076, 1.442695
        %v1173 = vpow.pop %v1172
        %v1174 = vmul.f32 %v1077, 1.442695
        %v1175 = vpow.pop %v1174
        %v1176 = vmul.f32 %v1078, 1.442695
        %v1177 = vpow.pop %v1176
        %v1178 = vmul.f32 %v1079, 1.442695
        %v1179 = vpow.pop %v1178
        %v1180 = vmul.f32 %v1080, 1.442695
        %v1181 = vpow.pop %v1180
        %v1182 = vmul.f32 %v1081, 1.442695
        %v1183 = vpow.pop %v1182
        %v1184 = vmul.f32 %v1082, 1.442695
        %v1185 = vpow.pop %v1184
        %v1186 = vmul.f32 %v1083, 1.442695
        %v1187 = vpow.pop %v1186
        %v1188 = vmul.f32 %v1084, 1.442695
        %v1189 = vpow.pop %v1188
        %v1190 = vmul.f32 %v1085, 1.442695
        %v1191 = vpow.pop %v1190
        %v1192 = vmul.f32 %v1086, 1.442695
        %v1193 = vpow.pop %v1192
        %v1194 = vmul.f32 %v1087, 1.442695
        %v1195 = vpow.pop %v1194
        %v1196 = vmul.f32 %v1088, 1.442695
        %v1197 = vpow.pop %v1196
        %v1198 = vmul.f32 %v1089, 1.442695
        %v1199 = vpow.pop %v1198
        %v1200 = vmul.f32 %v1090, 1.442695
        %v1201 = vpow.pop %v1200
        %v1202 = vmul.f32 %v1091, 1.442695
        %v1203 = vpow.pop %v1202
        %v1204 = vmul.f32 %v1092, 1.442695
        %v1205 = vpow.pop %v1204
        %v1206 = vmul.f32 %v1093, 1.442695
        %v1207 = vpow.pop %v1206
        %v1208 = vmul.f32 %v1094, 1.442695
        %v1209 = vpow.pop %v1208
        %v1210 = vmul.f32 %v1095, 1.442695
        %v1211 = vpow.pop %v1210
        %v1212 = vmul.f32 %v1096, 1.442695
        %v1213 = vpow.pop %v1212
        %v1214 = vmul.f32 %v1097, 1.442695
        %v1215 = vpow.pop %v1214
        %v1216 = vmul.f32 %v1098, 1.442695
        %v1217 = vpow.pop %v1216
        %v1218 = vmul.f32 %v1099, 1.442695
        %v1219 = vpow.pop %v1218
        %v1220 = vmul.f32 %v1100, 1.442695
        %v1221 = vpow.pop %v1220
        %v1222 = vmul.f32 %v1101, 1.442695
        %v1223 = vpow.pop %v1222
        %v1224 = vmul.f32 %v1102, 1.442695
        %v1225 = vpow.pop %v1224
        %v1226 = vmul.f32 %v1103, 1.442695
        %v1227 = vpow.pop %v1226
        %v1228 = vmul.f32 %v1104, 1.442695
        %v1229 = vpow.pop %v1228
        %v1230 = vmul.f32 %v1105, 1.442695
        %v1231 = vpow.pop %v1230
        %v1232 = vmul.f32 %v1106, 1.442695
        %v1233 = vpow.pop %v1232
        %v1234 = vmul.f32 %v1107, 1.442695
        %v1235 = vpow.pop %v1234
        %v1236 = vmul.f32 %v1108, 1.442695
        %v1237 = vpow.pop %v1236
        %v1238 = vmul.f32 %v1109, 1.442695
        %v1239 = vpow.pop %v1238
        %v1240 = vmul.f32 %v1110, 1.442695
        %v1241 = vpow.pop %v1240
        %v1242 = vmul.f32 %v1111, 1.442695
        %v1243 = vpow.pop %v1242
        %v1244 = vmul.f32 %v1112, 1.442695
        %v1245 = vpow.pop %v1244
        %v1246 = vmul.f32 %v1113, 1.442695
        %v1247 = vpow.pop %v1246
        %v1248 = vmul.f32 %v1114, 1.442695
        %v1249 = vpow.pop %v1248
        %v1250 = vmul.f32 %v1115, 1.442695
        %v1251 = vpow.pop %v1250
        %v1252 = vmul.f32 %v1116, 1.442695
        %v1253 = vpow.pop %v1252
        %v1254 = vmul.f32 %v1117, 1.442695
        %v1255 = vpow.pop %v1254
        %v1256 = vmul.f32 %v1118, 1.442695
        %v1257 = vpow.pop %v1256
        %v1258 = vmul.f32 %v1119, 1.442695
        %v1259 = vpow.pop %v1258
        %v1260 = vmul.f32 %v1120, 1.442695
        %v1261 = vpow.pop %v1260
        %v1262 = vmul.f32 %v1121, 1.442695
        %v1263 = vpow.pop %v1262
        %v1264 = vmul.f32 %v1122, 1.442695
        %v1265 = vpow.pop %v1264
        %v1266 = vmul.f32 %v1123, 1.442695
        %v1267 = vpow.pop %v1266
        %v1268 = vmul.f32 %v1124, 1.442695
        %v1269 = vpow.pop %v1268
        %v1270 = vmul.f32 %v1125, 1.442695
        %v1271 = vpow.pop %v1270
        %v1272 = vmul.f32 %v1126, 1.442695
        %v1273 = vpow.pop %v1272
        %v1274 = vmul.f32 %v1127, 1.442695
        %v1275 = vpow.pop %v1274
        %v1276 = vmul.f32 %v1128, 1.442695
        %v1277 = vpow.pop %v1276
        %v1278 = vmul.f32 %v1129, 1.442695
        %v1279 = vpow.pop %v1278
        %v1280 = vmul.f32 %v1130, 1.442695
        %v1281 = vpow.pop %v1280
        %v1282 = vmul.f32 %v1131, 1.442695
        %v1283 = vpow.pop %v1282
        %v1284 = vmul.f32 %v1132, 1.442695
        %v1285 = vpow.pop %v1284
        %v1286 = vmul.f32 %v1133, 1.442695
        %v1287 = vpow.pop %v1286
        %v1288 = vmul.f32 %v1134, 1.442695
        %v1289 = vpow.pop %v1288
        %v1290 = vmul.f32 %v1135, 1.442695
        %v1291 = vpow.pop %v1290
        %v1292 = vmul.f32 %v1136, 1.442695
        %v1293 = vpow.pop %v1292
        %v1294 = vmul.f32 %v1137, 1.442695
        %v1295 = vpow.pop %v1294
        %v1296 = vmul.f32 %v1138, 1.442695
        %v1297 = vpow.pop %v1296
        %v1298 = vmul.f32 %v1139, 1.442695
        %v1299 = vpow.pop %v1298
        %v1300 = vmul.f32 %v1140, 1.442695
        %v1301 = vpow.pop %v1300
        %v1302 = vmul.f32 %v1141, 1.442695
        %v1303 = vpow.pop %v1302
        %v1304 = vmul.f32 %v1142, 1.442695
        %v1305 = vpow.pop %v1304
        %v1306 = vmul.f32 %v1143, 1.442695
        %v1307 = vpow.pop %v1306
        %v1308 = vmul.f32 %v1144, 1.442695
        %v1309 = vpow.pop %v1308
        %v1310 = vmul.f32 %v1145, 1.442695
        %v1311 = vpow.pop %v1310
        %v1312 = vmul.f32 %v1146, 1.442695
        %v1313 = vpow.pop %v1312
        %v1314 = vmul.f32 %v1147, 1.442695
        %v1315 = vpow.pop %v1314
        %v1316 = vmul.f32 %v1148, 1.442695
        %v1317 = vpow.pop %v1316
        %v1318 = vmul.f32 %v1149, 1.442695
        %v1319 = vpow.pop %v1318
        %v1320 = vmul.f32 %v1150, 1.442695
        %v1321 = vpow.pop %v1320
        %v1322 = vmul.f32 %v1151, 1.442695
        %v1323 = vpow.pop %v1322
        %v1324 = vmul.f32 %v1152, 1.442695
        %v1325 = vpow.pop %v1324
        %v1326 = vmul.f32 %v1153, 1.442695
        %v1327 = vpow.pop %v1326
        %v1328 = vmul.f32 %v1154, 1.442695
        %v1329 = vpow.pop %v1328
        %v1330 = vmul.f32 %v1155, 1.442695
        %v1331 = vpow.pop %v1330
        %v1332 = vmul.f32 %v1156, 1.442695
        %v1333 = vpow.pop %v1332
        %v1334 = vmul.f32 %v1157, 1.442695
        %v1335 = vpow.pop %v1334
        %v1336 = vmul.f32 %v1158, 1.442695
        %v1337 = vpow.pop %v1336
        %v1338 = vmul.f32 %v1159, 1.442695
        %v1339 = vpow.pop %v1338
        %v1340 = vmul.f32 %v1160, 1.442695
        %v1341 = vpow.pop %v1340
        %v1342 = vmul.f32 %v1161, 1.442695
        %v1343 = vpow.pop %v1342
        %v1344 = vmul.f32 %v1162, 1.442695
        %v1345 = vpow.pop %v1344
        %v1346 = vmul.f32 %v1163, 1.442695
        %v1347 = vpow.pop %v1346
        %v1348 = vmul.f32 %v1164, 1.442695
        %v1349 = vpow.pop %v1348
        %v1350 = vmul.f32 %v1165, 1.442695
        %v1351 = vpow.pop %v1350
        %v1352 = vmul.f32 %v1166, 1.442695
        %v1353 = vpow.pop %v1352
        %v1354 = vmul.f32 %v1167, 1.442695
        %v1355 = vpow.pop %v1354
        %v1356 = vmul.f32 %v1168, 1.442695
        %v1357 = vpow.pop %v1356
        %v1358 = vmul.f32 %v1169, 1.442695
        %v1359 = vpow.pop %v1358
        %v1360 = vmul.f32 %v1170, 1.442695
        %v1361 = vpow.pop %v1360
        %v1362 = vmul.f32 %v1171, 1.442695
        %v1363 = vpow.pop %v1362
        %v1364 = vpack.c.bf16 %v1179, %v1173
        %v1365 = vpack.c.bf16 %v1181, %v1175
        %v1366 = vpack.c.bf16 %v1183, %v1177
        %v1367 = vpack.c.bf16 %v1191, %v1185
        %v1368 = vpack.c.bf16 %v1193, %v1187
        %v1369 = vpack.c.bf16 %v1195, %v1189
        %v1370 = vpack.c.bf16 %v1203, %v1197
        %v1371 = vpack.c.bf16 %v1205, %v1199
        %v1372 = vpack.c.bf16 %v1207, %v1201
        %v1373 = vpack.c.bf16 %v1215, %v1209
        %v1374 = vpack.c.bf16 %v1217, %v1211
        %v1375 = vpack.c.bf16 %v1219, %v1213
        %v1376 = vpack.c.bf16 %v1227, %v1221
        %v1377 = vpack.c.bf16 %v1229, %v1223
        %v1378 = vpack.c.bf16 %v1231, %v1225
        %v1379 = vpack.c.bf16 %v1239, %v1233
        %v1380 = vpack.c.bf16 %v1241, %v1235
        %v1381 = vpack.c.bf16 %v1243, %v1237
        %v1382 = vpack.c.bf16 %v1251, %v1245
        %v1383 = vpack.c.bf16 %v1253, %v1247
        %v1384 = vpack.c.bf16 %v1255, %v1249
        %v1385 = vpack.c.bf16 %v1263, %v1257
        %v1386 = vpack.c.bf16 %v1265, %v1259
        %v1387 = vpack.c.bf16 %v1267, %v1261
        %v1388 = vpack.c.bf16 %v1275, %v1269
        %v1389 = vpack.c.bf16 %v1277, %v1271
        %v1390 = vpack.c.bf16 %v1279, %v1273
        %v1391 = vpack.c.bf16 %v1287, %v1281
        %v1392 = vpack.c.bf16 %v1289, %v1283
        %v1393 = vpack.c.bf16 %v1291, %v1285
        %v1394 = vpack.c.bf16 %v1299, %v1293
        %v1395 = vpack.c.bf16 %v1301, %v1295
        %v1396 = vpack.c.bf16 %v1303, %v1297
        %v1397 = vpack.c.bf16 %v1311, %v1305
        %v1398 = vpack.c.bf16 %v1313, %v1307
        %v1399 = vpack.c.bf16 %v1315, %v1309
        %v1400 = vpack.c.bf16 %v1323, %v1317
        %v1401 = vpack.c.bf16 %v1325, %v1319
        %v1402 = vpack.c.bf16 %v1327, %v1321
        %v1403 = vpack.c.bf16 %v1335, %v1329
        %v1404 = vpack.c.bf16 %v1337, %v1331
        %v1405 = vpack.c.bf16 %v1339, %v1333
        %v1406 = vpack.c.bf16 %v1347, %v1341
        %v1407 = vpack.c.bf16 %v1349, %v1343
        %v1408 = vpack.c.bf16 %v1351, %v1345
        %v1409 = vpack.c.bf16 %v1359, %v1353
        %v1410 = vpack.c.bf16 %v1361, %v1355
        %v1411 = vpack.c.bf16 %v1363, %v1357
        %v1412 = vld [vmem:[#allocation8] sm:$0xff]
        %v1413 = vld [vmem:[#allocation8 + $0x8] sm:$0xf]
        %v1414 = vld [vmem:[#allocation8 + $0xc] sm:$0xff]
        %v1415 = vld [vmem:[#allocation8 + $0x14] sm:$0xf]
        %v1416 = vld [vmem:[#allocation8 + $0x18] sm:$0xff]
        %v1417 = vld [vmem:[#allocation8 + $0x20] sm:$0xf]
        %v1418 = vld [vmem:[#allocation8 + $0x24] sm:$0xff]
        %v1419 = vld [vmem:[#allocation8 + $0x2c] sm:$0xf]
        %v1420 = vld [vmem:[#allocation8 + $0x30] sm:$0xff]
        %v1421 = vld [vmem:[#allocation8 + $0x38] sm:$0xf]
        %v1422 = vld [vmem:[#allocation8 + $0x3c] sm:$0xff]
        %v1423 = vld [vmem:[#allocation8 + $0x44] sm:$0xf]
        %v1424 = vld [vmem:[#allocation8 + $0x48] sm:$0xff]
        %v1425 = vld [vmem:[#allocation8 + $0x50] sm:$0xf]
        %v1426 = vld [vmem:[#allocation8 + $0x54] sm:$0xff]
        %v1427 = vld [vmem:[#allocation8 + $0x5c] sm:$0xf]
        %v1428 = vld [vmem:[#allocation8 + $0x60] sm:$0xff]
        %v1429 = vld [vmem:[#allocation8 + $0x68] sm:$0xf]
        %v1430 = vld [vmem:[#allocation8 + $0x6c] sm:$0xff]
        %v1431 = vld [vmem:[#allocation8 + $0x74] sm:$0xf]
        %v1432 = vld [vmem:[#allocation8 + $0x78] sm:$0xff]
        %v1433 = vld [vmem:[#allocation8 + $0x80] sm:$0xf]
        %v1434 = vld [vmem:[#allocation8 + $0x84] sm:$0xff]
        %v1435 = vld [vmem:[#allocation8 + $0x8c] sm:$0xf]
        %v1436 = vld [vmem:[#allocation8 + $0x90] sm:$0xff]
        %v1437 = vld [vmem:[#allocation8 + $0x98] sm:$0xf]
        %v1438 = vld [vmem:[#allocation8 + $0x9c] sm:$0xff]
        %v1439 = vld [vmem:[#allocation8 + $0xa4] sm:$0xf]
        %v1440 = vld [vmem:[#allocation8 + $0xa8] sm:$0xff]
        %v1441 = vld [vmem:[#allocation8 + $0xb0] sm:$0xf]
        %v1442 = vld [vmem:[#allocation8 + $0xb4] sm:$0xff]
        %v1443 = vld [vmem:[#allocation8 + $0xbc] sm:$0xf]
        %v1444 = vld [vmem:[#allocation8 + $0xc0] sm:$0xff]
        %v1445 = vld [vmem:[#allocation8 + $0xc8] sm:$0xf]
        %v1446 = vld [vmem:[#allocation8 + $0xcc] sm:$0xff]
        %v1447 = vld [vmem:[#allocation8 + $0xd4] sm:$0xf]
        %v1448 = vld [vmem:[#allocation8 + $0xd8] sm:$0xff]
        %v1449 = vld [vmem:[#allocation8 + $0xe0] sm:$0xf]
        %v1450 = vld [vmem:[#allocation8 + $0xe4] sm:$0xff]
        %v1451 = vld [vmem:[#allocation8 + $0xec] sm:$0xf]
        %v1452 = vld [vmem:[#allocation8 + $0xf0] sm:$0xff]
        %v1453 = vld [vmem:[#allocation8 + $0xf8] sm:$0xf]
        %v1454 = vld [vmem:[#allocation8 + $0xfc] sm:$0xff]
        %v1455 = vld [vmem:[#allocation8 + $0x104] sm:$0xf]
        %v1456 = vld [vmem:[#allocation8 + $0x108] sm:$0xff]
        %v1457 = vld [vmem:[#allocation8 + $0x110] sm:$0xf]
        %v1458 = vld [vmem:[#allocation8 + $0x114] sm:$0xff]
        %v1459 = vld [vmem:[#allocation8 + $0x11c] sm:$0xf]
        %v1460 = vld [vmem:[#allocation8 + $0x120] sm:$0xff]
        %v1461 = vld [vmem:[#allocation8 + $0x128] sm:$0xf]
        %v1462 = vld [vmem:[#allocation8 + $0x12c] sm:$0xff]
        %v1463 = vld [vmem:[#allocation8 + $0x134] sm:$0xf]
        %v1464 = vld [vmem:[#allocation8 + $0x138] sm:$0xff]
        %v1465 = vld [vmem:[#allocation8 + $0x140] sm:$0xf]
        %v1466 = vld [vmem:[#allocation8 + $0x144] sm:$0xff]
        %v1467 = vld [vmem:[#allocation8 + $0x14c] sm:$0xf]
        %v1468 = vld [vmem:[#allocation8 + $0x150] sm:$0xff]
        %v1469 = vld [vmem:[#allocation8 + $0x158] sm:$0xf]
        %v1470 = vld [vmem:[#allocation8 + $0x15c] sm:$0xff]
        %v1471 = vld [vmem:[#allocation8 + $0x164] sm:$0xf]
        %v1472 = vld [vmem:[#allocation8 + $0x168] sm:$0xff]
        %v1473 = vld [vmem:[#allocation8 + $0x170] sm:$0xf]
        %v1474 = vld [vmem:[#allocation8 + $0x174] sm:$0xff]
        %v1475 = vld [vmem:[#allocation8 + $0x17c] sm:$0xf]
        %v1476 = vld [vmem:[#allocation8 + $0x180] sm:$0xff]
        %v1477 = vld [vmem:[#allocation8 + $0x188] sm:$0xf]
        %v1478 = vld [vmem:[#allocation8 + $0x18c] sm:$0xff]
        %v1479 = vld [vmem:[#allocation8 + $0x194] sm:$0xf]
        %v1480 = vld [vmem:[#allocation8 + $0x198] sm:$0xff]
        %v1481 = vld [vmem:[#allocation8 + $0x1a0] sm:$0xf]
        %v1482 = vld [vmem:[#allocation8 + $0x1a4] sm:$0xff]
        %v1483 = vld [vmem:[#allocation8 + $0x1ac] sm:$0xf]
        %v1484 = vld [vmem:[#allocation8 + $0x1b0] sm:$0xff]
        %v1485 = vld [vmem:[#allocation8 + $0x1b8] sm:$0xf]
        %v1486 = vld [vmem:[#allocation8 + $0x1bc] sm:$0xff]
        %v1487 = vld [vmem:[#allocation8 + $0x1c4] sm:$0xf]
        %v1488 = vld [vmem:[#allocation8 + $0x1c8] sm:$0xff]
        %v1489 = vld [vmem:[#allocation8 + $0x1d0] sm:$0xf]
        %v1490 = vld [vmem:[#allocation8 + $0x1d4] sm:$0xff]
        %v1491 = vld [vmem:[#allocation8 + $0x1dc] sm:$0xf]
        %v1492 = vld [vmem:[#allocation8 + $0x1e0] sm:$0xff]
        %v1493 = vld [vmem:[#allocation8 + $0x1e8] sm:$0xf]
        %v1494 = vld [vmem:[#allocation8 + $0x1ec] sm:$0xff]
        %v1495 = vld [vmem:[#allocation8 + $0x1f4] sm:$0xf]
        %v1496 = vld [vmem:[#allocation8 + $0x1f8] sm:$0xff]
        %v1497 = vld [vmem:[#allocation8 + $0x200] sm:$0xf]
        %v1498 = vld [vmem:[#allocation8 + $0x204] sm:$0xff]
        %v1499 = vld [vmem:[#allocation8 + $0x20c] sm:$0xf]
        %v1500 = vld [vmem:[#allocation8 + $0x210] sm:$0xff]
        %v1501 = vld [vmem:[#allocation8 + $0x218] sm:$0xf]
        %v1502 = vld [vmem:[#allocation8 + $0x21c] sm:$0xff]
        %v1503 = vld [vmem:[#allocation8 + $0x224] sm:$0xf]
        %v1504 = vld [vmem:[#allocation8 + $0x228] sm:$0xff]
        %v1505 = vld [vmem:[#allocation8 + $0x230] sm:$0xf]
        %v1506 = vld [vmem:[#allocation8 + $0x234] sm:$0xff]
        %v1507 = vld [vmem:[#allocation8 + $0x23c] sm:$0xf]
        %v1604 = vunpack.c.l.b16 %v1412
        %v1605 = vunpack.c.h.b16 %v1412
        %v1606 = vunpack.c.l.b16 %v1413
        %v1607 = vunpack.c.l.b16 %v1414
        %v1608 = vunpack.c.h.b16 %v1414
        %v1609 = vunpack.c.l.b16 %v1415
        %v1610 = vunpack.c.l.b16 %v1416
        %v1611 = vunpack.c.h.b16 %v1416
        %v1612 = vunpack.c.l.b16 %v1417
        %v1613 = vunpack.c.l.b16 %v1418
        %v1614 = vunpack.c.h.b16 %v1418
        %v1615 = vunpack.c.l.b16 %v1419
        %v1616 = vunpack.c.l.b16 %v1420
        %v1617 = vunpack.c.h.b16 %v1420
        %v1618 = vunpack.c.l.b16 %v1421
        %v1619 = vunpack.c.l.b16 %v1422
        %v1620 = vunpack.c.h.b16 %v1422
        %v1621 = vunpack.c.l.b16 %v1423
        %v1622 = vunpack.c.l.b16 %v1424
        %v1623 = vunpack.c.h.b16 %v1424
        %v1624 = vunpack.c.l.b16 %v1425
        %v1625 = vunpack.c.l.b16 %v1426
        %v1626 = vunpack.c.h.b16 %v1426
        %v1627 = vunpack.c.l.b16 %v1427
        %v1628 = vunpack.c.l.b16 %v1428
        %v1629 = vunpack.c.h.b16 %v1428
        %v1630 = vunpack.c.l.b16 %v1429
        %v1631 = vunpack.c.l.b16 %v1430
        %v1632 = vunpack.c.h.b16 %v1430
        %v1633 = vunpack.c.l.b16 %v1431
        %v1634 = vunpack.c.l.b16 %v1432
        %v1635 = vunpack.c.h.b16 %v1432
        %v1636 = vunpack.c.l.b16 %v1433
        %v1637 = vunpack.c.l.b16 %v1434
        %v1638 = vunpack.c.h.b16 %v1434
        %v1639 = vunpack.c.l.b16 %v1435
        %v1640 = vunpack.c.l.b16 %v1436
        %v1641 = vunpack.c.h.b16 %v1436
        %v1642 = vunpack.c.l.b16 %v1437
        %v1643 = vunpack.c.l.b16 %v1438
        %v1644 = vunpack.c.h.b16 %v1438
        %v1645 = vunpack.c.l.b16 %v1439
        %v1646 = vunpack.c.l.b16 %v1440
        %v1647 = vunpack.c.h.b16 %v1440
        %v1648 = vunpack.c.l.b16 %v1441
        %v1649 = vunpack.c.l.b16 %v1442
        %v1650 = vunpack.c.h.b16 %v1442
        %v1651 = vunpack.c.l.b16 %v1443
        %v1652 = vunpack.c.l.b16 %v1444
        %v1653 = vunpack.c.h.b16 %v1444
        %v1654 = vunpack.c.l.b16 %v1445
        %v1655 = vunpack.c.l.b16 %v1446
        %v1656 = vunpack.c.h.b16 %v1446
        %v1657 = vunpack.c.l.b16 %v1447
        %v1658 = vunpack.c.l.b16 %v1448
        %v1659 = vunpack.c.h.b16 %v1448
        %v1660 = vunpack.c.l.b16 %v1449
        %v1661 = vunpack.c.l.b16 %v1450
        %v1662 = vunpack.c.h.b16 %v1450
        %v1663 = vunpack.c.l.b16 %v1451
        %v1664 = vunpack.c.l.b16 %v1452
        %v1665 = vunpack.c.h.b16 %v1452
        %v1666 = vunpack.c.l.b16 %v1453
        %v1667 = vunpack.c.l.b16 %v1454
        %v1668 = vunpack.c.h.b16 %v1454
        %v1669 = vunpack.c.l.b16 %v1455
        %v1670 = vunpack.c.l.b16 %v1456
        %v1671 = vunpack.c.h.b16 %v1456
        %v1672 = vunpack.c.l.b16 %v1457
        %v1673 = vunpack.c.l.b16 %v1458
        %v1674 = vunpack.c.h.b16 %v1458
        %v1675 = vunpack.c.l.b16 %v1459
        %v1676 = vunpack.c.l.b16 %v1460
        %v1677 = vunpack.c.h.b16 %v1460
        %v1678 = vunpack.c.l.b16 %v1461
        %v1679 = vunpack.c.l.b16 %v1462
        %v1680 = vunpack.c.h.b16 %v1462
        %v1681 = vunpack.c.l.b16 %v1463
        %v1682 = vunpack.c.l.b16 %v1464
        %v1683 = vunpack.c.h.b16 %v1464
        %v1684 = vunpack.c.l.b16 %v1465
        %v1685 = vunpack.c.l.b16 %v1466
        %v1686 = vunpack.c.h.b16 %v1466
        %v1687 = vunpack.c.l.b16 %v1467
        %v1688 = vunpack.c.l.b16 %v1468
        %v1689 = vunpack.c.h.b16 %v1468
        %v1690 = vunpack.c.l.b16 %v1469
        %v1691 = vunpack.c.l.b16 %v1470
        %v1692 = vunpack.c.h.b16 %v1470
        %v1693 = vunpack.c.l.b16 %v1471
        %v1694 = vunpack.c.l.b16 %v1472
        %v1695 = vunpack.c.h.b16 %v1472
        %v1696 = vunpack.c.l.b16 %v1473
        %v1697 = vunpack.c.l.b16 %v1474
        %v1698 = vunpack.c.h.b16 %v1474
        %v1699 = vunpack.c.l.b16 %v1475
        %v1700 = vunpack.c.l.b16 %v1476
        %v1701 = vunpack.c.h.b16 %v1476
        %v1702 = vunpack.c.l.b16 %v1477
        %v1703 = vunpack.c.l.b16 %v1478
        %v1704 = vunpack.c.h.b16 %v1478
        %v1705 = vunpack.c.l.b16 %v1479
        %v1706 = vunpack.c.l.b16 %v1480
        %v1707 = vunpack.c.h.b16 %v1480
        %v1708 = vunpack.c.l.b16 %v1481
        %v1709 = vunpack.c.l.b16 %v1482
        %v1710 = vunpack.c.h.b16 %v1482
        %v1711 = vunpack.c.l.b16 %v1483
        %v1712 = vunpack.c.l.b16 %v1484
        %v1713 = vunpack.c.h.b16 %v1484
        %v1714 = vunpack.c.l.b16 %v1485
        %v1715 = vunpack.c.l.b16 %v1486
        %v1716 = vunpack.c.h.b16 %v1486
        %v1717 = vunpack.c.l.b16 %v1487
        %v1718 = vunpack.c.l.b16 %v1488
        %v1719 = vunpack.c.h.b16 %v1488
        %v1720 = vunpack.c.l.b16 %v1489
        %v1721 = vunpack.c.l.b16 %v1490
        %v1722 = vunpack.c.h.b16 %v1490
        %v1723 = vunpack.c.l.b16 %v1491
        %v1724 = vunpack.c.l.b16 %v1492
        %v1725 = vunpack.c.h.b16 %v1492
        %v1726 = vunpack.c.l.b16 %v1493
        %v1727 = vunpack.c.l.b16 %v1494
        %v1728 = vunpack.c.h.b16 %v1494
        %v1729 = vunpack.c.l.b16 %v1495
        %v1730 = vunpack.c.l.b16 %v1496
        %v1731 = vunpack.c.h.b16 %v1496
        %v1732 = vunpack.c.l.b16 %v1497
        %v1733 = vunpack.c.l.b16 %v1498
        %v1734 = vunpack.c.h.b16 %v1498
        %v1735 = vunpack.c.l.b16 %v1499
        %v1736 = vunpack.c.l.b16 %v1500
        %v1737 = vunpack.c.h.b16 %v1500
        %v1738 = vunpack.c.l.b16 %v1501
        %v1739 = vunpack.c.l.b16 %v1502
        %v1740 = vunpack.c.h.b16 %v1502
        %v1741 = vunpack.c.l.b16 %v1503
        %v1742 = vunpack.c.l.b16 %v1504
        %v1743 = vunpack.c.h.b16 %v1504
        %v1744 = vunpack.c.l.b16 %v1505
        %v1745 = vunpack.c.l.b16 %v1506
        %v1746 = vunpack.c.h.b16 %v1506
        %v1747 = vunpack.c.l.b16 %v1507
        %v1748 = vpack.c.b16 %v1607, %v1604
        %v1749 = vpack.c.b16 %v1608, %v1605
        %v1750 = vpack.c.b16 %v1609, %v1606
        %v1751 = vpack.c.b16 %v1613, %v1610
        %v1752 = vpack.c.b16 %v1614, %v1611
        %v1753 = vpack.c.b16 %v1615, %v1612
        %v1754 = vpack.c.b16 %v1619, %v1616
        %v1755 = vpack.c.b16 %v1620, %v1617
        %v1756 = vpack.c.b16 %v1621, %v1618
        %v1757 = vpack.c.b16 %v1625, %v1622
        %v1758 = vpack.c.b16 %v1626, %v1623
        %v1759 = vpack.c.b16 %v1627, %v1624
        %v1760 = vpack.c.b16 %v1631, %v1628
        %v1761 = vpack.c.b16 %v1632, %v1629
        %v1762 = vpack.c.b16 %v1633, %v1630
        %v1763 = vpack.c.b16 %v1637, %v1634
        %v1764 = vpack.c.b16 %v1638, %v1635
        %v1765 = vpack.c.b16 %v1639, %v1636
        %v1766 = vpack.c.b16 %v1643, %v1640
        %v1767 = vpack.c.b16 %v1644, %v1641
        %v1768 = vpack.c.b16 %v1645, %v1642
        %v1769 = vpack.c.b16 %v1649, %v1646
        %v1770 = vpack.c.b16 %v1650, %v1647
        %v1771 = vpack.c.b16 %v1651, %v1648
        %v1772 = vpack.c.b16 %v1655, %v1652
        %v1773 = vpack.c.b16 %v1656, %v1653
        %v1774 = vpack.c.b16 %v1657, %v1654
        %v1775 = vpack.c.b16 %v1661, %v1658
        %v1776 = vpack.c.b16 %v1662, %v1659
        %v1777 = vpack.c.b16 %v1663, %v1660
        %v1778 = vpack.c.b16 %v1667, %v1664
        %v1779 = vpack.c.b16 %v1668, %v1665
        %v1780 = vpack.c.b16 %v1669, %v1666
        %v1781 = vpack.c.b16 %v1673, %v1670
        %v1782 = vpack.c.b16 %v1674, %v1671
        %v1783 = vpack.c.b16 %v1675, %v1672
        %v1784 = vpack.c.b16 %v1679, %v1676
        %v1785 = vpack.c.b16 %v1680, %v1677
        %v1786 = vpack.c.b16 %v1681, %v1678
        %v1787 = vpack.c.b16 %v1685, %v1682
        %v1788 = vpack.c.b16 %v1686, %v1683
        %v1789 = vpack.c.b16 %v1687, %v1684
        %v1790 = vpack.c.b16 %v1691, %v1688
        %v1791 = vpack.c.b16 %v1692, %v1689
        %v1792 = vpack.c.b16 %v1693, %v1690
        %v1793 = vpack.c.b16 %v1697, %v1694
        %v1794 = vpack.c.b16 %v1698, %v1695
        %v1795 = vpack.c.b16 %v1699, %v1696
        %v1796 = vpack.c.b16 %v1703, %v1700
        %v1797 = vpack.c.b16 %v1704, %v1701
        %v1798 = vpack.c.b16 %v1705, %v1702
        %v1799 = vpack.c.b16 %v1709, %v1706
        %v1800 = vpack.c.b16 %v1710, %v1707
        %v1801 = vpack.c.b16 %v1711, %v1708
        %v1802 = vpack.c.b16 %v1715, %v1712
        %v1803 = vpack.c.b16 %v1716, %v1713
        %v1804 = vpack.c.b16 %v1717, %v1714
        %v1805 = vpack.c.b16 %v1721, %v1718
        %v1806 = vpack.c.b16 %v1722, %v1719
        %v1807 = vpack.c.b16 %v1723, %v1720
        %v1808 = vpack.c.b16 %v1727, %v1724
        %v1809 = vpack.c.b16 %v1728, %v1725
        %v1810 = vpack.c.b16 %v1729, %v1726
        %v1811 = vpack.c.b16 %v1733, %v1730
        %v1812 = vpack.c.b16 %v1734, %v1731
        %v1813 = vpack.c.b16 %v1735, %v1732
        %v1814 = vpack.c.b16 %v1739, %v1736
        %v1815 = vpack.c.b16 %v1740, %v1737
        %v1816 = vpack.c.b16 %v1741, %v1738
        %v1817 = vpack.c.b16 %v1745, %v1742
        %v1818 = vpack.c.b16 %v1746, %v1743
        %v1819 = vpack.c.b16 %v1747, %v1744
        %1892 = vmatprep.subr.bf16.mxu0 %v1770
        %1893 = vmatpush1.bf16.msra.mxu0 %v1769
        %1894 = vmatprep.subr.bf16.mxu0 %v1767
        %1895 = vmatpush1.bf16.msra.mxu0 %v1766
        %1896 = vmatprep.subr.bf16.mxu0 %v1764
        %1897 = vmatpush1.bf16.msra.mxu0 %v1763
        %1898 = vmatprep.subr.bf16.mxu0 %v1761
        %1899 = vmatpush1.bf16.msra.mxu0 %v1760
        %1900 = vmatprep.subr.bf16.mxu0 %v1758
        %1901 = vmatpush1.bf16.msra.mxu0 %v1757
        %1902 = vmatprep.subr.bf16.mxu0 %v1755
        %1903 = vmatpush1.bf16.msra.mxu0 %v1754
        %1904 = vmatprep.subr.bf16.mxu0 %v1752
        %1905 = vmatpush1.bf16.msra.mxu0 %v1751
        %1906 = vmatprep.subr.bf16.mxu0 %v1749
        %1907 = vmatpush1.bf16.msra.mxu0 %v1748
        %1908 = vmatprep.subr.bf16.mxu0 %v1794
        %1909 = vmatpush2.bf16.msra.mxu0 %v1793
        %1910 = vmatprep.subr.bf16.mxu0 %v1791
        %1911 = vmatpush2.bf16.msra.mxu0 %v1790
        %1912 = vmatprep.subr.bf16.mxu0 %v1788
        %1913 = vmatpush2.bf16.msra.mxu0 %v1787
        %1914 = vmatprep.subr.bf16.mxu0 %v1785
        %1915 = vmatpush2.bf16.msra.mxu0 %v1784
        %1916 = vmatprep.subr.bf16.mxu0 %v1782
        %1917 = vmatpush2.bf16.msra.mxu0 %v1781
        %1918 = vmatprep.subr.bf16.mxu0 %v1779
        %1919 = vmatpush2.bf16.msra.mxu0 %v1778
        %1920 = vmatprep.subr.bf16.mxu0 %v1776
        %1921 = vmatpush2.bf16.msra.mxu0 %v1775
        %1922 = vmatprep.subr.bf16.mxu0 %v1773
        %1923 = vmatpush2.bf16.msra.mxu0 %v1772
        %1924 = vmatprep.mubr.bf16.mxu0 %v1365
        %1925 = vmatmul.mubr.bf16.gmra.mxu0 %v1364
        %v1926 = vpop.f32.mrf.mxu0
        %v1927 = vadd.f32 0.0, %v1926
        %v1928 = vpop.f32.mrf.mxu0
        %v1929 = vadd.f32 0.0, %v1928
        %v1930 = vpop.f32.mrf.mxu0
        %v1931 = vadd.f32 0.0, %v1930
        %v1932 = vpop.f32.mrf.mxu0
        %v1933 = vadd.f32 0.0, %v1932
        %1934 = vmatprep.mubr.bf16.mxu0 %v1368
        %1935 = vmatmul.mubr.bf16.gmra.mxu0 %v1367
        %v1936 = vpop.f32.mrf.mxu0
        %v1937 = vadd.f32 0.0, %v1936
        %v1938 = vpop.f32.mrf.mxu0
        %v1939 = vadd.f32 0.0, %v1938
        %v1940 = vpop.f32.mrf.mxu0
        %v1941 = vadd.f32 0.0, %v1940
        %v1942 = vpop.f32.mrf.mxu0
        %v1943 = vadd.f32 0.0, %v1942
        %1944 = vmatprep.mubr.bf16.mxu0 %v1371
        %1945 = vmatmul.mubr.bf16.gmra.mxu0 %v1370
        %v1946 = vpop.f32.mrf.mxu0
        %v1947 = vadd.f32 0.0, %v1946
        %v1948 = vpop.f32.mrf.mxu0
        %v1949 = vadd.f32 0.0, %v1948
        %v1950 = vpop.f32.mrf.mxu0
        %v1951 = vadd.f32 0.0, %v1950
        %v1952 = vpop.f32.mrf.mxu0
        %v1953 = vadd.f32 0.0, %v1952
        %1954 = vmatprep.mubr.bf16.mxu0 %v1374
        %1955 = vmatmul.mubr.bf16.gmra.mxu0 %v1373
        %v1956 = vpop.f32.mrf.mxu0
        %v1957 = vadd.f32 0.0, %v1956
        %v1958 = vpop.f32.mrf.mxu0
        %v1959 = vadd.f32 0.0, %v1958
        %v1960 = vpop.f32.mrf.mxu0
        %v1961 = vadd.f32 0.0, %v1960
        %v1962 = vpop.f32.mrf.mxu0
        %v1963 = vadd.f32 0.0, %v1962
        %1964 = vmatprep.mubr.bf16.mxu0 %v1377
        %1965 = vmatmul.mubr.bf16.gmra.mxu0 %v1376
        %v1966 = vpop.f32.mrf.mxu0
        %v1967 = vadd.f32 0.0, %v1966
        %v1968 = vpop.f32.mrf.mxu0
        %v1969 = vadd.f32 0.0, %v1968
        %v1970 = vpop.f32.mrf.mxu0
        %v1971 = vadd.f32 0.0, %v1970
        %v1972 = vpop.f32.mrf.mxu0
        %v1973 = vadd.f32 0.0, %v1972
        %1974 = vmatprep.mubr.bf16.mxu0 %v1380
        %1975 = vmatmul.mubr.bf16.gmra.mxu0 %v1379
        %v1976 = vpop.f32.mrf.mxu0
        %v1977 = vadd.f32 0.0, %v1976
        %v1978 = vpop.f32.mrf.mxu0
        %v1979 = vadd.f32 0.0, %v1978
        %v1980 = vpop.f32.mrf.mxu0
        %v1981 = vadd.f32 0.0, %v1980
        %v1982 = vpop.f32.mrf.mxu0
        %v1983 = vadd.f32 0.0, %v1982
        %1984 = vmatprep.mubr.bf16.mxu0 %v1383
        %1985 = vmatmul.mubr.bf16.gmra.mxu0 %v1382
        %v1986 = vpop.f32.mrf.mxu0
        %v1987 = vadd.f32 0.0, %v1986
        %v1988 = vpop.f32.mrf.mxu0
        %v1989 = vadd.f32 0.0, %v1988
        %v1990 = vpop.f32.mrf.mxu0
        %v1991 = vadd.f32 0.0, %v1990
        %v1992 = vpop.f32.mrf.mxu0
        %v1993 = vadd.f32 0.0, %v1992
        %1994 = vmatprep.mubr.bf16.mxu0 %v1386
        %1995 = vmatmul.mubr.bf16.gmra.mxu0 %v1385
        %v1996 = vpop.f32.mrf.mxu0
        %v1997 = vadd.f32 0.0, %v1996
        %v1998 = vpop.f32.mrf.mxu0
        %v1999 = vadd.f32 0.0, %v1998
        %v2000 = vpop.f32.mrf.mxu0
        %v2001 = vadd.f32 0.0, %v2000
        %v2002 = vpop.f32.mrf.mxu0
        %v2003 = vadd.f32 0.0, %v2002
        %2004 = vmatprep.mubr.bf16.mxu0 %v1389
        %2005 = vmatmul.mubr.bf16.gmra.mxu0 %v1388
        %v2006 = vpop.f32.mrf.mxu0
        %v2007 = vadd.f32 0.0, %v2006
        %v2008 = vpop.f32.mrf.mxu0
        %v2009 = vadd.f32 0.0, %v2008
        %v2010 = vpop.f32.mrf.mxu0
        %v2011 = vadd.f32 0.0, %v2010
        %v2012 = vpop.f32.mrf.mxu0
        %v2013 = vadd.f32 0.0, %v2012
        %2014 = vmatprep.mubr.bf16.mxu0 %v1392
        %2015 = vmatmul.mubr.bf16.gmra.mxu0 %v1391
        %v2016 = vpop.f32.mrf.mxu0
        %v2017 = vadd.f32 0.0, %v2016
        %v2018 = vpop.f32.mrf.mxu0
        %v2019 = vadd.f32 0.0, %v2018
        %v2020 = vpop.f32.mrf.mxu0
        %v2021 = vadd.f32 0.0, %v2020
        %v2022 = vpop.f32.mrf.mxu0
        %v2023 = vadd.f32 0.0, %v2022
        %2024 = vmatprep.mubr.bf16.mxu0 %v1395
        %2025 = vmatmul.mubr.bf16.gmra.mxu0 %v1394
        %v2026 = vpop.f32.mrf.mxu0
        %v2027 = vadd.f32 0.0, %v2026
        %v2028 = vpop.f32.mrf.mxu0
        %v2029 = vadd.f32 0.0, %v2028
        %v2030 = vpop.f32.mrf.mxu0
        %v2031 = vadd.f32 0.0, %v2030
        %v2032 = vpop.f32.mrf.mxu0
        %v2033 = vadd.f32 0.0, %v2032
        %2034 = vmatprep.mubr.bf16.mxu0 %v1398
        %2035 = vmatmul.mubr.bf16.gmra.mxu0 %v1397
        %v2036 = vpop.f32.mrf.mxu0
        %v2037 = vadd.f32 0.0, %v2036
        %v2038 = vpop.f32.mrf.mxu0
        %v2039 = vadd.f32 0.0, %v2038
        %v2040 = vpop.f32.mrf.mxu0
        %v2041 = vadd.f32 0.0, %v2040
        %v2042 = vpop.f32.mrf.mxu0
        %v2043 = vadd.f32 0.0, %v2042
        %2044 = vmatprep.mubr.bf16.mxu0 %v1401
        %2045 = vmatmul.mubr.bf16.gmra.mxu0 %v1400
        %v2046 = vpop.f32.mrf.mxu0
        %v2047 = vadd.f32 0.0, %v2046
        %v2048 = vpop.f32.mrf.mxu0
        %v2049 = vadd.f32 0.0, %v2048
        %v2050 = vpop.f32.mrf.mxu0
        %v2051 = vadd.f32 0.0, %v2050
        %v2052 = vpop.f32.mrf.mxu0
        %v2053 = vadd.f32 0.0, %v2052
        %2054 = vmatprep.mubr.bf16.mxu0 %v1404
        %2055 = vmatmul.mubr.bf16.gmra.mxu0 %v1403
        %v2056 = vpop.f32.mrf.mxu0
        %v2057 = vadd.f32 0.0, %v2056
        %v2058 = vpop.f32.mrf.mxu0
        %v2059 = vadd.f32 0.0, %v2058
        %v2060 = vpop.f32.mrf.mxu0
        %v2061 = vadd.f32 0.0, %v2060
        %v2062 = vpop.f32.mrf.mxu0
        %v2063 = vadd.f32 0.0, %v2062
        %2064 = vmatprep.mubr.bf16.mxu0 %v1407
        %2065 = vmatmul.mubr.bf16.gmra.mxu0 %v1406
        %v2066 = vpop.f32.mrf.mxu0
        %v2067 = vadd.f32 0.0, %v2066
        %v2068 = vpop.f32.mrf.mxu0
        %v2069 = vadd.f32 0.0, %v2068
        %v2070 = vpop.f32.mrf.mxu0
        %v2071 = vadd.f32 0.0, %v2070
        %v2072 = vpop.f32.mrf.mxu0
        %v2073 = vadd.f32 0.0, %v2072
        %2074 = vmatprep.mubr.bf16.mxu0 %v1410
        %2075 = vmatmul.mubr.bf16.gmra.mxu0 %v1409
        %v2076 = vpop.f32.mrf.mxu0
        %v2077 = vadd.f32 0.0, %v2076
        %v2078 = vpop.f32.mrf.mxu0
        %v2079 = vadd.f32 0.0, %v2078
        %v2080 = vpop.f32.mrf.mxu0
        %v2081 = vadd.f32 0.0, %v2080
        %v2082 = vpop.f32.mrf.mxu0
        %v2083 = vadd.f32 0.0, %v2082
        %2084 = vdwg.mxu0
        %2085 = vmatprep.subr.bf16.mxu0 %v1818
        %2086 = vmatpush1.bf16.msra.mxu0 %v1817
        %2087 = vmatprep.subr.bf16.mxu0 %v1815
        %2088 = vmatpush1.bf16.msra.mxu0 %v1814
        %2089 = vmatprep.subr.bf16.mxu0 %v1812
        %2090 = vmatpush1.bf16.msra.mxu0 %v1811
        %2091 = vmatprep.subr.bf16.mxu0 %v1809
        %2092 = vmatpush1.bf16.msra.mxu0 %v1808
        %2093 = vmatprep.subr.bf16.mxu0 %v1806
        %2094 = vmatpush1.bf16.msra.mxu0 %v1805
        %2095 = vmatprep.subr.bf16.mxu0 %v1803
        %2096 = vmatpush1.bf16.msra.mxu0 %v1802
        %2097 = vmatprep.subr.bf16.mxu0 %v1800
        %2098 = vmatpush1.bf16.msra.mxu0 %v1799
        %2099 = vmatprep.subr.bf16.mxu0 %v1797
        %2100 = vmatpush1.bf16.msra.mxu0 %v1796
        %2101 = vmatprep.subr.bf16.mxu0 0
        %2102 = vmatpush2.bf16.msra.mxu0 0
        %2103 = vmatprep.subr.bf16.mxu0 0
        %2104 = vmatpush2.bf16.msra.mxu0 0
        %2105 = vmatprep.subr.bf16.mxu0 0
        %2106 = vmatpush2.bf16.msra.mxu0 0
        %2107 = vmatprep.subr.bf16.mxu0 0
        %2108 = vmatpush2.bf16.msra.mxu0 0
        %2109 = vmatprep.subr.bf16.mxu0 0
        %2110 = vmatpush2.bf16.msra.mxu0 0
        %2111 = vmatprep.subr.bf16.mxu0 0
        %2112 = vmatpush2.bf16.msra.mxu0 0
        %2113 = vmatprep.subr.bf16.mxu0 0
        %2114 = vmatpush2.bf16.msra.mxu0 0
        %2115 = vmatprep.subr.bf16.mxu0 0
        %2116 = vmatpush2.bf16.msra.mxu0 0
        %2117 = vmatprep.mubr.bf16.mxu0 0
        %2118 = vmatmul.mubr.bf16.gmra.mxu0 %v1366
        %v2119 = vpop.f32.mrf.mxu0
        %v2120 = vadd.f32 %v1927, %v2119
        %v2121 = vpop.f32.mrf.mxu0
        %v2122 = vadd.f32 %v1929, %v2121
        %v2123 = vpop.f32.mrf.mxu0
        %v2124 = vadd.f32 %v1931, %v2123
        %v2125 = vpop.f32.mrf.mxu0
        %v2126 = vadd.f32 %v1933, %v2125
        %2127 = vmatprep.mubr.bf16.mxu0 0
        %2128 = vmatmul.mubr.bf16.gmra.mxu0 %v1369
        %v2129 = vpop.f32.mrf.mxu0
        %v2130 = vadd.f32 %v1937, %v2129
        %v2131 = vpop.f32.mrf.mxu0
        %v2132 = vadd.f32 %v1939, %v2131
        %v2133 = vpop.f32.mrf.mxu0
        %v2134 = vadd.f32 %v1941, %v2133
        %v2135 = vpop.f32.mrf.mxu0
        %v2136 = vadd.f32 %v1943, %v2135
        %2137 = vmatprep.mubr.bf16.mxu0 0
        %2138 = vmatmul.mubr.bf16.gmra.mxu0 %v1372
        %v2139 = vpop.f32.mrf.mxu0
        %v2140 = vadd.f32 %v1947, %v2139
        %v2141 = vpop.f32.mrf.mxu0
        %v2142 = vadd.f32 %v1949, %v2141
        %v2143 = vpop.f32.mrf.mxu0
        %v2144 = vadd.f32 %v1951, %v2143
        %v2145 = vpop.f32.mrf.mxu0
        %v2146 = vadd.f32 %v1953, %v2145
        %2147 = vmatprep.mubr.bf16.mxu0 0
        %2148 = vmatmul.mubr.bf16.gmra.mxu0 %v1375
        %v2149 = vpop.f32.mrf.mxu0
        %v2150 = vadd.f32 %v1957, %v2149
        %v2151 = vpop.f32.mrf.mxu0
        %v2152 = vadd.f32 %v1959, %v2151
        %v2153 = vpop.f32.mrf.mxu0
        %v2154 = vadd.f32 %v1961, %v2153
        %v2155 = vpop.f32.mrf.mxu0
        %v2156 = vadd.f32 %v1963, %v2155
        %2157 = vmatprep.mubr.bf16.mxu0 0
        %2158 = vmatmul.mubr.bf16.gmra.mxu0 %v1378
        %v2159 = vpop.f32.mrf.mxu0
        %v2160 = vadd.f32 %v1967, %v2159
        %v2161 = vpop.f32.mrf.mxu0
        %v2162 = vadd.f32 %v1969, %v2161
        %v2163 = vpop.f32.mrf.mxu0
        %v2164 = vadd.f32 %v1971, %v2163
        %v2165 = vpop.f32.mrf.mxu0
        %v2166 = vadd.f32 %v1973, %v2165
        %2167 = vmatprep.mubr.bf16.mxu0 0
        %2168 = vmatmul.mubr.bf16.gmra.mxu0 %v1381
        %v2169 = vpop.f32.mrf.mxu0
        %v2170 = vadd.f32 %v1977, %v2169
        %v2171 = vpop.f32.mrf.mxu0
        %v2172 = vadd.f32 %v1979, %v2171
        %v2173 = vpop.f32.mrf.mxu0
        %v2174 = vadd.f32 %v1981, %v2173
        %v2175 = vpop.f32.mrf.mxu0
        %v2176 = vadd.f32 %v1983, %v2175
        %2177 = vmatprep.mubr.bf16.mxu0 0
        %2178 = vmatmul.mubr.bf16.gmra.mxu0 %v1384
        %v2179 = vpop.f32.mrf.mxu0
        %v2180 = vadd.f32 %v1987, %v2179
        %v2181 = vpop.f32.mrf.mxu0
        %v2182 = vadd.f32 %v1989, %v2181
        %v2183 = vpop.f32.mrf.mxu0
        %v2184 = vadd.f32 %v1991, %v2183
        %v2185 = vpop.f32.mrf.mxu0
        %v2186 = vadd.f32 %v1993, %v2185
        %2187 = vmatprep.mubr.bf16.mxu0 0
        %2188 = vmatmul.mubr.bf16.gmra.mxu0 %v1387
        %v2189 = vpop.f32.mrf.mxu0
        %v2190 = vadd.f32 %v1997, %v2189
        %v2191 = vpop.f32.mrf.mxu0
        %v2192 = vadd.f32 %v1999, %v2191
        %v2193 = vpop.f32.mrf.mxu0
        %v2194 = vadd.f32 %v2001, %v2193
        %v2195 = vpop.f32.mrf.mxu0
        %v2196 = vadd.f32 %v2003, %v2195
        %2197 = vmatprep.mubr.bf16.mxu0 0
        %2198 = vmatmul.mubr.bf16.gmra.mxu0 %v1390
        %v2199 = vpop.f32.mrf.mxu0
        %v2200 = vadd.f32 %v2007, %v2199
        %v2201 = vpop.f32.mrf.mxu0
        %v2202 = vadd.f32 %v2009, %v2201
        %v2203 = vpop.f32.mrf.mxu0
        %v2204 = vadd.f32 %v2011, %v2203
        %v2205 = vpop.f32.mrf.mxu0
        %v2206 = vadd.f32 %v2013, %v2205
        %2207 = vmatprep.mubr.bf16.mxu0 0
        %2208 = vmatmul.mubr.bf16.gmra.mxu0 %v1393
        %v2209 = vpop.f32.mrf.mxu0
        %v2210 = vadd.f32 %v2017, %v2209
        %v2211 = vpop.f32.mrf.mxu0
        %v2212 = vadd.f32 %v2019, %v2211
        %v2213 = vpop.f32.mrf.mxu0
        %v2214 = vadd.f32 %v2021, %v2213
        %v2215 = vpop.f32.mrf.mxu0
        %v2216 = vadd.f32 %v2023, %v2215
        %2217 = vmatprep.mubr.bf16.mxu0 0
        %2218 = vmatmul.mubr.bf16.gmra.mxu0 %v1396
        %v2219 = vpop.f32.mrf.mxu0
        %v2220 = vadd.f32 %v2027, %v2219
        %v2221 = vpop.f32.mrf.mxu0
        %v2222 = vadd.f32 %v2029, %v2221
        %v2223 = vpop.f32.mrf.mxu0
        %v2224 = vadd.f32 %v2031, %v2223
        %v2225 = vpop.f32.mrf.mxu0
        %v2226 = vadd.f32 %v2033, %v2225
        %2227 = vmatprep.mubr.bf16.mxu0 0
        %2228 = vmatmul.mubr.bf16.gmra.mxu0 %v1399
        %v2229 = vpop.f32.mrf.mxu0
        %v2230 = vadd.f32 %v2037, %v2229
        %v2231 = vpop.f32.mrf.mxu0
        %v2232 = vadd.f32 %v2039, %v2231
        %v2233 = vpop.f32.mrf.mxu0
        %v2234 = vadd.f32 %v2041, %v2233
        %v2235 = vpop.f32.mrf.mxu0
        %v2236 = vadd.f32 %v2043, %v2235
        %2237 = vmatprep.mubr.bf16.mxu0 0
        %2238 = vmatmul.mubr.bf16.gmra.mxu0 %v1402
        %v2239 = vpop.f32.mrf.mxu0
        %v2240 = vadd.f32 %v2047, %v2239
        %v2241 = vpop.f32.mrf.mxu0
        %v2242 = vadd.f32 %v2049, %v2241
        %v2243 = vpop.f32.mrf.mxu0
        %v2244 = vadd.f32 %v2051, %v2243
        %v2245 = vpop.f32.mrf.mxu0
        %v2246 = vadd.f32 %v2053, %v2245
        %2247 = vmatprep.mubr.bf16.mxu0 0
        %2248 = vmatmul.mubr.bf16.gmra.mxu0 %v1405
        %v2249 = vpop.f32.mrf.mxu0
        %v2250 = vadd.f32 %v2057, %v2249
        %v2251 = vpop.f32.mrf.mxu0
        %v2252 = vadd.f32 %v2059, %v2251
        %v2253 = vpop.f32.mrf.mxu0
        %v2254 = vadd.f32 %v2061, %v2253
        %v2255 = vpop.f32.mrf.mxu0
        %v2256 = vadd.f32 %v2063, %v2255
        %2257 = vmatprep.mubr.bf16.mxu0 0
        %2258 = vmatmul.mubr.bf16.gmra.mxu0 %v1408
        %v2259 = vpop.f32.mrf.mxu0
        %v2260 = vadd.f32 %v2067, %v2259
        %v2261 = vpop.f32.mrf.mxu0
        %v2262 = vadd.f32 %v2069, %v2261
        %v2263 = vpop.f32.mrf.mxu0
        %v2264 = vadd.f32 %v2071, %v2263
        %v2265 = vpop.f32.mrf.mxu0
        %v2266 = vadd.f32 %v2073, %v2265
        %2267 = vmatprep.mubr.bf16.mxu0 0
        %2268 = vmatmul.mubr.bf16.gmra.mxu0 %v1411
        %v2269 = vpop.f32.mrf.mxu0
        %v2270 = vadd.f32 %v2077, %v2269
        %v2271 = vpop.f32.mrf.mxu0
        %v2272 = vadd.f32 %v2079, %v2271
        %v2273 = vpop.f32.mrf.mxu0
        %v2274 = vadd.f32 %v2081, %v2273
        %v2275 = vpop.f32.mrf.mxu0
        %v2276 = vadd.f32 %v2083, %v2275
        %2277 = vdwg.mxu0
        %2278 = vmatprep.subr.bf16.mxu0 0
        %2279 = vmatpush1.bf16.msra.mxu0 %v1771
        %2280 = vmatprep.subr.bf16.mxu0 0
        %2281 = vmatpush1.bf16.msra.mxu0 %v1768
        %2282 = vmatprep.subr.bf16.mxu0 0
        %2283 = vmatpush1.bf16.msra.mxu0 %v1765
        %2284 = vmatprep.subr.bf16.mxu0 0
        %2285 = vmatpush1.bf16.msra.mxu0 %v1762
        %2286 = vmatprep.subr.bf16.mxu0 0
        %2287 = vmatpush1.bf16.msra.mxu0 %v1759
        %2288 = vmatprep.subr.bf16.mxu0 0
        %2289 = vmatpush1.bf16.msra.mxu0 %v1756
        %2290 = vmatprep.subr.bf16.mxu0 0
        %2291 = vmatpush1.bf16.msra.mxu0 %v1753
        %2292 = vmatprep.subr.bf16.mxu0 0
        %2293 = vmatpush1.bf16.msra.mxu0 %v1750
        %2294 = vmatprep.subr.bf16.mxu0 0
        %2295 = vmatpush2.bf16.msra.mxu0 %v1795
        %2296 = vmatprep.subr.bf16.mxu0 0
        %2297 = vmatpush2.bf16.msra.mxu0 %v1792
        %2298 = vmatprep.subr.bf16.mxu0 0
        %2299 = vmatpush2.bf16.msra.mxu0 %v1789
        %2300 = vmatprep.subr.bf16.mxu0 0
        %2301 = vmatpush2.bf16.msra.mxu0 %v1786
        %2302 = vmatprep.subr.bf16.mxu0 0
        %2303 = vmatpush2.bf16.msra.mxu0 %v1783
        %2304 = vmatprep.subr.bf16.mxu0 0
        %2305 = vmatpush2.bf16.msra.mxu0 %v1780
        %2306 = vmatprep.subr.bf16.mxu0 0
        %2307 = vmatpush2.bf16.msra.mxu0 %v1777
        %2308 = vmatprep.subr.bf16.mxu0 0
        %2309 = vmatpush2.bf16.msra.mxu0 %v1774
        %2310 = vmatprep.mubr.bf16.mxu0 %v1365
        %2311 = vmatmul.mubr.bf16.gmra.mxu0 %v1364
        %v2312 = vpop.f32.mrf.mxu0
        %v2313 = vadd.f32 0.0, %v2312
        %v2314 = vpop.f32.mrf.mxu0
        %v2315 = vpop.f32.mrf.mxu0
        %v2316 = vadd.f32 0.0, %v2315
        %v2317 = vpop.f32.mrf.mxu0
        %2318 = vmatprep.mubr.bf16.mxu0 %v1368
        %2319 = vmatmul.mubr.bf16.gmra.mxu0 %v1367
        %v2320 = vpop.f32.mrf.mxu0
        %v2321 = vadd.f32 0.0, %v2320
        %v2322 = vpop.f32.mrf.mxu0
        %v2323 = vpop.f32.mrf.mxu0
        %v2324 = vadd.f32 0.0, %v2323
        %v2325 = vpop.f32.mrf.mxu0
        %2326 = vmatprep.mubr.bf16.mxu0 %v1371
        %2327 = vmatmul.mubr.bf16.gmra.mxu0 %v1370
        %v2328 = vpop.f32.mrf.mxu0
        %v2329 = vadd.f32 0.0, %v2328
        %v2330 = vpop.f32.mrf.mxu0
        %v2331 = vpop.f32.mrf.mxu0
        %v2332 = vadd.f32 0.0, %v2331
        %v2333 = vpop.f32.mrf.mxu0
        %2334 = vmatprep.mubr.bf16.mxu0 %v1374
        %2335 = vmatmul.mubr.bf16.gmra.mxu0 %v1373
        %v2336 = vpop.f32.mrf.mxu0
        %v2337 = vadd.f32 0.0, %v2336
        %v2338 = vpop.f32.mrf.mxu0
        %v2339 = vpop.f32.mrf.mxu0
        %v2340 = vadd.f32 0.0, %v2339
        %v2341 = vpop.f32.mrf.mxu0
        %2342 = vmatprep.mubr.bf16.mxu0 %v1377
        %2343 = vmatmul.mubr.bf16.gmra.mxu0 %v1376
        %v2344 = vpop.f32.mrf.mxu0
        %v2345 = vadd.f32 0.0, %v2344
        %v2346 = vpop.f32.mrf.mxu0
        %v2347 = vpop.f32.mrf.mxu0
        %v2348 = vadd.f32 0.0, %v2347
        %v2349 = vpop.f32.mrf.mxu0
        %2350 = vmatprep.mubr.bf16.mxu0 %v1380
        %2351 = vmatmul.mubr.bf16.gmra.mxu0 %v1379
        %v2352 = vpop.f32.mrf.mxu0
        %v2353 = vadd.f32 0.0, %v2352
        %v2354 = vpop.f32.mrf.mxu0
        %v2355 = vpop.f32.mrf.mxu0
        %v2356 = vadd.f32 0.0, %v2355
        %v2357 = vpop.f32.mrf.mxu0
        %2358 = vmatprep.mubr.bf16.mxu0 %v1383
        %2359 = vmatmul.mubr.bf16.gmra.mxu0 %v1382
        %v2360 = vpop.f32.mrf.mxu0
        %v2361 = vadd.f32 0.0, %v2360
        %v2362 = vpop.f32.mrf.mxu0
        %v2363 = vpop.f32.mrf.mxu0
        %v2364 = vadd.f32 0.0, %v2363
        %v2365 = vpop.f32.mrf.mxu0
        %2366 = vmatprep.mubr.bf16.mxu0 %v1386
        %2367 = vmatmul.mubr.bf16.gmra.mxu0 %v1385
        %v2368 = vpop.f32.mrf.mxu0
        %v2369 = vadd.f32 0.0, %v2368
        %v2370 = vpop.f32.mrf.mxu0
        %v2371 = vpop.f32.mrf.mxu0
        %v2372 = vadd.f32 0.0, %v2371
        %v2373 = vpop.f32.mrf.mxu0
        %2374 = vmatprep.mubr.bf16.mxu0 %v1389
        %2375 = vmatmul.mubr.bf16.gmra.mxu0 %v1388
        %v2376 = vpop.f32.mrf.mxu0
        %v2377 = vadd.f32 0.0, %v2376
        %v2378 = vpop.f32.mrf.mxu0
        %v2379 = vpop.f32.mrf.mxu0
        %v2380 = vadd.f32 0.0, %v2379
        %v2381 = vpop.f32.mrf.mxu0
        %2382 = vmatprep.mubr.bf16.mxu0 %v1392
        %2383 = vmatmul.mubr.bf16.gmra.mxu0 %v1391
        %v2384 = vpop.f32.mrf.mxu0
        %v2385 = vadd.f32 0.0, %v2384
        %v2386 = vpop.f32.mrf.mxu0
        %v2387 = vpop.f32.mrf.mxu0
        %v2388 = vadd.f32 0.0, %v2387
        %v2389 = vpop.f32.mrf.mxu0
        %2390 = vmatprep.mubr.bf16.mxu0 %v1395
        %2391 = vmatmul.mubr.bf16.gmra.mxu0 %v1394
        %v2392 = vpop.f32.mrf.mxu0
        %v2393 = vadd.f32 0.0, %v2392
        %v2394 = vpop.f32.mrf.mxu0
        %v2395 = vpop.f32.mrf.mxu0
        %v2396 = vadd.f32 0.0, %v2395
        %v2397 = vpop.f32.mrf.mxu0
        %2398 = vmatprep.mubr.bf16.mxu0 %v1398
        %2399 = vmatmul.mubr.bf16.gmra.mxu0 %v1397
        %v2400 = vpop.f32.mrf.mxu0
        %v2401 = vadd.f32 0.0, %v2400
        %v2402 = vpop.f32.mrf.mxu0
        %v2403 = vpop.f32.mrf.mxu0
        %v2404 = vadd.f32 0.0, %v2403
        %v2405 = vpop.f32.mrf.mxu0
        %2406 = vmatprep.mubr.bf16.mxu0 %v1401
        %2407 = vmatmul.mubr.bf16.gmra.mxu0 %v1400
        %v2408 = vpop.f32.mrf.mxu0
        %v2409 = vadd.f32 0.0, %v2408
        %v2410 = vpop.f32.mrf.mxu0
        %v2411 = vpop.f32.mrf.mxu0
        %v2412 = vadd.f32 0.0, %v2411
        %v2413 = vpop.f32.mrf.mxu0
        %2414 = vmatprep.mubr.bf16.mxu0 %v1404
        %2415 = vmatmul.mubr.bf16.gmra.mxu0 %v1403
        %v2416 = vpop.f32.mrf.mxu0
        %v2417 = vadd.f32 0.0, %v2416
        %v2418 = vpop.f32.mrf.mxu0
        %v2419 = vpop.f32.mrf.mxu0
        %v2420 = vadd.f32 0.0, %v2419
        %v2421 = vpop.f32.mrf.mxu0
        %2422 = vmatprep.mubr.bf16.mxu0 %v1407
        %2423 = vmatmul.mubr.bf16.gmra.mxu0 %v1406
        %v2424 = vpop.f32.mrf.mxu0
        %v2425 = vadd.f32 0.0, %v2424
        %v2426 = vpop.f32.mrf.mxu0
        %v2427 = vpop.f32.mrf.mxu0
        %v2428 = vadd.f32 0.0, %v2427
        %v2429 = vpop.f32.mrf.mxu0
        %2430 = vmatprep.mubr.bf16.mxu0 %v1410
        %2431 = vmatmul.mubr.bf16.gmra.mxu0 %v1409
        %v2432 = vpop.f32.mrf.mxu0
        %v2433 = vadd.f32 0.0, %v2432
        %v2434 = vpop.f32.mrf.mxu0
        %v2435 = vpop.f32.mrf.mxu0
        %v2436 = vadd.f32 0.0, %v2435
        %v2437 = vpop.f32.mrf.mxu0
        %2438 = vdwg.mxu0
        %2439 = vmatprep.subr.bf16.mxu0 0
        %2440 = vmatpush1.bf16.msra.mxu0 %v1819
        %2441 = vmatprep.subr.bf16.mxu0 0
        %2442 = vmatpush1.bf16.msra.mxu0 %v1816
        %2443 = vmatprep.subr.bf16.mxu0 0
        %2444 = vmatpush1.bf16.msra.mxu0 %v1813
        %2445 = vmatprep.subr.bf16.mxu0 0
        %2446 = vmatpush1.bf16.msra.mxu0 %v1810
        %2447 = vmatprep.subr.bf16.mxu0 0
        %2448 = vmatpush1.bf16.msra.mxu0 %v1807
        %2449 = vmatprep.subr.bf16.mxu0 0
        %2450 = vmatpush1.bf16.msra.mxu0 %v1804
        %2451 = vmatprep.subr.bf16.mxu0 0
        %2452 = vmatpush1.bf16.msra.mxu0 %v1801
        %2453 = vmatprep.subr.bf16.mxu0 0
        %2454 = vmatpush1.bf16.msra.mxu0 %v1798
        %2455 = vmatprep.subr.bf16.mxu0 0
        %2456 = vmatpush2.bf16.msra.mxu0 0
        %2457 = vmatprep.subr.bf16.mxu0 0
        %2458 = vmatpush2.bf16.msra.mxu0 0
        %2459 = vmatprep.subr.bf16.mxu0 0
        %2460 = vmatpush2.bf16.msra.mxu0 0
        %2461 = vmatprep.subr.bf16.mxu0 0
        %2462 = vmatpush2.bf16.msra.mxu0 0
        %2463 = vmatprep.subr.bf16.mxu0 0
        %2464 = vmatpush2.bf16.msra.mxu0 0
        %2465 = vmatprep.subr.bf16.mxu0 0
        %2466 = vmatpush2.bf16.msra.mxu0 0
        %2467 = vmatprep.subr.bf16.mxu0 0
        %2468 = vmatpush2.bf16.msra.mxu0 0
        %2469 = vmatprep.subr.bf16.mxu0 0
        %2470 = vmatpush2.bf16.msra.mxu0 0
        %2471 = vmatprep.mubr.bf16.mxu0 0
        %2472 = vmatmul.mubr.bf16.gmra.mxu0 %v1366
        %v2473 = vpop.f32.mrf.mxu0
        %v2474 = vadd.f32 %v2313, %v2473
        %v2475 = vpop.f32.mrf.mxu0
        %v2476 = vpop.f32.mrf.mxu0
        %v2477 = vadd.f32 %v2316, %v2476
        %v2478 = vpop.f32.mrf.mxu0
        %2479 = vmatprep.mubr.bf16.mxu0 0
        %2480 = vmatmul.mubr.bf16.gmra.mxu0 %v1369
        %v2481 = vpop.f32.mrf.mxu0
        %v2482 = vadd.f32 %v2321, %v2481
        %v2483 = vpop.f32.mrf.mxu0
        %v2484 = vpop.f32.mrf.mxu0
        %v2485 = vadd.f32 %v2324, %v2484
        %v2486 = vpop.f32.mrf.mxu0
        %2487 = vmatprep.mubr.bf16.mxu0 0
        %2488 = vmatmul.mubr.bf16.gmra.mxu0 %v1372
        %v2489 = vpop.f32.mrf.mxu0
        %v2490 = vadd.f32 %v2329, %v2489
        %v2491 = vpop.f32.mrf.mxu0
        %v2492 = vpop.f32.mrf.mxu0
        %v2493 = vadd.f32 %v2332, %v2492
        %v2494 = vpop.f32.mrf.mxu0
        %2495 = vmatprep.mubr.bf16.mxu0 0
        %2496 = vmatmul.mubr.bf16.gmra.mxu0 %v1375
        %v2497 = vpop.f32.mrf.mxu0
        %v2498 = vadd.f32 %v2337, %v2497
        %v2499 = vpop.f32.mrf.mxu0
        %v2500 = vpop.f32.mrf.mxu0
        %v2501 = vadd.f32 %v2340, %v2500
        %v2502 = vpop.f32.mrf.mxu0
        %2503 = vmatprep.mubr.bf16.mxu0 0
        %2504 = vmatmul.mubr.bf16.gmra.mxu0 %v1378
        %v2505 = vpop.f32.mrf.mxu0
        %v2506 = vadd.f32 %v2345, %v2505
        %v2507 = vpop.f32.mrf.mxu0
        %v2508 = vpop.f32.mrf.mxu0
        %v2509 = vadd.f32 %v2348, %v2508
        %v2510 = vpop.f32.mrf.mxu0
        %2511 = vmatprep.mubr.bf16.mxu0 0
        %2512 = vmatmul.mubr.bf16.gmra.mxu0 %v1381
        %v2513 = vpop.f32.mrf.mxu0
        %v2514 = vadd.f32 %v2353, %v2513
        %v2515 = vpop.f32.mrf.mxu0
        %v2516 = vpop.f32.mrf.mxu0
        %v2517 = vadd.f32 %v2356, %v2516
        %v2518 = vpop.f32.mrf.mxu0
        %2519 = vmatprep.mubr.bf16.mxu0 0
        %2520 = vmatmul.mubr.bf16.gmra.mxu0 %v1384
        %v2521 = vpop.f32.mrf.mxu0
        %v2522 = vadd.f32 %v2361, %v2521
        %v2523 = vpop.f32.mrf.mxu0
        %v2524 = vpop.f32.mrf.mxu0
        %v2525 = vadd.f32 %v2364, %v2524
        %v2526 = vpop.f32.mrf.mxu0
        %2527 = vmatprep.mubr.bf16.mxu0 0
        %2528 = vmatmul.mubr.bf16.gmra.mxu0 %v1387
        %v2529 = vpop.f32.mrf.mxu0
        %v2530 = vadd.f32 %v2369, %v2529
        %v2531 = vpop.f32.mrf.mxu0
        %v2532 = vpop.f32.mrf.mxu0
        %v2533 = vadd.f32 %v2372, %v2532
        %v2534 = vpop.f32.mrf.mxu0
        %2535 = vmatprep.mubr.bf16.mxu0 0
        %2536 = vmatmul.mubr.bf16.gmra.mxu0 %v1390
        %v2537 = vpop.f32.mrf.mxu0
        %v2538 = vadd.f32 %v2377, %v2537
        %v2539 = vpop.f32.mrf.mxu0
        %v2540 = vpop.f32.mrf.mxu0
        %v2541 = vadd.f32 %v2380, %v2540
        %v2542 = vpop.f32.mrf.mxu0
        %2543 = vmatprep.mubr.bf16.mxu0 0
        %2544 = vmatmul.mubr.bf16.gmra.mxu0 %v1393
        %v2545 = vpop.f32.mrf.mxu0
        %v2546 = vadd.f32 %v2385, %v2545
        %v2547 = vpop.f32.mrf.mxu0
        %v2548 = vpop.f32.mrf.mxu0
        %v2549 = vadd.f32 %v2388, %v2548
        %v2550 = vpop.f32.mrf.mxu0
        %2551 = vmatprep.mubr.bf16.mxu0 0
        %2552 = vmatmul.mubr.bf16.gmra.mxu0 %v1396
        %v2553 = vpop.f32.mrf.mxu0
        %v2554 = vadd.f32 %v2393, %v2553
        %v2555 = vpop.f32.mrf.mxu0
        %v2556 = vpop.f32.mrf.mxu0
        %v2557 = vadd.f32 %v2396, %v2556
        %v2558 = vpop.f32.mrf.mxu0
        %2559 = vmatprep.mubr.bf16.mxu0 0
        %2560 = vmatmul.mubr.bf16.gmra.mxu0 %v1399
        %v2561 = vpop.f32.mrf.mxu0
        %v2562 = vadd.f32 %v2401, %v2561
        %v2563 = vpop.f32.mrf.mxu0
        %v2564 = vpop.f32.mrf.mxu0
        %v2565 = vadd.f32 %v2404, %v2564
        %v2566 = vpop.f32.mrf.mxu0
        %2567 = vmatprep.mubr.bf16.mxu0 0
        %2568 = vmatmul.mubr.bf16.gmra.mxu0 %v1402
        %v2569 = vpop.f32.mrf.mxu0
        %v2570 = vadd.f32 %v2409, %v2569
        %v2571 = vpop.f32.mrf.mxu0
        %v2572 = vpop.f32.mrf.mxu0
        %v2573 = vadd.f32 %v2412, %v2572
        %v2574 = vpop.f32.mrf.mxu0
        %2575 = vmatprep.mubr.bf16.mxu0 0
        %2576 = vmatmul.mubr.bf16.gmra.mxu0 %v1405
        %v2577 = vpop.f32.mrf.mxu0
        %v2578 = vadd.f32 %v2417, %v2577
        %v2579 = vpop.f32.mrf.mxu0
        %v2580 = vpop.f32.mrf.mxu0
        %v2581 = vadd.f32 %v2420, %v2580
        %v2582 = vpop.f32.mrf.mxu0
        %2583 = vmatprep.mubr.bf16.mxu0 0
        %2584 = vmatmul.mubr.bf16.gmra.mxu0 %v1408
        %v2585 = vpop.f32.mrf.mxu0
        %v2586 = vadd.f32 %v2425, %v2585
        %v2587 = vpop.f32.mrf.mxu0
        %v2588 = vpop.f32.mrf.mxu0
        %v2589 = vadd.f32 %v2428, %v2588
        %v2590 = vpop.f32.mrf.mxu0
        %2591 = vmatprep.mubr.bf16.mxu0 0
        %2592 = vmatmul.mubr.bf16.gmra.mxu0 %v1411
        %v2593 = vpop.f32.mrf.mxu0
        %v2594 = vadd.f32 %v2433, %v2593
        %v2595 = vpop.f32.mrf.mxu0
        %v2596 = vpop.f32.mrf.mxu0
        %v2597 = vadd.f32 %v2436, %v2596
        %v2598 = vpop.f32.mrf.mxu0
        %2599 = vdwg.mxu0
        %v2600 = vrcp.pop %v2120
        %v2601 = vrcp.pop %v2122
        %v2602 = vrcp.pop %v2474
        %v2603 = vrcp.pop %v2124
        %v2604 = vrcp.pop %v2126
        %v2605 = vrcp.pop %v2477
        %v2606 = vrcp.pop %v2130
        %v2607 = vrcp.pop %v2132
        %v2608 = vrcp.pop %v2482
        %v2609 = vrcp.pop %v2134
        %v2610 = vrcp.pop %v2136
        %v2611 = vrcp.pop %v2485
        %v2612 = vrcp.pop %v2140
        %v2613 = vrcp.pop %v2142
        %v2614 = vrcp.pop %v2490
        %v2615 = vrcp.pop %v2144
        %v2616 = vrcp.pop %v2146
        %v2617 = vrcp.pop %v2493
        %v2618 = vrcp.pop %v2150
        %v2619 = vrcp.pop %v2152
        %v2620 = vrcp.pop %v2498
        %v2621 = vrcp.pop %v2154
        %v2622 = vrcp.pop %v2156
        %v2623 = vrcp.pop %v2501
        %v2624 = vrcp.pop %v2160
        %v2625 = vrcp.pop %v2162
        %v2626 = vrcp.pop %v2506
        %v2627 = vrcp.pop %v2164
        %v2628 = vrcp.pop %v2166
        %v2629 = vrcp.pop %v2509
        %v2630 = vrcp.pop %v2170
        %v2631 = vrcp.pop %v2172
        %v2632 = vrcp.pop %v2514
        %v2633 = vrcp.pop %v2174
        %v2634 = vrcp.pop %v2176
        %v2635 = vrcp.pop %v2517
        %v2636 = vrcp.pop %v2180
        %v2637 = vrcp.pop %v2182
        %v2638 = vrcp.pop %v2522
        %v2639 = vrcp.pop %v2184
        %v2640 = vrcp.pop %v2186
        %v2641 = vrcp.pop %v2525
        %v2642 = vrcp.pop %v2190
        %v2643 = vrcp.pop %v2192
        %v2644 = vrcp.pop %v2530
        %v2645 = vrcp.pop %v2194
        %v2646 = vrcp.pop %v2196
        %v2647 = vrcp.pop %v2533
        %v2648 = vrcp.pop %v2200
        %v2649 = vrcp.pop %v2202
        %v2650 = vrcp.pop %v2538
        %v2651 = vrcp.pop %v2204
        %v2652 = vrcp.pop %v2206
        %v2653 = vrcp.pop %v2541
        %v2654 = vrcp.pop %v2210
        %v2655 = vrcp.pop %v2212
        %v2656 = vrcp.pop %v2546
        %v2657 = vrcp.pop %v2214
        %v2658 = vrcp.pop %v2216
        %v2659 = vrcp.pop %v2549
        %v2660 = vrcp.pop %v2220
        %v2661 = vrcp.pop %v2222
        %v2662 = vrcp.pop %v2554
        %v2663 = vrcp.pop %v2224
        %v2664 = vrcp.pop %v2226
        %v2665 = vrcp.pop %v2557
        %v2666 = vrcp.pop %v2230
        %v2667 = vrcp.pop %v2232
        %v2668 = vrcp.pop %v2562
        %v2669 = vrcp.pop %v2234
        %v2670 = vrcp.pop %v2236
        %v2671 = vrcp.pop %v2565
        %v2672 = vrcp.pop %v2240
        %v2673 = vrcp.pop %v2242
        %v2674 = vrcp.pop %v2570
        %v2675 = vrcp.pop %v2244
        %v2676 = vrcp.pop %v2246
        %v2677 = vrcp.pop %v2573
        %v2678 = vrcp.pop %v2250
        %v2679 = vrcp.pop %v2252
        %v2680 = vrcp.pop %v2578
        %v2681 = vrcp.pop %v2254
        %v2682 = vrcp.pop %v2256
        %v2683 = vrcp.pop %v2581
        %v2684 = vrcp.pop %v2260
        %v2685 = vrcp.pop %v2262
        %v2686 = vrcp.pop %v2586
        %v2687 = vrcp.pop %v2264
        %v2688 = vrcp.pop %v2266
        %v2689 = vrcp.pop %v2589
        %v2690 = vrcp.pop %v2270
        %v2691 = vrcp.pop %v2272
        %v2692 = vrcp.pop %v2594
        %v2693 = vrcp.pop %v2274
        %v2694 = vrcp.pop %v2276
        %v2695 = vrcp.pop %v2597
        %v2696 = vmul.f32 %v1173, %v2600
        %v2697 = vmul.f32 %v1175, %v2601
        %v2698 = vmul.f32 %v1177, %v2602
        %v2699 = vmul.f32 %v1179, %v2603
        %v2700 = vmul.f32 %v1181, %v2604
        %v2701 = vmul.f32 %v1183, %v2605
        %v2702 = vmul.f32 %v1185, %v2606
        %v2703 = vmul.f32 %v1187, %v2607
        %v2704 = vmul.f32 %v1189, %v2608
        %v2705 = vmul.f32 %v1191, %v2609
        %v2706 = vmul.f32 %v1193, %v2610
        %v2707 = vmul.f32 %v1195, %v2611
        %v2708 = vmul.f32 %v1197, %v2612
        %v2709 = vmul.f32 %v1199, %v2613
        %v2710 = vmul.f32 %v1201, %v2614
        %v2711 = vmul.f32 %v1203, %v2615
        %v2712 = vmul.f32 %v1205, %v2616
        %v2713 = vmul.f32 %v1207, %v2617
        %v2714 = vmul.f32 %v1209, %v2618
        %v2715 = vmul.f32 %v1211, %v2619
        %v2716 = vmul.f32 %v1213, %v2620
        %v2717 = vmul.f32 %v1215, %v2621
        %v2718 = vmul.f32 %v1217, %v2622
        %v2719 = vmul.f32 %v1219, %v2623
        %v2720 = vmul.f32 %v1221, %v2624
        %v2721 = vmul.f32 %v1223, %v2625
        %v2722 = vmul.f32 %v1225, %v2626
        %v2723 = vmul.f32 %v1227, %v2627
        %v2724 = vmul.f32 %v1229, %v2628
        %v2725 = vmul.f32 %v1231, %v2629
        %v2726 = vmul.f32 %v1233, %v2630
        %v2727 = vmul.f32 %v1235, %v2631
        %v2728 = vmul.f32 %v1237, %v2632
        %v2729 = vmul.f32 %v1239, %v2633
        %v2730 = vmul.f32 %v1241, %v2634
        %v2731 = vmul.f32 %v1243, %v2635
        %v2732 = vmul.f32 %v1245, %v2636
        %v2733 = vmul.f32 %v1247, %v2637
        %v2734 = vmul.f32 %v1249, %v2638
        %v2735 = vmul.f32 %v1251, %v2639
        %v2736 = vmul.f32 %v1253, %v2640
        %v2737 = vmul.f32 %v1255, %v2641
        %v2738 = vmul.f32 %v1257, %v2642
        %v2739 = vmul.f32 %v1259, %v2643
        %v2740 = vmul.f32 %v1261, %v2644
        %v2741 = vmul.f32 %v1263, %v2645
        %v2742 = vmul.f32 %v1265, %v2646
        %v2743 = vmul.f32 %v1267, %v2647
        %v2744 = vmul.f32 %v1269, %v2648
        %v2745 = vmul.f32 %v1271, %v2649
        %v2746 = vmul.f32 %v1273, %v2650
        %v2747 = vmul.f32 %v1275, %v2651
        %v2748 = vmul.f32 %v1277, %v2652
        %v2749 = vmul.f32 %v1279, %v2653
        %v2750 = vmul.f32 %v1281, %v2654
        %v2751 = vmul.f32 %v1283, %v2655
        %v2752 = vmul.f32 %v1285, %v2656
        %v2753 = vmul.f32 %v1287, %v2657
        %v2754 = vmul.f32 %v1289, %v2658
        %v2755 = vmul.f32 %v1291, %v2659
        %v2756 = vmul.f32 %v1293, %v2660
        %v2757 = vmul.f32 %v1295, %v2661
        %v2758 = vmul.f32 %v1297, %v2662
        %v2759 = vmul.f32 %v1299, %v2663
        %v2760 = vmul.f32 %v1301, %v2664
        %v2761 = vmul.f32 %v1303, %v2665
        %v2762 = vmul.f32 %v1305, %v2666
        %v2763 = vmul.f32 %v1307, %v2667
        %v2764 = vmul.f32 %v1309, %v2668
        %v2765 = vmul.f32 %v1311, %v2669
        %v2766 = vmul.f32 %v1313, %v2670
        %v2767 = vmul.f32 %v1315, %v2671
        %v2768 = vmul.f32 %v1317, %v2672
        %v2769 = vmul.f32 %v1319, %v2673
        %v2770 = vmul.f32 %v1321, %v2674
        %v2771 = vmul.f32 %v1323, %v2675
        %v2772 = vmul.f32 %v1325, %v2676
        %v2773 = vmul.f32 %v1327, %v2677
        %v2774 = vmul.f32 %v1329, %v2678
        %v2775 = vmul.f32 %v1331, %v2679
        %v2776 = vmul.f32 %v1333, %v2680
        %v2777 = vmul.f32 %v1335, %v2681
        %v2778 = vmul.f32 %v1337, %v2682
        %v2779 = vmul.f32 %v1339, %v2683
        %v2780 = vmul.f32 %v1341, %v2684
        %v2781 = vmul.f32 %v1343, %v2685
        %v2782 = vmul.f32 %v1345, %v2686
        %v2783 = vmul.f32 %v1347, %v2687
        %v2784 = vmul.f32 %v1349, %v2688
        %v2785 = vmul.f32 %v1351, %v2689
        %v2786 = vmul.f32 %v1353, %v2690
        %v2787 = vmul.f32 %v1355, %v2691
        %v2788 = vmul.f32 %v1357, %v2692
        %v2789 = vmul.f32 %v1359, %v2693
        %v2790 = vmul.f32 %v1361, %v2694
        %v2791 = vmul.f32 %v1363, %v2695
        %v2792 = vpack.c.bf16 %v2699, %v2696
        %v2793 = vpack.c.bf16 %v2700, %v2697
        %v2794 = vpack.c.bf16 %v2701, %v2698
        %v2795 = vpack.c.bf16 %v2705, %v2702
        %v2796 = vpack.c.bf16 %v2706, %v2703
        %v2797 = vpack.c.bf16 %v2707, %v2704
        %v2798 = vpack.c.bf16 %v2711, %v2708
        %v2799 = vpack.c.bf16 %v2712, %v2709
        %v2800 = vpack.c.bf16 %v2713, %v2710
        %v2801 = vpack.c.bf16 %v2717, %v2714
        %v2802 = vpack.c.bf16 %v2718, %v2715
        %v2803 = vpack.c.bf16 %v2719, %v2716
        %v2804 = vpack.c.bf16 %v2723, %v2720
        %v2805 = vpack.c.bf16 %v2724, %v2721
        %v2806 = vpack.c.bf16 %v2725, %v2722
        %v2807 = vpack.c.bf16 %v2729, %v2726
        %v2808 = vpack.c.bf16 %v2730, %v2727
        %v2809 = vpack.c.bf16 %v2731, %v2728
        %v2810 = vpack.c.bf16 %v2735, %v2732
        %v2811 = vpack.c.bf16 %v2736, %v2733
        %v2812 = vpack.c.bf16 %v2737, %v2734
        %v2813 = vpack.c.bf16 %v2741, %v2738
        %v2814 = vpack.c.bf16 %v2742, %v2739
        %v2815 = vpack.c.bf16 %v2743, %v2740
        %v2816 = vpack.c.bf16 %v2747, %v2744
        %v2817 = vpack.c.bf16 %v2748, %v2745
        %v2818 = vpack.c.bf16 %v2749, %v2746
        %v2819 = vpack.c.bf16 %v2753, %v2750
        %v2820 = vpack.c.bf16 %v2754, %v2751
        %v2821 = vpack.c.bf16 %v2755, %v2752
        %v2822 = vpack.c.bf16 %v2759, %v2756
        %v2823 = vpack.c.bf16 %v2760, %v2757
        %v2824 = vpack.c.bf16 %v2761, %v2758
        %v2825 = vpack.c.bf16 %v2765, %v2762
        %v2826 = vpack.c.bf16 %v2766, %v2763
        %v2827 = vpack.c.bf16 %v2767, %v2764
        %v2828 = vpack.c.bf16 %v2771, %v2768
        %v2829 = vpack.c.bf16 %v2772, %v2769
        %v2830 = vpack.c.bf16 %v2773, %v2770
        %v2831 = vpack.c.bf16 %v2777, %v2774
        %v2832 = vpack.c.bf16 %v2778, %v2775
        %v2833 = vpack.c.bf16 %v2779, %v2776
        %v2834 = vpack.c.bf16 %v2783, %v2780
        %v2835 = vpack.c.bf16 %v2784, %v2781
        %v2836 = vpack.c.bf16 %v2785, %v2782
        %v2837 = vpack.c.bf16 %v2789, %v2786
        %v2838 = vpack.c.bf16 %v2790, %v2787
        %v2839 = vpack.c.bf16 %v2791, %v2788
        %v2888 = vunpack.c.l.b16 %v2792
        %v2889 = vunpack.c.l.b16 %v2793
        %v2890 = vunpack.c.l.b16 %v2794
        %v2891 = vunpack.c.h.b16 %v2792
        %v2892 = vunpack.c.h.b16 %v2793
        %v2893 = vunpack.c.h.b16 %v2794
        %v2894 = vunpack.c.l.b16 %v2795
        %v2895 = vunpack.c.l.b16 %v2796
        %v2896 = vunpack.c.l.b16 %v2797
        %v2897 = vunpack.c.h.b16 %v2795
        %v2898 = vunpack.c.h.b16 %v2796
        %v2899 = vunpack.c.h.b16 %v2797
        %v2900 = vunpack.c.l.b16 %v2798
        %v2901 = vunpack.c.l.b16 %v2799
        %v2902 = vunpack.c.l.b16 %v2800
        %v2903 = vunpack.c.h.b16 %v2798
        %v2904 = vunpack.c.h.b16 %v2799
        %v2905 = vunpack.c.h.b16 %v2800
        %v2906 = vunpack.c.l.b16 %v2801
        %v2907 = vunpack.c.l.b16 %v2802
        %v2908 = vunpack.c.l.b16 %v2803
        %v2909 = vunpack.c.h.b16 %v2801
        %v2910 = vunpack.c.h.b16 %v2802
        %v2911 = vunpack.c.h.b16 %v2803
        %v2912 = vunpack.c.l.b16 %v2804
        %v2913 = vunpack.c.l.b16 %v2805
        %v2914 = vunpack.c.l.b16 %v2806
        %v2915 = vunpack.c.h.b16 %v2804
        %v2916 = vunpack.c.h.b16 %v2805
        %v2917 = vunpack.c.h.b16 %v2806
        %v2918 = vunpack.c.l.b16 %v2807
        %v2919 = vunpack.c.l.b16 %v2808
        %v2920 = vunpack.c.l.b16 %v2809
        %v2921 = vunpack.c.h.b16 %v2807
        %v2922 = vunpack.c.h.b16 %v2808
        %v2923 = vunpack.c.h.b16 %v2809
        %v2924 = vunpack.c.l.b16 %v2810
        %v2925 = vunpack.c.l.b16 %v2811
        %v2926 = vunpack.c.l.b16 %v2812
        %v2927 = vunpack.c.h.b16 %v2810
        %v2928 = vunpack.c.h.b16 %v2811
        %v2929 = vunpack.c.h.b16 %v2812
        %v2930 = vunpack.c.l.b16 %v2813
        %v2931 = vunpack.c.l.b16 %v2814
        %v2932 = vunpack.c.l.b16 %v2815
        %v2933 = vunpack.c.h.b16 %v2813
        %v2934 = vunpack.c.h.b16 %v2814
        %v2935 = vunpack.c.h.b16 %v2815
        %v2936 = vunpack.c.l.b16 %v2816
        %v2937 = vunpack.c.l.b16 %v2817
        %v2938 = vunpack.c.l.b16 %v2818
        %v2939 = vunpack.c.h.b16 %v2816
        %v2940 = vunpack.c.h.b16 %v2817
        %v2941 = vunpack.c.h.b16 %v2818
        %v2942 = vunpack.c.l.b16 %v2819
        %v2943 = vunpack.c.l.b16 %v2820
        %v2944 = vunpack.c.l.b16 %v2821
        %v2945 = vunpack.c.h.b16 %v2819
        %v2946 = vunpack.c.h.b16 %v2820
        %v2947 = vunpack.c.h.b16 %v2821
        %v2948 = vunpack.c.l.b16 %v2822
        %v2949 = vunpack.c.l.b16 %v2823
        %v2950 = vunpack.c.l.b16 %v2824
        %v2951 = vunpack.c.h.b16 %v2822
        %v2952 = vunpack.c.h.b16 %v2823
        %v2953 = vunpack.c.h.b16 %v2824
        %v2954 = vunpack.c.l.b16 %v2825
        %v2955 = vunpack.c.l.b16 %v2826
        %v2956 = vunpack.c.l.b16 %v2827
        %v2957 = vunpack.c.h.b16 %v2825
        %v2958 = vunpack.c.h.b16 %v2826
        %v2959 = vunpack.c.h.b16 %v2827
        %v2960 = vunpack.c.l.b16 %v2828
        %v2961 = vunpack.c.l.b16 %v2829
        %v2962 = vunpack.c.l.b16 %v2830
        %v2963 = vunpack.c.h.b16 %v2828
        %v2964 = vunpack.c.h.b16 %v2829
        %v2965 = vunpack.c.h.b16 %v2830
        %v2966 = vunpack.c.l.b16 %v2831
        %v2967 = vunpack.c.l.b16 %v2832
        %v2968 = vunpack.c.l.b16 %v2833
        %v2969 = vunpack.c.h.b16 %v2831
        %v2970 = vunpack.c.h.b16 %v2832
        %v2971 = vunpack.c.h.b16 %v2833
        %v2972 = vunpack.c.l.b16 %v2834
        %v2973 = vunpack.c.l.b16 %v2835
        %v2974 = vunpack.c.l.b16 %v2836
        %v2975 = vunpack.c.h.b16 %v2834
        %v2976 = vunpack.c.h.b16 %v2835
        %v2977 = vunpack.c.h.b16 %v2836
        %v2978 = vunpack.c.l.b16 %v2837
        %v2979 = vunpack.c.l.b16 %v2838
        %v2980 = vunpack.c.l.b16 %v2839
        %v2981 = vunpack.c.h.b16 %v2837
        %v2982 = vunpack.c.h.b16 %v2838
        %v2983 = vunpack.c.h.b16 %v2839
        %v2984 = vpack.c.b16 %v2889, %v2888
        %v2985 = vpack.c.b16 %v2890, %v2890
        %v2986 = vpack.c.b16 %v2892, %v2891
        %v2987 = vpack.c.b16 %v2893, %v2893
        %v2988 = vpack.c.b16 %v2895, %v2894
        %v2989 = vpack.c.b16 %v2896, %v2896
        %v2990 = vpack.c.b16 %v2898, %v2897
        %v2991 = vpack.c.b16 %v2899, %v2899
        %v2992 = vpack.c.b16 %v2901, %v2900
        %v2993 = vpack.c.b16 %v2902, %v2902
        %v2994 = vpack.c.b16 %v2904, %v2903
        %v2995 = vpack.c.b16 %v2905, %v2905
        %v2996 = vpack.c.b16 %v2907, %v2906
        %v2997 = vpack.c.b16 %v2908, %v2908
        %v2998 = vpack.c.b16 %v2910, %v2909
        %v2999 = vpack.c.b16 %v2911, %v2911
        %v3000 = vpack.c.b16 %v2913, %v2912
        %v3001 = vpack.c.b16 %v2914, %v2914
        %v3002 = vpack.c.b16 %v2916, %v2915
        %v3003 = vpack.c.b16 %v2917, %v2917
        %v3004 = vpack.c.b16 %v2919, %v2918
        %v3005 = vpack.c.b16 %v2920, %v2920
        %v3006 = vpack.c.b16 %v2922, %v2921
        %v3007 = vpack.c.b16 %v2923, %v2923
        %v3008 = vpack.c.b16 %v2925, %v2924
        %v3009 = vpack.c.b16 %v2926, %v2926
        %v3010 = vpack.c.b16 %v2928, %v2927
        %v3011 = vpack.c.b16 %v2929, %v2929
        %v3012 = vpack.c.b16 %v2931, %v2930
        %v3013 = vpack.c.b16 %v2932, %v2932
        %v3014 = vpack.c.b16 %v2934, %v2933
        %v3015 = vpack.c.b16 %v2935, %v2935
        %v3016 = vpack.c.b16 %v2937, %v2936
        %v3017 = vpack.c.b16 %v2938, %v2938
        %v3018 = vpack.c.b16 %v2940, %v2939
        %v3019 = vpack.c.b16 %v2941, %v2941
        %v3020 = vpack.c.b16 %v2943, %v2942
        %v3021 = vpack.c.b16 %v2944, %v2944
        %v3022 = vpack.c.b16 %v2946, %v2945
        %v3023 = vpack.c.b16 %v2947, %v2947
        %v3024 = vpack.c.b16 %v2949, %v2948
        %v3025 = vpack.c.b16 %v2950, %v2950
        %v3026 = vpack.c.b16 %v2952, %v2951
        %v3027 = vpack.c.b16 %v2953, %v2953
        %v3028 = vpack.c.b16 %v2955, %v2954
        %v3029 = vpack.c.b16 %v2956, %v2956
        %v3030 = vpack.c.b16 %v2958, %v2957
        %v3031 = vpack.c.b16 %v2959, %v2959
        %v3032 = vpack.c.b16 %v2961, %v2960
        %v3033 = vpack.c.b16 %v2962, %v2962
        %v3034 = vpack.c.b16 %v2964, %v2963
        %v3035 = vpack.c.b16 %v2965, %v2965
        %v3036 = vpack.c.b16 %v2967, %v2966
        %v3037 = vpack.c.b16 %v2968, %v2968
        %v3038 = vpack.c.b16 %v2970, %v2969
        %v3039 = vpack.c.b16 %v2971, %v2971
        %v3040 = vpack.c.b16 %v2973, %v2972
        %v3041 = vpack.c.b16 %v2974, %v2974
        %v3042 = vpack.c.b16 %v2976, %v2975
        %v3043 = vpack.c.b16 %v2977, %v2977
        %v3044 = vpack.c.b16 %v2979, %v2978
        %v3045 = vpack.c.b16 %v2980, %v2980
        %v3046 = vpack.c.b16 %v2982, %v2981
        %v3047 = vpack.c.b16 %v2983, %v2983
        %3112 = vst [vmem:[%s288] sm:$0xff] %v2984
        %3113 = vst [vmem:[%s288 + $0x8] sm:$0xf] %v2985
        %3114 = vst [vmem:[%s288 + $0xc] sm:$0xff] %v2986
        %3115 = vst [vmem:[%s288 + $0x14] sm:$0xf] %v2987
        %3116 = vst [vmem:[%s288 + $0x18] sm:$0xff] %v2988
        %3117 = vst [vmem:[%s288 + $0x20] sm:$0xf] %v2989
        %3118 = vst [vmem:[%s288 + $0x24] sm:$0xff] %v2990
        %3119 = vst [vmem:[%s288 + $0x2c] sm:$0xf] %v2991
        %3120 = vst [vmem:[%s288 + $0x30] sm:$0xff] %v2992
        %3121 = vst [vmem:[%s288 + $0x38] sm:$0xf] %v2993
        %3122 = vst [vmem:[%s288 + $0x3c] sm:$0xff] %v2994
        %3123 = vst [vmem:[%s288 + $0x44] sm:$0xf] %v2995
        %3124 = vst [vmem:[%s288 + $0x48] sm:$0xff] %v2996
        %3125 = vst [vmem:[%s288 + $0x50] sm:$0xf] %v2997
        %3126 = vst [vmem:[%s288 + $0x54] sm:$0xff] %v2998
        %3127 = vst [vmem:[%s288 + $0x5c] sm:$0xf] %v2999
        %3128 = vst [vmem:[%s288 + $0x60] sm:$0xff] %v3000
        %3129 = vst [vmem:[%s288 + $0x68] sm:$0xf] %v3001
        %3130 = vst [vmem:[%s288 + $0x6c] sm:$0xff] %v3002
        %3131 = vst [vmem:[%s288 + $0x74] sm:$0xf] %v3003
        %3132 = vst [vmem:[%s288 + $0x78] sm:$0xff] %v3004
        %3133 = vst [vmem:[%s288 + $0x80] sm:$0xf] %v3005
        %3134 = vst [vmem:[%s288 + $0x84] sm:$0xff] %v3006
        %3135 = vst [vmem:[%s288 + $0x8c] sm:$0xf] %v3007
        %3136 = vst [vmem:[%s288 + $0x90] sm:$0xff] %v3008
        %3137 = vst [vmem:[%s288 + $0x98] sm:$0xf] %v3009
        %3138 = vst [vmem:[%s288 + $0x9c] sm:$0xff] %v3010
        %3139 = vst [vmem:[%s288 + $0xa4] sm:$0xf] %v3011
        %3140 = vst [vmem:[%s288 + $0xa8] sm:$0xff] %v3012
        %3141 = vst [vmem:[%s288 + $0xb0] sm:$0xf] %v3013
        %3142 = vst [vmem:[%s288 + $0xb4] sm:$0xff] %v3014
        %3143 = vst [vmem:[%s288 + $0xbc] sm:$0xf] %v3015
        %3144 = vst [vmem:[%s288 + $0xc0] sm:$0xff] %v3016
        %3145 = vst [vmem:[%s288 + $0xc8] sm:$0xf] %v3017
        %3146 = vst [vmem:[%s288 + $0xcc] sm:$0xff] %v3018
        %3147 = vst [vmem:[%s288 + $0xd4] sm:$0xf] %v3019
        %3148 = vst [vmem:[%s288 + $0xd8] sm:$0xff] %v3020
        %3149 = vst [vmem:[%s288 + $0xe0] sm:$0xf] %v3021
        %3150 = vst [vmem:[%s288 + $0xe4] sm:$0xff] %v3022
        %3151 = vst [vmem:[%s288 + $0xec] sm:$0xf] %v3023
        %3152 = vst [vmem:[%s288 + $0xf0] sm:$0xff] %v3024
        %3153 = vst [vmem:[%s288 + $0xf8] sm:$0xf] %v3025
        %3154 = vst [vmem:[%s288 + $0xfc] sm:$0xff] %v3026
        %3155 = vst [vmem:[%s288 + $0x104] sm:$0xf] %v3027
        %3156 = vst [vmem:[%s288 + $0x108] sm:$0xff] %v3028
        %3157 = vst [vmem:[%s288 + $0x110] sm:$0xf] %v3029
        %3158 = vst [vmem:[%s288 + $0x114] sm:$0xff] %v3030
        %3159 = vst [vmem:[%s288 + $0x11c] sm:$0xf] %v3031
        %3160 = vst [vmem:[%s288 + $0x120] sm:$0xff] %v3032
        %3161 = vst [vmem:[%s288 + $0x128] sm:$0xf] %v3033
        %3162 = vst [vmem:[%s288 + $0x12c] sm:$0xff] %v3034
        %3163 = vst [vmem:[%s288 + $0x134] sm:$0xf] %v3035
        %3164 = vst [vmem:[%s288 + $0x138] sm:$0xff] %v3036
        %3165 = vst [vmem:[%s288 + $0x140] sm:$0xf] %v3037
        %3166 = vst [vmem:[%s288 + $0x144] sm:$0xff] %v3038
        %3167 = vst [vmem:[%s288 + $0x14c] sm:$0xf] %v3039
        %3168 = vst [vmem:[%s288 + $0x150] sm:$0xff] %v3040
        %3169 = vst [vmem:[%s288 + $0x158] sm:$0xf] %v3041
        %3170 = vst [vmem:[%s288 + $0x15c] sm:$0xff] %v3042
        %3171 = vst [vmem:[%s288 + $0x164] sm:$0xf] %v3043
        %3172 = vst [vmem:[%s288 + $0x168] sm:$0xff] %v3044
        %3173 = vst [vmem:[%s288 + $0x170] sm:$0xf] %v3045
        %3174 = vst [vmem:[%s288 + $0x174] sm:$0xff] %v3046
        %3175 = vst [vmem:[%s288 + $0x17c] sm:$0xf] %v3047
        %3176 = vst [vmem:[%s295] sm:$0xff] %v792
        %3177 = vst [vmem:[%s295 + $0x8] sm:$0xff] %v796
        %3178 = vst [vmem:[%s295 + $0x10] sm:$0xff] %v802
        %3179 = vst [vmem:[%s295 + $0x18] sm:$0xff] %v806
        %3180 = vst [vmem:[%s295 + $0x20] sm:$0xff] %v812
        %3181 = vst [vmem:[%s295 + $0x28] sm:$0xff] %v816
        %3182 = vst [vmem:[%s295 + $0x30] sm:$0xff] %v822
        %3183 = vst [vmem:[%s295 + $0x38] sm:$0xff] %v826
        %3184 = vst [vmem:[%s295 + $0x40] sm:$0xff] %v832
        %3185 = vst [vmem:[%s295 + $0x48] sm:$0xff] %v836
        %3186 = vst [vmem:[%s295 + $0x50] sm:$0xff] %v842
        %3187 = vst [vmem:[%s295 + $0x58] sm:$0xff] %v846
        %3188 = vst [vmem:[%s295 + $0x60] sm:$0xff] %v852
        %3189 = vst [vmem:[%s295 + $0x68] sm:$0xff] %v856
        %3190 = vst [vmem:[%s295 + $0x70] sm:$0xff] %v862
        %3191 = vst [vmem:[%s295 + $0x78] sm:$0xff] %v866
        %3192 = vst [vmem:[%s295 + $0x80] sm:$0xff] %v872
        %3193 = vst [vmem:[%s295 + $0x88] sm:$0xff] %v876
        %3194 = vst [vmem:[%s295 + $0x90] sm:$0xff] %v882
        %3195 = vst [vmem:[%s295 + $0x98] sm:$0xff] %v886
        %3196 = vst [vmem:[%s295 + $0xa0] sm:$0xff] %v892
        %3197 = vst [vmem:[%s295 + $0xa8] sm:$0xff] %v896
        %3198 = vst [vmem:[%s295 + $0xb0] sm:$0xff] %v902
        %3199 = vst [vmem:[%s295 + $0xb8] sm:$0xff] %v906
        %3200 = vst [vmem:[%s295 + $0xc0] sm:$0xff] %v912
        %3201 = vst [vmem:[%s295 + $0xc8] sm:$0xff] %v916
        %3202 = vst [vmem:[%s295 + $0xd0] sm:$0xff] %v922
        %3203 = vst [vmem:[%s295 + $0xd8] sm:$0xff] %v926
        %3204 = vst [vmem:[%s295 + $0xe0] sm:$0xff] %v932
        %3205 = vst [vmem:[%s295 + $0xe8] sm:$0xff] %v936
        %3206 = vst [vmem:[%s295 + $0xf0] sm:$0xff] %v942
        %3207 = vst [vmem:[%s295 + $0xf8] sm:$0xff] %v946
        %s3208 = sand.u32 %s125, 1
        %s3209 = scalar_lea.sflag [#allocation4], %s3208
        %s3210 = sand.u32 %s125, 1
        %s3211 = smul.addr %s3210, 384
        %s3212 = scalar_lea.vmem [#allocation10], %s3211
        %s3213 = sand.u32 %s151, 1
        %s3214 = scalar_lea.sflag [#allocation12], %s3213
        %s3215 = sand.u32 %s151, 1
        %s3216 = smul.addr %s3215, 256
        %s3217 = scalar_lea.vmem [#allocation11], %s3216
        // Predicated region
        $region53: #{tpu_custom_call.1} parent=35 // pred_check
          %p3218 = pneg %p135
        $region54: #{tpu_custom_call.1} parent=35 // pred_check_branch
          %3220 = sbr.rel (%p3218) target = $region56
        $region55: #{tpu_custom_call.1} parent=35 // pred_region
          %s3221 = smul.u32 32, %s28
          %s3223 = ssub.s32 6144, 6144
          %3224 = vsyncadd %s3209, %s3223
          %s3225 = smul.addr %s3221, 3
          %s3226 = smul.addr %s3225, 64
          %s3227 = scalar_lea.hbm %s4, %s3226
          %s3228 = sshll.u32 %s3212, 4
          %s3229 = int_to_ptr.vmem [resolvable:$true] %s3228
          %3234 = dma.vmem_to_hbm [thread:$0]  %s3229, 6144, %s3227, %s3209, 192, 192, 12
        $region56: #{tpu_custom_call.1} parent=35 // pred_fallthru
          _
        // Predicated region
        $region57: #{tpu_custom_call.1} parent=35 // pred_check
          %p3235 = pneg %p161
        $region58: #{tpu_custom_call.1} parent=35 // pred_check_branch
          %3237 = sbr.rel (%p3235) target = $region60
        $region59: #{tpu_custom_call.1} parent=35 // pred_region
          %s3238 = smul.u32 32, %s28
          %s3240 = ssub.s32 4096, 4096
          %3241 = vsyncadd %s3214, %s3240
          %s3242 = smul.addr %s3238, 128
          %s3243 = scalar_lea.hbm %s5, %s3242
          %s3244 = sshll.u32 %s3217, 4
          %s3245 = int_to_ptr.vmem [resolvable:$true] %s3244
          %3250 = dma.vmem_to_hbm [thread:$0]  %s3245, 4096, %s3243, %s3214, 128, 128, 8
        $region60: #{tpu_custom_call.1} parent=35 // pred_fallthru
          _
      $region36: #{tpu_custom_call.1} parent=5 // pred_fallthru
        _
      %p3251 = scmp.le.s32.totalorder 2, %s23
      // Predicated region
      $region61: #{tpu_custom_call.1} parent=5 // pred_check
        %p3252 = pneg %p3251
      $region62: #{tpu_custom_call.1} parent=5 // pred_check_branch
        %3254 = sbr.rel (%p3252) target = $region64
      $region63: #{tpu_custom_call.1} parent=5 // pred_region
        %s3255 = ssub.s32 %s23, 2
        // Predicated region
        $region65: #{tpu_custom_call.1} parent=63 // pred_check
          %p3256 = pneg %p141
        $region66: #{tpu_custom_call.1} parent=63 // pred_check_branch
          %3258 = sbr.rel (%p3256) target = $region68
        $region67: #{tpu_custom_call.1} parent=63 // pred_region
          %s3259 = sand.u32 %s126, 1
          %s3260 = scalar_lea.sflag [#allocation4], %s3259
          %s3261 = sand.u32 %s126, 1
          %s3262 = smul.addr %s3261, 384
          %s3263 = scalar_lea.vmem [#allocation10], %s3262
          %3264 = dma.done %s3260, 6144
        $region68: #{tpu_custom_call.1} parent=63 // pred_fallthru
          _
        // Predicated region
        $region69: #{tpu_custom_call.1} parent=63 // pred_check
          %p3265 = pneg %p167
        $region70: #{tpu_custom_call.1} parent=63 // pred_check_branch
          %3267 = sbr.rel (%p3265) target = $region72
        $region71: #{tpu_custom_call.1} parent=63 // pred_region
          %s3268 = sand.u32 %s152, 1
          %s3269 = scalar_lea.sflag [#allocation12], %s3268
          %s3270 = sand.u32 %s152, 1
          %s3271 = smul.addr %s3270, 256
          %s3272 = scalar_lea.vmem [#allocation11], %s3271
          %3273 = dma.done %s3269, 4096
        $region72: #{tpu_custom_call.1} parent=63 // pred_fallthru
          _
      $region64: #{tpu_custom_call.1} parent=5 // pred_fallthru
        _
    $region6: #{tpu_custom_call.1} parent=1 // loop_footer
      %s27 = sadd.s32 1, %s23
    $region7: #{tpu_custom_call.1} parent=1 // loop_footer_branch
      %22 = sbr.rel target = $region3
    $region8: #{tpu_custom_call.1} parent=1 // loop_exit
      _
    %3274 = vsyncpa [#allocation3], 1
    %s3275 = scalar_lea.sflag [#allocation3], 1
    %3276 = vsyncpa %s3275, 1
    %3277 = vsyncpa [#allocation6], 1
    %3278 = vsyncpa [#allocation9], 1
    %3279 = vsyncpa [#allocation4], 1
    %s3280 = scalar_lea.sflag [#allocation4], 1
    %3281 = vsyncpa %s3280, 1
    %3282 = vsyncpa [#allocation12], 1
    %s3283 = scalar_lea.sflag [#allocation12], 1
    %3284 = vsyncpa %s3283, 1

</llo_original>
